<compile_context>
chip_gen: v7x
topology: tpu7x:2x2x1
jax: 0.10.0
libtpu: 0.0.40
codegen_flags: <defaults>
</compile_context>

<pallas_src>
import functools
import math

import jax
import jax.numpy as jnp
from jax import lax
from jax.experimental import pallas as pl
from jax.experimental.pallas import tpu as pltpu


VMEM_SPEC = pl.BlockSpec(memory_space=pltpu.MemorySpace.VMEM)


def _round_up(n, m):
    return ((n + m - 1) // m) * m


# ----------------------------------------------------------------- param packs

class _MatPack:
    """Row-stacks 2-D weight blocks into one lane-dense (R, lane) array."""

    def __init__(self, lane):
        self.lane = lane
        self.rows = 0
        self.entries = []

    def add(self, a):
        a = jnp.asarray(a, jnp.float32)
        r, c = int(a.shape[0]), int(a.shape[1])
        assert c <= self.lane
        off = self.rows
        self.rows += _round_up(r, 8)            # keep every block 8-row aligned
        self.entries.append((off, r, c, a))
        return (off, r, c)

    def build(self):
        buf = jnp.zeros((_round_up(max(self.rows, 8), 8), self.lane), jnp.float32)
        for off, r, c, a in self.entries:
            buf = buf.at[off:off + r, :c].set(a)
        return buf


class _VecPack:
    """One bias / LayerNorm vector per row of a (NV, lane) array."""

    def __init__(self, lane):
        self.lane = lane
        self.entries = []

    def add(self, v):
        v = jnp.asarray(v, jnp.float32).reshape(-1)
        assert int(v.shape[0]) <= self.lane
        row = len(self.entries)
        self.entries.append(v)
        return (row, int(v.shape[0]))

    def build(self):
        buf = jnp.zeros((max(len(self.entries), 1), self.lane), jnp.float32)
        for i, v in enumerate(self.entries):
            buf = buf.at[i, :v.shape[0]].set(v)
        return buf


# ----------------------------------------------------------------------- kernel

def _fused_forward_kernel(x_ref, mats_ref, vecs_ref, o_ref, h_seq_ref, *,
                          B, T, L, H, nhead, num_layers, idx):
    """Whole CNN_LSTM_Attention forward.

    x_ref     : (B, T, L)   input (PyTorch NCL; conv channel axis == time axis)
    mats_ref  : (RM, lane)  all weight matrices, row-stacked
    vecs_ref  : (NV, lane)  all bias / LayerNorm vectors, one per row
    o_ref     : (B, O)      fc output
    h_seq_ref : (T*B, H)    VMEM scratch: LSTM hidden-state slab (t-major rows)
    """
    f32 = jnp.float32

    def mat(spec):                       # static window load from matrix pack
        off, r, c = spec
        return mats_ref[off:off + r, 0:c]

    def vec(spec):                       # (1, c) bias row from vector pack
        row, c = spec
        return vecs_ref[row:row + 1, 0:c]

    # ---- Conv1d(kernel_size=1): pointwise channel mix, one batched matmul ----
    # y[b, t, l] = sum_c conv_w[t, c] * x[b, c, l] + conv_b[t]
    cw = mat(idx['conv_w'])                                        # (T, T)
    cb = mat(idx['conv_b'])                                        # (T, 1)
    x = x_ref[...]                                                 # (B, T, L)
    wb = jnp.broadcast_to(cw, (B, T, T))
    y = lax.dot_general(wb, x, (((2,), (1,)), ((0,), (0,))),
                        preferred_element_type=f32)                # (B, T, L)
    y = y + cb                                                     # per-channel bias
    # single tiny b-major -> t-major relayout; rows become (t-major, b-minor)
    seq = jnp.transpose(y, (1, 0, 2)).reshape(T * B, L)            # (T*B, L)

    # ---- stacked LSTM (input projection hoisted out of the recurrence) ----
    for li in range(num_layers):
        wih_s, whh_s, b_s = idx['lstm'][li]
        wih = mat(wih_s)                                           # (Din, 4H)
        whh = mat(whh_s)                                           # (H, 4H)
        bias = vec(b_s)                                            # (1, 4H)
        inp = seq if li == 0 else h_seq_ref[...]                   # (T*B, Din)
        xg = jnp.dot(inp, wih, preferred_element_type=f32) + bias  # (T*B, 4H)

        h = jnp.zeros((B, H), f32)
        c = jnp.zeros((B, H), f32)
        for t in range(T):          # T small & static: unrolled on purpose
            gates = xg[t * B:(t + 1) * B, :] + jnp.dot(
                h, whh, preferred_element_type=f32)                # (B, 4H)
            sg = jax.nn.sigmoid(gates)      # one EUP pass covers i, f, o
            tg = jnp.tanh(gates)            # one EUP pass covers g
            c = sg[:, H:2 * H] * c + sg[:, 0:H] * tg[:, 2 * H:3 * H]
            h = sg[:, 3 * H:4 * H] * jnp.tanh(c)
            h_seq_ref[t * B:(t + 1) * B, :] = h                    # slab store

    x2d = h_seq_ref[...]                                           # (T*B, H)

    # ---- TransformerEncoder (post-norm, ReLU FFN, dropout = identity) ----
    # PyTorch feeds the (B, T, H) LSTM output into batch_first=False layers, so
    # the attention "sequence" axis is B and the "batch" axis is T.  With x2d
    # rows ordered (t-major, b-minor) that needs no layout change.
    E = H
    NS = T * B
    seg = mat(idx['seg'])        # (E, nhead): per-head lane-sum matrix * 1/sqrt(hd)
    seg_t = mat(idx['seg_t'])    # (nhead, E): per-head lane-broadcast matrix

    def layer_norm(v, g, b):
        mu = jnp.mean(v, axis=-1, keepdims=True)
        var = jnp.mean(v * v, axis=-1, keepdims=True) - mu * mu    # one-pass stats
        return (v - mu) * lax.rsqrt(var + 1e-5) * g + b

    for li in range(num_layers):
        (wqkv_s, bqkv_s, wo_s, bo_s, w1_s, b1_s, w2_s, b2_s,
         g1_s, be1_s, g2_s, be2_s) = idx['tr'][li]

        qkv = jnp.dot(x2d, mat(wqkv_s), preferred_element_type=f32) + vec(bqkv_s)
        q3 = qkv[:, 0:E].reshape(T, B, E)
        k3 = qkv[:, E:2 * E].reshape(T, B, E)
        v3 = qkv[:, 2 * E:3 * E].reshape(T, B, E)

        # scores s_j[(t,i), h] = (1/sqrt(hd)) * sum_{e in head h} q*k  (per key j)
        s_list = []
        for j in range(B):
            prod = (q3 * k3[:, j:j + 1, :]).reshape(NS, E)
            s_list.append(jnp.dot(prod, seg, preferred_element_type=f32))  # (NS, nh)
        m = s_list[0]
        for sj in s_list[1:]:
            m = jnp.maximum(m, sj)
        e_list = [jnp.exp(sj - m) for sj in s_list]
        den = e_list[0]
        for ej in e_list[1:]:
            den = den + ej
        inv = pl.reciprocal(den, approx=True)                      # (NS, nhead)

        # context: expand per-head probs back onto lanes, VPU multiply-accumulate
        ctx3 = None
        for j in range(B):
            p_lanes = jnp.dot(e_list[j] * inv, seg_t,
                              preferred_element_type=f32).reshape(T, B, E)
            term = p_lanes * v3[:, j:j + 1, :]
            ctx3 = term if ctx3 is None else ctx3 + term
        ctx2d = ctx3.reshape(NS, E)

        attn = jnp.dot(ctx2d, mat(wo_s), preferred_element_type=f32) + vec(bo_s)
        y1 = layer_norm(x2d + attn, vec(g1_s), vec(be1_s))
        ff = jnp.maximum(
            jnp.dot(y1, mat(w1_s), preferred_element_type=f32) + vec(b1_s), 0.0)
        ff = jnp.dot(ff, mat(w2_s), preferred_element_type=f32) + vec(b2_s)
        x2d = layer_norm(y1 + ff, vec(g2_s), vec(be2_s))

    # ---- out = fc(transformer_output[:, -1, :]) == rows with t == T-1 ----
    last = x2d[(T - 1) * B:, :]                                    # (B, H)
    o_ref[...] = (jnp.dot(last, mat(idx['fc_w']), preferred_element_type=f32)
                  + vec(idx['fc_b']))


# ------------------------------------------------------------------------ model

class CNNLSTMAttentionPallas:
    def __init__(self, conv_input, input_size, hidden_size, num_layers,
                 output_size, nhead=2, nhid=200, key=None):
        assert hidden_size % nhead == 0
        if key is None:
            key = jax.random.PRNGKey(0)
        self.T, self.L = conv_input, input_size
        self.H, self.num_layers, self.O = hidden_size, num_layers, output_size
        self.nhead, self.nhid = nhead, nhid

        H = E = hidden_size
        hd = E // nhead
        lane = _round_up(max(4 * H, 3 * E, nhid, E, output_size,
                             conv_input, input_size), 128)

        keys = iter(jax.random.split(key, 64))
        def rnd(shape, s=0.2):
            return s * jax.random.normal(next(keys), shape, dtype=jnp.float32)

        mats = _MatPack(lane)
        vecs = _VecPack(lane)
        idx = {}

        # Conv1d(conv_input, conv_input, kernel_size=1)
        idx['conv_w'] = mats.add(rnd((conv_input, conv_input)))
        idx['conv_b'] = mats.add(rnd((conv_input, 1)))

        # LSTM(input_size, hidden_size, num_layers, batch_first=True)
        idx['lstm'] = []
        for li in range(num_layers):
            din = input_size if li == 0 else H
            idx['lstm'].append((
                mats.add(rnd((din, 4 * H))),          # W_ih^T   (gates i|f|g|o)
                mats.add(rnd((H, 4 * H))),            # W_hh^T
                vecs.add(rnd((4 * H,), 0.1)),         # b_ih + b_hh
            ))

        # TransformerEncoder(num_layers x TransformerEncoderLayer(H, nhead, nhid))
        idx['tr'] = []
        for li in range(num_layers):
            idx['tr'].append((
                mats.add(rnd((E, 3 * E))), vecs.add(rnd((3 * E,), 0.1)),   # Wqkv, bqkv
                mats.add(rnd((E, E))),     vecs.add(rnd((E,), 0.1)),       # Wo, bo
                mats.add(rnd((E, nhid))),  vecs.add(rnd((nhid,), 0.1)),    # W1, b1
                mats.add(rnd((nhid, E))),  vecs.add(rnd((E,), 0.1)),       # W2, b2
                vecs.add(jnp.ones((E,), jnp.float32)),                     # LN1 gamma
                vecs.add(jnp.zeros((E,), jnp.float32)),                    # LN1 beta
                vecs.add(jnp.ones((E,), jnp.float32)),                     # LN2 gamma
                vecs.add(jnp.zeros((E,), jnp.float32)),                    # LN2 beta
            ))

        # fc: Linear(hidden_size, output_size) (stored pre-transposed)
        idx['fc_w'] = mats.add(rnd((H, output_size)))
        idx['fc_b'] = vecs.add(rnd((output_size,), 0.1))

        # constant head-segment matrices (scores scale folded into `seg`)
        scale = 1.0 / math.sqrt(hd)
        seg = jnp.array([[scale if (e // hd) == h2 else 0.0
                          for h2 in range(nhead)] for e in range(E)], jnp.float32)
        seg_t = jnp.array([[1.0 if (e // hd) == h2 else 0.0
                            for e in range(E)] for h2 in range(nhead)], jnp.float32)
        idx['seg'] = mats.add(seg)
        idx['seg_t'] = mats.add(seg_t)

        self.idx = idx
        self.mats = mats.build()
        self.vecs = vecs.build()

    def __call__(self, x):
        # x: (B, C=conv_input, L=input_size), float32  (PyTorch NCL)
        B, C, L = x.shape
        assert C == self.T and L == self.L

        kern = functools.partial(
            _fused_forward_kernel,
            B=B, T=self.T, L=self.L, H=self.H, nhead=self.nhead,
            num_layers=self.num_layers, idx=self.idx)

        return pl.pallas_call(
            kern,
            out_shape=jax.ShapeDtypeStruct((B, self.O), jnp.float32),
            in_specs=[VMEM_SPEC, VMEM_SPEC, VMEM_SPEC],
            out_specs=VMEM_SPEC,
            scratch_shapes=[pltpu.VMEM((self.T * B, self.H), jnp.float32)],
            # Footprint < 1 MiB: a modest limit keeps this gridless, fully
            # VMEM-resident design safe on v7x's 64 MiB VMEM as well.
            # TODO(synk): at larger B/T/H, switch to a batch grid with
            # BlockSpec pipelining ("parallel" semantics -> both v7x TCs).
            compiler_params=pltpu.CompilerParams(
                vmem_limit_bytes=32 * 1024 * 1024),
        )(x, self.mats, self.vecs)


if __name__ == "__main__":
    # small shapes consistent with the module:
    #   conv_input (= seq len T) = 8, input_size = 16, hidden = 32,
    #   num_layers = 2, output_size = 4, nhead = 2, nhid = 64, batch = 2
    B, conv_input, input_size = 2, 8, 16
    hidden_size, num_layers, output_size = 32, 2, 4

    key = jax.random.PRNGKey(0)
    kparams, kx = jax.random.split(key)

    model = CNNLSTMAttentionPallas(conv_input, input_size, hidden_size,
                                   num_layers, output_size,
                                   nhead=2, nhid=64, key=kparams)

    x = jax.random.normal(kx, (B, conv_input, input_size), dtype=jnp.float32)

    out = jax.block_until_ready(model(x))
    assert out.shape == (B, output_size), out.shape
    assert bool(jnp.all(jnp.isfinite(out)))
    print("KERNEL_OK")
</pallas_src>

<mosaic_0001>
module attributes {stable_mosaic.version = 11 : i64} {
  func.func @_fused_forward_kernel(%arg0: memref<2x8x16xf32, #tpu.memory_space<vmem>>, %arg1: memref<520x128xf32, #tpu.memory_space<vmem>>, %arg2: memref<19x128xf32, #tpu.memory_space<vmem>>, %arg3: memref<2x4xf32, #tpu.memory_space<vmem>>, %arg4: memref<16x32xf32, #tpu.memory_space<vmem>>) attributes {dimension_semantics = [], scalar_prefetch = 0 : i64, scratch_operands = 1 : i64, tpu.core_type = #tpu.core_type<tc>} {
    %c0 = arith.constant 0 : index
    %c0_0 = arith.constant 0 : index
    %0 = vector.load %arg1[%c0, %c0_0] : memref<520x128xf32, #tpu.memory_space<vmem>>, vector<8x8xf32>
    %c8 = arith.constant 8 : index
    %c0_1 = arith.constant 0 : index
    %1 = vector.load %arg1[%c8, %c0_1] : memref<520x128xf32, #tpu.memory_space<vmem>>, vector<8x1xf32>
    %c0_2 = arith.constant 0 : index
    %c0_3 = arith.constant 0 : index
    %c0_4 = arith.constant 0 : index
    %2 = vector.load %arg0[%c0_2, %c0_3, %c0_4] : memref<2x8x16xf32, #tpu.memory_space<vmem>>, vector<2x8x16xf32>
    %3 = vector.shape_cast %0 : vector<8x8xf32> to vector<1x8x8xf32>
    %4 = vector.broadcast %3 : vector<1x8x8xf32> to vector<2x8x8xf32>
    %cst = arith.constant dense<0.000000e+00> : vector<2x8x16xf32>
    %5 = tpu.matmul %4, %2, %cst {dimension_numbers = #tpu.dot_dimension_numbers<[2], [1], [1], [2], [0, 0, 0, 1, 1, 2], [0], [0]>} : vector<2x8x8xf32>, vector<2x8x16xf32>, vector<2x8x16xf32> -> vector<2x8x16xf32>
    %6 = vector.shape_cast %1 : vector<8x1xf32> to vector<1x8x1xf32>
    %7 = vector.broadcast %6 : vector<1x8x1xf32> to vector<2x8x16xf32>
    %8 = arith.addf %5, %7 : vector<2x8x16xf32>
    %9 = tpu.transpose %8, [1, 0, 2] : vector<2x8x16xf32> -> vector<8x2x16xf32>
    %10 = vector.shape_cast %9 : vector<8x2x16xf32> to vector<16x16xf32>
    %c16 = arith.constant 16 : index
    %c0_5 = arith.constant 0 : index
    %11 = vector.load %arg1[%c16, %c0_5] : memref<520x128xf32, #tpu.memory_space<vmem>>, vector<16x128xf32>
    %c32 = arith.constant 32 : index
    %c0_6 = arith.constant 0 : index
    %12 = vector.load %arg1[%c32, %c0_6] : memref<520x128xf32, #tpu.memory_space<vmem>>, vector<32x128xf32>
    %c0_7 = arith.constant 0 : index
    %c0_8 = arith.constant 0 : index
    %13 = vector.load %arg2[%c0_7, %c0_8] : memref<19x128xf32, #tpu.memory_space<vmem>>, vector<1x128xf32>
    %cst_9 = arith.constant dense<0.000000e+00> : vector<16x128xf32>
    %14 = tpu.matmul %10, %11, %cst_9 {dimension_numbers = #tpu.dot_dimension_numbers<[1], [0], [0], [1], [0, 0, 1, 1], [], []>} : vector<16x16xf32>, vector<16x128xf32>, vector<16x128xf32> -> vector<16x128xf32>
    %15 = vector.broadcast %13 : vector<1x128xf32> to vector<16x128xf32>
    %16 = arith.addf %14, %15 : vector<16x128xf32>
    %cst_10 = arith.constant 0.000000e+00 : f32
    %17 = vector.broadcast %cst_10 : f32 to vector<2x32xf32>
    %cst_11 = arith.constant 0.000000e+00 : f32
    %18 = vector.broadcast %cst_11 : f32 to vector<2x32xf32>
    %19 = vector.extract_strided_slice %16 {offsets = [0, 0], sizes = [2, 128], strides = [1, 1]} : vector<16x128xf32> to vector<2x128xf32>
    %cst_12 = arith.constant dense<0.000000e+00> : vector<2x128xf32>
    %20 = tpu.matmul %17, %12, %cst_12 {dimension_numbers = #tpu.dot_dimension_numbers<[1], [0], [0], [1], [0, 0, 1, 1], [], []>} : vector<2x32xf32>, vector<32x128xf32>, vector<2x128xf32> -> vector<2x128xf32>
    %21 = arith.addf %19, %20 : vector<2x128xf32>
    %22 = arith.negf %21 : vector<2x128xf32>
    %23 = math.exp %22 : vector<2x128xf32>
    %cst_13 = arith.constant 1.000000e+00 : f32
    %24 = vector.broadcast %cst_13 : f32 to vector<2x128xf32>
    %25 = arith.addf %24, %23 : vector<2x128xf32>
    %26 = arith.divf %24, %25 : vector<2x128xf32>
    %27 = math.tanh %21 : vector<2x128xf32>
    %28 = vector.extract_strided_slice %26 {offsets = [0, 32], sizes = [2, 32], strides = [1, 1]} : vector<2x128xf32> to vector<2x32xf32>
    %29 = arith.mulf %28, %18 : vector<2x32xf32>
    %30 = vector.extract_strided_slice %26 {offsets = [0, 0], sizes = [2, 32], strides = [1, 1]} : vector<2x128xf32> to vector<2x32xf32>
    %31 = vector.extract_strided_slice %27 {offsets = [0, 64], sizes = [2, 32], strides = [1, 1]} : vector<2x128xf32> to vector<2x32xf32>
    %32 = arith.mulf %30, %31 : vector<2x32xf32>
    %33 = arith.addf %29, %32 : vector<2x32xf32>
    %34 = vector.extract_strided_slice %26 {offsets = [0, 96], sizes = [2, 32], strides = [1, 1]} : vector<2x128xf32> to vector<2x32xf32>
    %35 = math.tanh %33 : vector<2x32xf32>
    %36 = arith.mulf %34, %35 : vector<2x32xf32>
    %c0_14 = arith.constant 0 : index
    %c0_15 = arith.constant 0 : index
    %37 = vector.load %arg4[%c0_14, %c0_15] : memref<16x32xf32, #tpu.memory_space<vmem>>, vector<2x32xf32>
    tpu.vector_store %arg4[%c0_14, %c0_15], %36 {strides = array<i32>} : memref<16x32xf32, #tpu.memory_space<vmem>>, vector<2x32xf32>,
    %38 = vector.extract_strided_slice %16 {offsets = [2, 0], sizes = [2, 128], strides = [1, 1]} : vector<16x128xf32> to vector<2x128xf32>
    %cst_16 = arith.constant dense<0.000000e+00> : vector<2x128xf32>
    %39 = tpu.matmul %36, %12, %cst_16 {dimension_numbers = #tpu.dot_dimension_numbers<[1], [0], [0], [1], [0, 0, 1, 1], [], []>} : vector<2x32xf32>, vector<32x128xf32>, vector<2x128xf32> -> vector<2x128xf32>
    %40 = arith.addf %38, %39 : vector<2x128xf32>
    %41 = arith.negf %40 : vector<2x128xf32>
    %42 = math.exp %41 : vector<2x128xf32>
    %cst_17 = arith.constant 1.000000e+00 : f32
    %43 = vector.broadcast %cst_17 : f32 to vector<2x128xf32>
    %44 = arith.addf %43, %42 : vector<2x128xf32>
    %45 = arith.divf %43, %44 : vector<2x128xf32>
    %46 = math.tanh %40 : vector<2x128xf32>
    %47 = vector.extract_strided_slice %45 {offsets = [0, 32], sizes = [2, 32], strides = [1, 1]} : vector<2x128xf32> to vector<2x32xf32>
    %48 = arith.mulf %47, %33 : vector<2x32xf32>
    %49 = vector.extract_strided_slice %45 {offsets = [0, 0], sizes = [2, 32], strides = [1, 1]} : vector<2x128xf32> to vector<2x32xf32>
    %50 = vector.extract_strided_slice %46 {offsets = [0, 64], sizes = [2, 32], strides = [1, 1]} : vector<2x128xf32> to vector<2x32xf32>
    %51 = arith.mulf %49, %50 : vector<2x32xf32>
    %52 = arith.addf %48, %51 : vector<2x32xf32>
    %53 = vector.extract_strided_slice %45 {offsets = [0, 96], sizes = [2, 32], strides = [1, 1]} : vector<2x128xf32> to vector<2x32xf32>
    %54 = math.tanh %52 : vector<2x32xf32>
    %55 = arith.mulf %53, %54 : vector<2x32xf32>
    %c2 = arith.constant 2 : index
    %c0_18 = arith.constant 0 : index
    %56 = vector.load %arg4[%c2, %c0_18] : memref<16x32xf32, #tpu.memory_space<vmem>>, vector<2x32xf32>
    tpu.vector_store %arg4[%c2, %c0_18], %55 {strides = array<i32>} : memref<16x32xf32, #tpu.memory_space<vmem>>, vector<2x32xf32>,
    %57 = vector.extract_strided_slice %16 {offsets = [4, 0], sizes = [2, 128], strides = [1, 1]} : vector<16x128xf32> to vector<2x128xf32>
    %cst_19 = arith.constant dense<0.000000e+00> : vector<2x128xf32>
    %58 = tpu.matmul %55, %12, %cst_19 {dimension_numbers = #tpu.dot_dimension_numbers<[1], [0], [0], [1], [0, 0, 1, 1], [], []>} : vector<2x32xf32>, vector<32x128xf32>, vector<2x128xf32> -> vector<2x128xf32>
    %59 = arith.addf %57, %58 : vector<2x128xf32>
    %60 = arith.negf %59 : vector<2x128xf32>
    %61 = math.exp %60 : vector<2x128xf32>
    %cst_20 = arith.constant 1.000000e+00 : f32
    %62 = vector.broadcast %cst_20 : f32 to vector<2x128xf32>
    %63 = arith.addf %62, %61 : vector<2x128xf32>
    %64 = arith.divf %62, %63 : vector<2x128xf32>
    %65 = math.tanh %59 : vector<2x128xf32>
    %66 = vector.extract_strided_slice %64 {offsets = [0, 32], sizes = [2, 32], strides = [1, 1]} : vector<2x128xf32> to vector<2x32xf32>
    %67 = arith.mulf %66, %52 : vector<2x32xf32>
    %68 = vector.extract_strided_slice %64 {offsets = [0, 0], sizes = [2, 32], strides = [1, 1]} : vector<2x128xf32> to vector<2x32xf32>
    %69 = vector.extract_strided_slice %65 {offsets = [0, 64], sizes = [2, 32], strides = [1, 1]} : vector<2x128xf32> to vector<2x32xf32>
    %70 = arith.mulf %68, %69 : vector<2x32xf32>
    %71 = arith.addf %67, %70 : vector<2x32xf32>
    %72 = vector.extract_strided_slice %64 {offsets = [0, 96], sizes = [2, 32], strides = [1, 1]} : vector<2x128xf32> to vector<2x32xf32>
    %73 = math.tanh %71 : vector<2x32xf32>
    %74 = arith.mulf %72, %73 : vector<2x32xf32>
    %c4 = arith.constant 4 : index
    %c0_21 = arith.constant 0 : index
    %75 = vector.load %arg4[%c4, %c0_21] : memref<16x32xf32, #tpu.memory_space<vmem>>, vector<2x32xf32>
    tpu.vector_store %arg4[%c4, %c0_21], %74 {strides = array<i32>} : memref<16x32xf32, #tpu.memory_space<vmem>>, vector<2x32xf32>,
    %76 = vector.extract_strided_slice %16 {offsets = [6, 0], sizes = [2, 128], strides = [1, 1]} : vector<16x128xf32> to vector<2x128xf32>
    %cst_22 = arith.constant dense<0.000000e+00> : vector<2x128xf32>
    %77 = tpu.matmul %74, %12, %cst_22 {dimension_numbers = #tpu.dot_dimension_numbers<[1], [0], [0], [1], [0, 0, 1, 1], [], []>} : vector<2x32xf32>, vector<32x128xf32>, vector<2x128xf32> -> vector<2x128xf32>
    %78 = arith.addf %76, %77 : vector<2x128xf32>
    %79 = arith.negf %78 : vector<2x128xf32>
    %80 = math.exp %79 : vector<2x128xf32>
    %cst_23 = arith.constant 1.000000e+00 : f32
    %81 = vector.broadcast %cst_23 : f32 to vector<2x128xf32>
    %82 = arith.addf %81, %80 : vector<2x128xf32>
    %83 = arith.divf %81, %82 : vector<2x128xf32>
    %84 = math.tanh %78 : vector<2x128xf32>
    %85 = vector.extract_strided_slice %83 {offsets = [0, 32], sizes = [2, 32], strides = [1, 1]} : vector<2x128xf32> to vector<2x32xf32>
    %86 = arith.mulf %85, %71 : vector<2x32xf32>
    %87 = vector.extract_strided_slice %83 {offsets = [0, 0], sizes = [2, 32], strides = [1, 1]} : vector<2x128xf32> to vector<2x32xf32>
    %88 = vector.extract_strided_slice %84 {offsets = [0, 64], sizes = [2, 32], strides = [1, 1]} : vector<2x128xf32> to vector<2x32xf32>
    %89 = arith.mulf %87, %88 : vector<2x32xf32>
    %90 = arith.addf %86, %89 : vector<2x32xf32>
    %91 = vector.extract_strided_slice %83 {offsets = [0, 96], sizes = [2, 32], strides = [1, 1]} : vector<2x128xf32> to vector<2x32xf32>
    %92 = math.tanh %90 : vector<2x32xf32>
    %93 = arith.mulf %91, %92 : vector<2x32xf32>
    %c6 = arith.constant 6 : index
    %c0_24 = arith.constant 0 : index
    %94 = vector.load %arg4[%c6, %c0_24] : memref<16x32xf32, #tpu.memory_space<vmem>>, vector<2x32xf32>
    tpu.vector_store %arg4[%c6, %c0_24], %93 {strides = array<i32>} : memref<16x32xf32, #tpu.memory_space<vmem>>, vector<2x32xf32>,
    %95 = vector.extract_strided_slice %16 {offsets = [8, 0], sizes = [2, 128], strides = [1, 1]} : vector<16x128xf32> to vector<2x128xf32>
    %cst_25 = arith.constant dense<0.000000e+00> : vector<2x128xf32>
    %96 = tpu.matmul %93, %12, %cst_25 {dimension_numbers = #tpu.dot_dimension_numbers<[1], [0], [0], [1], [0, 0, 1, 1], [], []>} : vector<2x32xf32>, vector<32x128xf32>, vector<2x128xf32> -> vector<2x128xf32>
    %97 = arith.addf %95, %96 : vector<2x128xf32>
    %98 = arith.negf %97 : vector<2x128xf32>
    %99 = math.exp %98 : vector<2x128xf32>
    %cst_26 = arith.constant 1.000000e+00 : f32
    %100 = vector.broadcast %cst_26 : f32 to vector<2x128xf32>
    %101 = arith.addf %100, %99 : vector<2x128xf32>
    %102 = arith.divf %100, %101 : vector<2x128xf32>
    %103 = math.tanh %97 : vector<2x128xf32>
    %104 = vector.extract_strided_slice %102 {offsets = [0, 32], sizes = [2, 32], strides = [1, 1]} : vector<2x128xf32> to vector<2x32xf32>
    %105 = arith.mulf %104, %90 : vector<2x32xf32>
    %106 = vector.extract_strided_slice %102 {offsets = [0, 0], sizes = [2, 32], strides = [1, 1]} : vector<2x128xf32> to vector<2x32xf32>
    %107 = vector.extract_strided_slice %103 {offsets = [0, 64], sizes = [2, 32], strides = [1, 1]} : vector<2x128xf32> to vector<2x32xf32>
    %108 = arith.mulf %106, %107 : vector<2x32xf32>
    %109 = arith.addf %105, %108 : vector<2x32xf32>
    %110 = vector.extract_strided_slice %102 {offsets = [0, 96], sizes = [2, 32], strides = [1, 1]} : vector<2x128xf32> to vector<2x32xf32>
    %111 = math.tanh %109 : vector<2x32xf32>
    %112 = arith.mulf %110, %111 : vector<2x32xf32>
    %c8_27 = arith.constant 8 : index
    %c0_28 = arith.constant 0 : index
    %113 = vector.load %arg4[%c8_27, %c0_28] : memref<16x32xf32, #tpu.memory_space<vmem>>, vector<2x32xf32>
    tpu.vector_store %arg4[%c8_27, %c0_28], %112 {strides = array<i32>} : memref<16x32xf32, #tpu.memory_space<vmem>>, vector<2x32xf32>,
    %114 = vector.extract_strided_slice %16 {offsets = [10, 0], sizes = [2, 128], strides = [1, 1]} : vector<16x128xf32> to vector<2x128xf32>
    %cst_29 = arith.constant dense<0.000000e+00> : vector<2x128xf32>
    %115 = tpu.matmul %112, %12, %cst_29 {dimension_numbers = #tpu.dot_dimension_numbers<[1], [0], [0], [1], [0, 0, 1, 1], [], []>} : vector<2x32xf32>, vector<32x128xf32>, vector<2x128xf32> -> vector<2x128xf32>
    %116 = arith.addf %114, %115 : vector<2x128xf32>
    %117 = arith.negf %116 : vector<2x128xf32>
    %118 = math.exp %117 : vector<2x128xf32>
    %cst_30 = arith.constant 1.000000e+00 : f32
    %119 = vector.broadcast %cst_30 : f32 to vector<2x128xf32>
    %120 = arith.addf %119, %118 : vector<2x128xf32>
    %121 = arith.divf %119, %120 : vector<2x128xf32>
    %122 = math.tanh %116 : vector<2x128xf32>
    %123 = vector.extract_strided_slice %121 {offsets = [0, 32], sizes = [2, 32], strides = [1, 1]} : vector<2x128xf32> to vector<2x32xf32>
    %124 = arith.mulf %123, %109 : vector<2x32xf32>
    %125 = vector.extract_strided_slice %121 {offsets = [0, 0], sizes = [2, 32], strides = [1, 1]} : vector<2x128xf32> to vector<2x32xf32>
    %126 = vector.extract_strided_slice %122 {offsets = [0, 64], sizes = [2, 32], strides = [1, 1]} : vector<2x128xf32> to vector<2x32xf32>
    %127 = arith.mulf %125, %126 : vector<2x32xf32>
    %128 = arith.addf %124, %127 : vector<2x32xf32>
    %129 = vector.extract_strided_slice %121 {offsets = [0, 96], sizes = [2, 32], strides = [1, 1]} : vector<2x128xf32> to vector<2x32xf32>
    %130 = math.tanh %128 : vector<2x32xf32>
    %131 = arith.mulf %129, %130 : vector<2x32xf32>
    %c10 = arith.constant 10 : index
    %c0_31 = arith.constant 0 : index
    %132 = vector.load %arg4[%c10, %c0_31] : memref<16x32xf32, #tpu.memory_space<vmem>>, vector<2x32xf32>
    tpu.vector_store %arg4[%c10, %c0_31], %131 {strides = array<i32>} : memref<16x32xf32, #tpu.memory_space<vmem>>, vector<2x32xf32>,
    %133 = vector.extract_strided_slice %16 {offsets = [12, 0], sizes = [2, 128], strides = [1, 1]} : vector<16x128xf32> to vector<2x128xf32>
    %cst_32 = arith.constant dense<0.000000e+00> : vector<2x128xf32>
    %134 = tpu.matmul %131, %12, %cst_32 {dimension_numbers = #tpu.dot_dimension_numbers<[1], [0], [0], [1], [0, 0, 1, 1], [], []>} : vector<2x32xf32>, vector<32x128xf32>, vector<2x128xf32> -> vector<2x128xf32>
    %135 = arith.addf %133, %134 : vector<2x128xf32>
    %136 = arith.negf %135 : vector<2x128xf32>
    %137 = math.exp %136 : vector<2x128xf32>
    %cst_33 = arith.constant 1.000000e+00 : f32
    %138 = vector.broadcast %cst_33 : f32 to vector<2x128xf32>
    %139 = arith.addf %138, %137 : vector<2x128xf32>
    %140 = arith.divf %138, %139 : vector<2x128xf32>
    %141 = math.tanh %135 : vector<2x128xf32>
    %142 = vector.extract_strided_slice %140 {offsets = [0, 32], sizes = [2, 32], strides = [1, 1]} : vector<2x128xf32> to vector<2x32xf32>
    %143 = arith.mulf %142, %128 : vector<2x32xf32>
    %144 = vector.extract_strided_slice %140 {offsets = [0, 0], sizes = [2, 32], strides = [1, 1]} : vector<2x128xf32> to vector<2x32xf32>
    %145 = vector.extract_strided_slice %141 {offsets = [0, 64], sizes = [2, 32], strides = [1, 1]} : vector<2x128xf32> to vector<2x32xf32>
    %146 = arith.mulf %144, %145 : vector<2x32xf32>
    %147 = arith.addf %143, %146 : vector<2x32xf32>
    %148 = vector.extract_strided_slice %140 {offsets = [0, 96], sizes = [2, 32], strides = [1, 1]} : vector<2x128xf32> to vector<2x32xf32>
    %149 = math.tanh %147 : vector<2x32xf32>
    %150 = arith.mulf %148, %149 : vector<2x32xf32>
    %c12 = arith.constant 12 : index
    %c0_34 = arith.constant 0 : index
    %151 = vector.load %arg4[%c12, %c0_34] : memref<16x32xf32, #tpu.memory_space<vmem>>, vector<2x32xf32>
    tpu.vector_store %arg4[%c12, %c0_34], %150 {strides = array<i32>} : memref<16x32xf32, #tpu.memory_space<vmem>>, vector<2x32xf32>,
    %152 = vector.extract_strided_slice %16 {offsets = [14, 0], sizes = [2, 128], strides = [1, 1]} : vector<16x128xf32> to vector<2x128xf32>
    %cst_35 = arith.constant dense<0.000000e+00> : vector<2x128xf32>
    %153 = tpu.matmul %150, %12, %cst_35 {dimension_numbers = #tpu.dot_dimension_numbers<[1], [0], [0], [1], [0, 0, 1, 1], [], []>} : vector<2x32xf32>, vector<32x128xf32>, vector<2x128xf32> -> vector<2x128xf32>
    %154 = arith.addf %152, %153 : vector<2x128xf32>
    %155 = arith.negf %154 : vector<2x128xf32>
    %156 = math.exp %155 : vector<2x128xf32>
    %cst_36 = arith.constant 1.000000e+00 : f32
    %157 = vector.broadcast %cst_36 : f32 to vector<2x128xf32>
    %158 = arith.addf %157, %156 : vector<2x128xf32>
    %159 = arith.divf %157, %158 : vector<2x128xf32>
    %160 = math.tanh %154 : vector<2x128xf32>
    %161 = vector.extract_strided_slice %159 {offsets = [0, 32], sizes = [2, 32], strides = [1, 1]} : vector<2x128xf32> to vector<2x32xf32>
    %162 = arith.mulf %161, %147 : vector<2x32xf32>
    %163 = vector.extract_strided_slice %159 {offsets = [0, 0], sizes = [2, 32], strides = [1, 1]} : vector<2x128xf32> to vector<2x32xf32>
    %164 = vector.extract_strided_slice %160 {offsets = [0, 64], sizes = [2, 32], strides = [1, 1]} : vector<2x128xf32> to vector<2x32xf32>
    %165 = arith.mulf %163, %164 : vector<2x32xf32>
    %166 = arith.addf %162, %165 : vector<2x32xf32>
    %167 = vector.extract_strided_slice %159 {offsets = [0, 96], sizes = [2, 32], strides = [1, 1]} : vector<2x128xf32> to vector<2x32xf32>
    %168 = math.tanh %166 : vector<2x32xf32>
    %169 = arith.mulf %167, %168 : vector<2x32xf32>
    %c14 = arith.constant 14 : index
    %c0_37 = arith.constant 0 : index
    %170 = vector.load %arg4[%c14, %c0_37] : memref<16x32xf32, #tpu.memory_space<vmem>>, vector<2x32xf32>
    tpu.vector_store %arg4[%c14, %c0_37], %169 {strides = array<i32>} : memref<16x32xf32, #tpu.memory_space<vmem>>, vector<2x32xf32>,
    %c64 = arith.constant 64 : index
    %c0_38 = arith.constant 0 : index
    %171 = vector.load %arg1[%c64, %c0_38] : memref<520x128xf32, #tpu.memory_space<vmem>>, vector<32x128xf32>
    %c96 = arith.constant 96 : index
    %c0_39 = arith.constant 0 : index
    %172 = vector.load %arg1[%c96, %c0_39] : memref<520x128xf32, #tpu.memory_space<vmem>>, vector<32x128xf32>
    %c1 = arith.constant 1 : index
    %c0_40 = arith.constant 0 : index
    %173 = vector.load %arg2[%c1, %c0_40] : memref<19x128xf32, #tpu.memory_space<vmem>>, vector<1x128xf32>
    %c0_41 = arith.constant 0 : index
    %c0_42 = arith.constant 0 : index
    %174 = vector.load %arg4[%c0_41, %c0_42] : memref<16x32xf32, #tpu.memory_space<vmem>>, vector<16x32xf32>
    %cst_43 = arith.constant dense<0.000000e+00> : vector<16x128xf32>
    %175 = tpu.matmul %174, %171, %cst_43 {dimension_numbers = #tpu.dot_dimension_numbers<[1], [0], [0], [1], [0, 0, 1, 1], [], []>} : vector<16x32xf32>, vector<32x128xf32>, vector<16x128xf32> -> vector<16x128xf32>
    %176 = vector.broadcast %173 : vector<1x128xf32> to vector<16x128xf32>
    %177 = arith.addf %175, %176 : vector<16x128xf32>
    %cst_44 = arith.constant 0.000000e+00 : f32
    %178 = vector.broadcast %cst_44 : f32 to vector<2x32xf32>
    %cst_45 = arith.constant 0.000000e+00 : f32
    %179 = vector.broadcast %cst_45 : f32 to vector<2x32xf32>
    %180 = vector.extract_strided_slice %177 {offsets = [0, 0], sizes = [2, 128], strides = [1, 1]} : vector<16x128xf32> to vector<2x128xf32>
    %cst_46 = arith.constant dense<0.000000e+00> : vector<2x128xf32>
    %181 = tpu.matmul %178, %172, %cst_46 {dimension_numbers = #tpu.dot_dimension_numbers<[1], [0], [0], [1], [0, 0, 1, 1], [], []>} : vector<2x32xf32>, vector<32x128xf32>, vector<2x128xf32> -> vector<2x128xf32>
    %182 = arith.addf %180, %181 : vector<2x128xf32>
    %183 = arith.negf %182 : vector<2x128xf32>
    %184 = math.exp %183 : vector<2x128xf32>
    %cst_47 = arith.constant 1.000000e+00 : f32
    %185 = vector.broadcast %cst_47 : f32 to vector<2x128xf32>
    %186 = arith.addf %185, %184 : vector<2x128xf32>
    %187 = arith.divf %185, %186 : vector<2x128xf32>
    %188 = math.tanh %182 : vector<2x128xf32>
    %189 = vector.extract_strided_slice %187 {offsets = [0, 32], sizes = [2, 32], strides = [1, 1]} : vector<2x128xf32> to vector<2x32xf32>
    %190 = arith.mulf %189, %179 : vector<2x32xf32>
    %191 = vector.extract_strided_slice %187 {offsets = [0, 0], sizes = [2, 32], strides = [1, 1]} : vector<2x128xf32> to vector<2x32xf32>
    %192 = vector.extract_strided_slice %188 {offsets = [0, 64], sizes = [2, 32], strides = [1, 1]} : vector<2x128xf32> to vector<2x32xf32>
    %193 = arith.mulf %191, %192 : vector<2x32xf32>
    %194 = arith.addf %190, %193 : vector<2x32xf32>
    %195 = vector.extract_strided_slice %187 {offsets = [0, 96], sizes = [2, 32], strides = [1, 1]} : vector<2x128xf32> to vector<2x32xf32>
    %196 = math.tanh %194 : vector<2x32xf32>
    %197 = arith.mulf %195, %196 : vector<2x32xf32>
    %c0_48 = arith.constant 0 : index
    %c0_49 = arith.constant 0 : index
    %198 = vector.load %arg4[%c0_48, %c0_49] : memref<16x32xf32, #tpu.memory_space<vmem>>, vector<2x32xf32>
    tpu.vector_store %arg4[%c0_48, %c0_49], %197 {strides = array<i32>} : memref<16x32xf32, #tpu.memory_space<vmem>>, vector<2x32xf32>,
    %199 = vector.extract_strided_slice %177 {offsets = [2, 0], sizes = [2, 128], strides = [1, 1]} : vector<16x128xf32> to vector<2x128xf32>
    %cst_50 = arith.constant dense<0.000000e+00> : vector<2x128xf32>
    %200 = tpu.matmul %197, %172, %cst_50 {dimension_numbers = #tpu.dot_dimension_numbers<[1], [0], [0], [1], [0, 0, 1, 1], [], []>} : vector<2x32xf32>, vector<32x128xf32>, vector<2x128xf32> -> vector<2x128xf32>
    %201 = arith.addf %199, %200 : vector<2x128xf32>
    %202 = arith.negf %201 : vector<2x128xf32>
    %203 = math.exp %202 : vector<2x128xf32>
    %cst_51 = arith.constant 1.000000e+00 : f32
    %204 = vector.broadcast %cst_51 : f32 to vector<2x128xf32>
    %205 = arith.addf %204, %203 : vector<2x128xf32>
    %206 = arith.divf %204, %205 : vector<2x128xf32>
    %207 = math.tanh %201 : vector<2x128xf32>
    %208 = vector.extract_strided_slice %206 {offsets = [0, 32], sizes = [2, 32], strides = [1, 1]} : vector<2x128xf32> to vector<2x32xf32>
    %209 = arith.mulf %208, %194 : vector<2x32xf32>
    %210 = vector.extract_strided_slice %206 {offsets = [0, 0], sizes = [2, 32], strides = [1, 1]} : vector<2x128xf32> to vector<2x32xf32>
    %211 = vector.extract_strided_slice %207 {offsets = [0, 64], sizes = [2, 32], strides = [1, 1]} : vector<2x128xf32> to vector<2x32xf32>
    %212 = arith.mulf %210, %211 : vector<2x32xf32>
    %213 = arith.addf %209, %212 : vector<2x32xf32>
    %214 = vector.extract_strided_slice %206 {offsets = [0, 96], sizes = [2, 32], strides = [1, 1]} : vector<2x128xf32> to vector<2x32xf32>
    %215 = math.tanh %213 : vector<2x32xf32>
    %216 = arith.mulf %214, %215 : vector<2x32xf32>
    %c2_52 = arith.constant 2 : index
    %c0_53 = arith.constant 0 : index
    %217 = vector.load %arg4[%c2_52, %c0_53] : memref<16x32xf32, #tpu.memory_space<vmem>>, vector<2x32xf32>
    tpu.vector_store %arg4[%c2_52, %c0_53], %216 {strides = array<i32>} : memref<16x32xf32, #tpu.memory_space<vmem>>, vector<2x32xf32>,
    %218 = vector.extract_strided_slice %177 {offsets = [4, 0], sizes = [2, 128], strides = [1, 1]} : vector<16x128xf32> to vector<2x128xf32>
    %cst_54 = arith.constant dense<0.000000e+00> : vector<2x128xf32>
    %219 = tpu.matmul %216, %172, %cst_54 {dimension_numbers = #tpu.dot_dimension_numbers<[1], [0], [0], [1], [0, 0, 1, 1], [], []>} : vector<2x32xf32>, vector<32x128xf32>, vector<2x128xf32> -> vector<2x128xf32>
    %220 = arith.addf %218, %219 : vector<2x128xf32>
    %221 = arith.negf %220 : vector<2x128xf32>
    %222 = math.exp %221 : vector<2x128xf32>
    %cst_55 = arith.constant 1.000000e+00 : f32
    %223 = vector.broadcast %cst_55 : f32 to vector<2x128xf32>
    %224 = arith.addf %223, %222 : vector<2x128xf32>
    %225 = arith.divf %223, %224 : vector<2x128xf32>
    %226 = math.tanh %220 : vector<2x128xf32>
    %227 = vector.extract_strided_slice %225 {offsets = [0, 32], sizes = [2, 32], strides = [1, 1]} : vector<2x128xf32> to vector<2x32xf32>
    %228 = arith.mulf %227, %213 : vector<2x32xf32>
    %229 = vector.extract_strided_slice %225 {offsets = [0, 0], sizes = [2, 32], strides = [1, 1]} : vector<2x128xf32> to vector<2x32xf32>
    %230 = vector.extract_strided_slice %226 {offsets = [0, 64], sizes = [2, 32], strides = [1, 1]} : vector<2x128xf32> to vector<2x32xf32>
    %231 = arith.mulf %229, %230 : vector<2x32xf32>
    %232 = arith.addf %228, %231 : vector<2x32xf32>
    %233 = vector.extract_strided_slice %225 {offsets = [0, 96], sizes = [2, 32], strides = [1, 1]} : vector<2x128xf32> to vector<2x32xf32>
    %234 = math.tanh %232 : vector<2x32xf32>
    %235 = arith.mulf %233, %234 : vector<2x32xf32>
    %c4_56 = arith.constant 4 : index
    %c0_57 = arith.constant 0 : index
    %236 = vector.load %arg4[%c4_56, %c0_57] : memref<16x32xf32, #tpu.memory_space<vmem>>, vector<2x32xf32>
    tpu.vector_store %arg4[%c4_56, %c0_57], %235 {strides = array<i32>} : memref<16x32xf32, #tpu.memory_space<vmem>>, vector<2x32xf32>,
    %237 = vector.extract_strided_slice %177 {offsets = [6, 0], sizes = [2, 128], strides = [1, 1]} : vector<16x128xf32> to vector<2x128xf32>
    %cst_58 = arith.constant dense<0.000000e+00> : vector<2x128xf32>
    %238 = tpu.matmul %235, %172, %cst_58 {dimension_numbers = #tpu.dot_dimension_numbers<[1], [0], [0], [1], [0, 0, 1, 1], [], []>} : vector<2x32xf32>, vector<32x128xf32>, vector<2x128xf32> -> vector<2x128xf32>
    %239 = arith.addf %237, %238 : vector<2x128xf32>
    %240 = arith.negf %239 : vector<2x128xf32>
    %241 = math.exp %240 : vector<2x128xf32>
    %cst_59 = arith.constant 1.000000e+00 : f32
    %242 = vector.broadcast %cst_59 : f32 to vector<2x128xf32>
    %243 = arith.addf %242, %241 : vector<2x128xf32>
    %244 = arith.divf %242, %243 : vector<2x128xf32>
    %245 = math.tanh %239 : vector<2x128xf32>
    %246 = vector.extract_strided_slice %244 {offsets = [0, 32], sizes = [2, 32], strides = [1, 1]} : vector<2x128xf32> to vector<2x32xf32>
    %247 = arith.mulf %246, %232 : vector<2x32xf32>
    %248 = vector.extract_strided_slice %244 {offsets = [0, 0], sizes = [2, 32], strides = [1, 1]} : vector<2x128xf32> to vector<2x32xf32>
    %249 = vector.extract_strided_slice %245 {offsets = [0, 64], sizes = [2, 32], strides = [1, 1]} : vector<2x128xf32> to vector<2x32xf32>
    %250 = arith.mulf %248, %249 : vector<2x32xf32>
    %251 = arith.addf %247, %250 : vector<2x32xf32>
    %252 = vector.extract_strided_slice %244 {offsets = [0, 96], sizes = [2, 32], strides = [1, 1]} : vector<2x128xf32> to vector<2x32xf32>
    %253 = math.tanh %251 : vector<2x32xf32>
    %254 = arith.mulf %252, %253 : vector<2x32xf32>
    %c6_60 = arith.constant 6 : index
    %c0_61 = arith.constant 0 : index
    %255 = vector.load %arg4[%c6_60, %c0_61] : memref<16x32xf32, #tpu.memory_space<vmem>>, vector<2x32xf32>
    tpu.vector_store %arg4[%c6_60, %c0_61], %254 {strides = array<i32>} : memref<16x32xf32, #tpu.memory_space<vmem>>, vector<2x32xf32>,
    %256 = vector.extract_strided_slice %177 {offsets = [8, 0], sizes = [2, 128], strides = [1, 1]} : vector<16x128xf32> to vector<2x128xf32>
    %cst_62 = arith.constant dense<0.000000e+00> : vector<2x128xf32>
    %257 = tpu.matmul %254, %172, %cst_62 {dimension_numbers = #tpu.dot_dimension_numbers<[1], [0], [0], [1], [0, 0, 1, 1], [], []>} : vector<2x32xf32>, vector<32x128xf32>, vector<2x128xf32> -> vector<2x128xf32>
    %258 = arith.addf %256, %257 : vector<2x128xf32>
    %259 = arith.negf %258 : vector<2x128xf32>
    %260 = math.exp %259 : vector<2x128xf32>
    %cst_63 = arith.constant 1.000000e+00 : f32
    %261 = vector.broadcast %cst_63 : f32 to vector<2x128xf32>
    %262 = arith.addf %261, %260 : vector<2x128xf32>
    %263 = arith.divf %261, %262 : vector<2x128xf32>
    %264 = math.tanh %258 : vector<2x128xf32>
    %265 = vector.extract_strided_slice %263 {offsets = [0, 32], sizes = [2, 32], strides = [1, 1]} : vector<2x128xf32> to vector<2x32xf32>
    %266 = arith.mulf %265, %251 : vector<2x32xf32>
    %267 = vector.extract_strided_slice %263 {offsets = [0, 0], sizes = [2, 32], strides = [1, 1]} : vector<2x128xf32> to vector<2x32xf32>
    %268 = vector.extract_strided_slice %264 {offsets = [0, 64], sizes = [2, 32], strides = [1, 1]} : vector<2x128xf32> to vector<2x32xf32>
    %269 = arith.mulf %267, %268 : vector<2x32xf32>
    %270 = arith.addf %266, %269 : vector<2x32xf32>
    %271 = vector.extract_strided_slice %263 {offsets = [0, 96], sizes = [2, 32], strides = [1, 1]} : vector<2x128xf32> to vector<2x32xf32>
    %272 = math.tanh %270 : vector<2x32xf32>
    %273 = arith.mulf %271, %272 : vector<2x32xf32>
    %c8_64 = arith.constant 8 : index
    %c0_65 = arith.constant 0 : index
    %274 = vector.load %arg4[%c8_64, %c0_65] : memref<16x32xf32, #tpu.memory_space<vmem>>, vector<2x32xf32>
    tpu.vector_store %arg4[%c8_64, %c0_65], %273 {strides = array<i32>} : memref<16x32xf32, #tpu.memory_space<vmem>>, vector<2x32xf32>,
    %275 = vector.extract_strided_slice %177 {offsets = [10, 0], sizes = [2, 128], strides = [1, 1]} : vector<16x128xf32> to vector<2x128xf32>
    %cst_66 = arith.constant dense<0.000000e+00> : vector<2x128xf32>
    %276 = tpu.matmul %273, %172, %cst_66 {dimension_numbers = #tpu.dot_dimension_numbers<[1], [0], [0], [1], [0, 0, 1, 1], [], []>} : vector<2x32xf32>, vector<32x128xf32>, vector<2x128xf32> -> vector<2x128xf32>
    %277 = arith.addf %275, %276 : vector<2x128xf32>
    %278 = arith.negf %277 : vector<2x128xf32>
    %279 = math.exp %278 : vector<2x128xf32>
    %cst_67 = arith.constant 1.000000e+00 : f32
    %280 = vector.broadcast %cst_67 : f32 to vector<2x128xf32>
    %281 = arith.addf %280, %279 : vector<2x128xf32>
    %282 = arith.divf %280, %281 : vector<2x128xf32>
    %283 = math.tanh %277 : vector<2x128xf32>
    %284 = vector.extract_strided_slice %282 {offsets = [0, 32], sizes = [2, 32], strides = [1, 1]} : vector<2x128xf32> to vector<2x32xf32>
    %285 = arith.mulf %284, %270 : vector<2x32xf32>
    %286 = vector.extract_strided_slice %282 {offsets = [0, 0], sizes = [2, 32], strides = [1, 1]} : vector<2x128xf32> to vector<2x32xf32>
    %287 = vector.extract_strided_slice %283 {offsets = [0, 64], sizes = [2, 32], strides = [1, 1]} : vector<2x128xf32> to vector<2x32xf32>
    %288 = arith.mulf %286, %287 : vector<2x32xf32>
    %289 = arith.addf %285, %288 : vector<2x32xf32>
    %290 = vector.extract_strided_slice %282 {offsets = [0, 96], sizes = [2, 32], strides = [1, 1]} : vector<2x128xf32> to vector<2x32xf32>
    %291 = math.tanh %289 : vector<2x32xf32>
    %292 = arith.mulf %290, %291 : vector<2x32xf32>
    %c10_68 = arith.constant 10 : index
    %c0_69 = arith.constant 0 : index
    %293 = vector.load %arg4[%c10_68, %c0_69] : memref<16x32xf32, #tpu.memory_space<vmem>>, vector<2x32xf32>
    tpu.vector_store %arg4[%c10_68, %c0_69], %292 {strides = array<i32>} : memref<16x32xf32, #tpu.memory_space<vmem>>, vector<2x32xf32>,
    %294 = vector.extract_strided_slice %177 {offsets = [12, 0], sizes = [2, 128], strides = [1, 1]} : vector<16x128xf32> to vector<2x128xf32>
    %cst_70 = arith.constant dense<0.000000e+00> : vector<2x128xf32>
    %295 = tpu.matmul %292, %172, %cst_70 {dimension_numbers = #tpu.dot_dimension_numbers<[1], [0], [0], [1], [0, 0, 1, 1], [], []>} : vector<2x32xf32>, vector<32x128xf32>, vector<2x128xf32> -> vector<2x128xf32>
    %296 = arith.addf %294, %295 : vector<2x128xf32>
    %297 = arith.negf %296 : vector<2x128xf32>
    %298 = math.exp %297 : vector<2x128xf32>
    %cst_71 = arith.constant 1.000000e+00 : f32
    %299 = vector.broadcast %cst_71 : f32 to vector<2x128xf32>
    %300 = arith.addf %299, %298 : vector<2x128xf32>
    %301 = arith.divf %299, %300 : vector<2x128xf32>
    %302 = math.tanh %296 : vector<2x128xf32>
    %303 = vector.extract_strided_slice %301 {offsets = [0, 32], sizes = [2, 32], strides = [1, 1]} : vector<2x128xf32> to vector<2x32xf32>
    %304 = arith.mulf %303, %289 : vector<2x32xf32>
    %305 = vector.extract_strided_slice %301 {offsets = [0, 0], sizes = [2, 32], strides = [1, 1]} : vector<2x128xf32> to vector<2x32xf32>
    %306 = vector.extract_strided_slice %302 {offsets = [0, 64], sizes = [2, 32], strides = [1, 1]} : vector<2x128xf32> to vector<2x32xf32>
    %307 = arith.mulf %305, %306 : vector<2x32xf32>
    %308 = arith.addf %304, %307 : vector<2x32xf32>
    %309 = vector.extract_strided_slice %301 {offsets = [0, 96], sizes = [2, 32], strides = [1, 1]} : vector<2x128xf32> to vector<2x32xf32>
    %310 = math.tanh %308 : vector<2x32xf32>
    %311 = arith.mulf %309, %310 : vector<2x32xf32>
    %c12_72 = arith.constant 12 : index
    %c0_73 = arith.constant 0 : index
    %312 = vector.load %arg4[%c12_72, %c0_73] : memref<16x32xf32, #tpu.memory_space<vmem>>, vector<2x32xf32>
    tpu.vector_store %arg4[%c12_72, %c0_73], %311 {strides = array<i32>} : memref<16x32xf32, #tpu.memory_space<vmem>>, vector<2x32xf32>,
    %313 = vector.extract_strided_slice %177 {offsets = [14, 0], sizes = [2, 128], strides = [1, 1]} : vector<16x128xf32> to vector<2x128xf32>
    %cst_74 = arith.constant dense<0.000000e+00> : vector<2x128xf32>
    %314 = tpu.matmul %311, %172, %cst_74 {dimension_numbers = #tpu.dot_dimension_numbers<[1], [0], [0], [1], [0, 0, 1, 1], [], []>} : vector<2x32xf32>, vector<32x128xf32>, vector<2x128xf32> -> vector<2x128xf32>
    %315 = arith.addf %313, %314 : vector<2x128xf32>
    %316 = arith.negf %315 : vector<2x128xf32>
    %317 = math.exp %316 : vector<2x128xf32>
    %cst_75 = arith.constant 1.000000e+00 : f32
    %318 = vector.broadcast %cst_75 : f32 to vector<2x128xf32>
    %319 = arith.addf %318, %317 : vector<2x128xf32>
    %320 = arith.divf %318, %319 : vector<2x128xf32>
    %321 = math.tanh %315 : vector<2x128xf32>
    %322 = vector.extract_strided_slice %320 {offsets = [0, 32], sizes = [2, 32], strides = [1, 1]} : vector<2x128xf32> to vector<2x32xf32>
    %323 = arith.mulf %322, %308 : vector<2x32xf32>
    %324 = vector.extract_strided_slice %320 {offsets = [0, 0], sizes = [2, 32], strides = [1, 1]} : vector<2x128xf32> to vector<2x32xf32>
    %325 = vector.extract_strided_slice %321 {offsets = [0, 64], sizes = [2, 32], strides = [1, 1]} : vector<2x128xf32> to vector<2x32xf32>
    %326 = arith.mulf %324, %325 : vector<2x32xf32>
    %327 = arith.addf %323, %326 : vector<2x32xf32>
    %328 = vector.extract_strided_slice %320 {offsets = [0, 96], sizes = [2, 32], strides = [1, 1]} : vector<2x128xf32> to vector<2x32xf32>
    %329 = math.tanh %327 : vector<2x32xf32>
    %330 = arith.mulf %328, %329 : vector<2x32xf32>
    %c14_76 = arith.constant 14 : index
    %c0_77 = arith.constant 0 : index
    %331 = vector.load %arg4[%c14_76, %c0_77] : memref<16x32xf32, #tpu.memory_space<vmem>>, vector<2x32xf32>
    tpu.vector_store %arg4[%c14_76, %c0_77], %330 {strides = array<i32>} : memref<16x32xf32, #tpu.memory_space<vmem>>, vector<2x32xf32>,
    %c0_78 = arith.constant 0 : index
    %c0_79 = arith.constant 0 : index
    %332 = vector.load %arg4[%c0_78, %c0_79] : memref<16x32xf32, #tpu.memory_space<vmem>>, vector<16x32xf32>
    %c480 = arith.constant 480 : index
    %c0_80 = arith.constant 0 : index
    %333 = vector.load %arg1[%c480, %c0_80] : memref<520x128xf32, #tpu.memory_space<vmem>>, vector<32x2xf32>
    %c512 = arith.constant 512 : index
    %c0_81 = arith.constant 0 : index
    %334 = vector.load %arg1[%c512, %c0_81] : memref<520x128xf32, #tpu.memory_space<vmem>>, vector<2x32xf32>
    %c128 = arith.constant 128 : index
    %c0_82 = arith.constant 0 : index
    %335 = vector.load %arg1[%c128, %c0_82] : memref<520x128xf32, #tpu.memory_space<vmem>>, vector<32x96xf32>
    %cst_83 = arith.constant dense<0.000000e+00> : vector<16x96xf32>
    %336 = tpu.matmul %332, %335, %cst_83 {dimension_numbers = #tpu.dot_dimension_numbers<[1], [0], [0], [1], [0, 0, 1, 1], [], []>} : vector<16x32xf32>, vector<32x96xf32>, vector<16x96xf32> -> vector<16x96xf32>
    %c2_84 = arith.constant 2 : index
    %c0_85 = arith.constant 0 : index
    %337 = vector.load %arg2[%c2_84, %c0_85] : memref<19x128xf32, #tpu.memory_space<vmem>>, vector<1x96xf32>
    %338 = vector.broadcast %337 : vector<1x96xf32> to vector<16x96xf32>
    %339 = arith.addf %336, %338 : vector<16x96xf32>
    %340 = vector.extract_strided_slice %339 {offsets = [0, 0], sizes = [16, 32], strides = [1, 1]} : vector<16x96xf32> to vector<16x32xf32>
    %341 = vector.shape_cast %340 : vector<16x32xf32> to vector<8x2x32xf32>
    %342 = vector.extract_strided_slice %339 {offsets = [0, 32], sizes = [16, 32], strides = [1, 1]} : vector<16x96xf32> to vector<16x32xf32>
    %343 = vector.shape_cast %342 : vector<16x32xf32> to vector<8x2x32xf32>
    %344 = vector.extract_strided_slice %339 {offsets = [0, 64], sizes = [16, 32], strides = [1, 1]} : vector<16x96xf32> to vector<16x32xf32>
    %345 = vector.shape_cast %344 : vector<16x32xf32> to vector<8x2x32xf32>
    %346 = vector.extract_strided_slice %343 {offsets = [0, 0, 0], sizes = [8, 1, 32], strides = [1, 1, 1]} : vector<8x2x32xf32> to vector<8x1x32xf32>
    %347 = vector.broadcast %346 : vector<8x1x32xf32> to vector<8x2x32xf32>
    %348 = arith.mulf %341, %347 : vector<8x2x32xf32>
    %349 = vector.shape_cast %348 : vector<8x2x32xf32> to vector<16x32xf32>
    %cst_86 = arith.constant dense<0.000000e+00> : vector<16x2xf32>
    %350 = tpu.matmul %349, %333, %cst_86 {dimension_numbers = #tpu.dot_dimension_numbers<[1], [0], [0], [1], [0, 0, 1, 1], [], []>} : vector<16x32xf32>, vector<32x2xf32>, vector<16x2xf32> -> vector<16x2xf32>
    %351 = vector.extract_strided_slice %343 {offsets = [0, 1, 0], sizes = [8, 1, 32], strides = [1, 1, 1]} : vector<8x2x32xf32> to vector<8x1x32xf32>
    %352 = vector.broadcast %351 : vector<8x1x32xf32> to vector<8x2x32xf32>
    %353 = arith.mulf %341, %352 : vector<8x2x32xf32>
    %354 = vector.shape_cast %353 : vector<8x2x32xf32> to vector<16x32xf32>
    %cst_87 = arith.constant dense<0.000000e+00> : vector<16x2xf32>
    %355 = tpu.matmul %354, %333, %cst_87 {dimension_numbers = #tpu.dot_dimension_numbers<[1], [0], [0], [1], [0, 0, 1, 1], [], []>} : vector<16x32xf32>, vector<32x2xf32>, vector<16x2xf32> -> vector<16x2xf32>
    %356 = arith.maximumf %350, %355 : vector<16x2xf32>
    %357 = arith.subf %350, %356 : vector<16x2xf32>
    %358 = math.exp %357 : vector<16x2xf32>
    %359 = arith.subf %355, %356 : vector<16x2xf32>
    %360 = math.exp %359 : vector<16x2xf32>
    %361 = arith.addf %358, %360 : vector<16x2xf32>
    %362 = tpu.reciprocal %361 {approx = true} : vector<16x2xf32> -> vector<16x2xf32>
    %363 = arith.mulf %358, %362 : vector<16x2xf32>
    %cst_88 = arith.constant dense<0.000000e+00> : vector<16x32xf32>
    %364 = tpu.matmul %363, %334, %cst_88 {dimension_numbers = #tpu.dot_dimension_numbers<[1], [0], [0], [1], [0, 0, 1, 1], [], []>} : vector<16x2xf32>, vector<2x32xf32>, vector<16x32xf32> -> vector<16x32xf32>
    %365 = vector.shape_cast %364 : vector<16x32xf32> to vector<8x2x32xf32>
    %366 = vector.extract_strided_slice %345 {offsets = [0, 0, 0], sizes = [8, 1, 32], strides = [1, 1, 1]} : vector<8x2x32xf32> to vector<8x1x32xf32>
    %367 = vector.broadcast %366 : vector<8x1x32xf32> to vector<8x2x32xf32>
    %368 = arith.mulf %365, %367 : vector<8x2x32xf32>
    %369 = arith.mulf %360, %362 : vector<16x2xf32>
    %cst_89 = arith.constant dense<0.000000e+00> : vector<16x32xf32>
    %370 = tpu.matmul %369, %334, %cst_89 {dimension_numbers = #tpu.dot_dimension_numbers<[1], [0], [0], [1], [0, 0, 1, 1], [], []>} : vector<16x2xf32>, vector<2x32xf32>, vector<16x32xf32> -> vector<16x32xf32>
    %371 = vector.shape_cast %370 : vector<16x32xf32> to vector<8x2x32xf32>
    %372 = vector.extract_strided_slice %345 {offsets = [0, 1, 0], sizes = [8, 1, 32], strides = [1, 1, 1]} : vector<8x2x32xf32> to vector<8x1x32xf32>
    %373 = vector.broadcast %372 : vector<8x1x32xf32> to vector<8x2x32xf32>
    %374 = arith.mulf %371, %373 : vector<8x2x32xf32>
    %375 = arith.addf %368, %374 : vector<8x2x32xf32>
    %376 = vector.shape_cast %375 : vector<8x2x32xf32> to vector<16x32xf32>
    %c160 = arith.constant 160 : index
    %c0_90 = arith.constant 0 : index
    %377 = vector.load %arg1[%c160, %c0_90] : memref<520x128xf32, #tpu.memory_space<vmem>>, vector<32x32xf32>
    %cst_91 = arith.constant dense<0.000000e+00> : vector<16x32xf32>
    %378 = tpu.matmul %376, %377, %cst_91 {dimension_numbers = #tpu.dot_dimension_numbers<[1], [0], [0], [1], [0, 0, 1, 1], [], []>} : vector<16x32xf32>, vector<32x32xf32>, vector<16x32xf32> -> vector<16x32xf32>
    %c3 = arith.constant 3 : index
    %c0_92 = arith.constant 0 : index
    %379 = vector.load %arg2[%c3, %c0_92] : memref<19x128xf32, #tpu.memory_space<vmem>>, vector<1x32xf32>
    %380 = vector.broadcast %379 : vector<1x32xf32> to vector<16x32xf32>
    %381 = arith.addf %378, %380 : vector<16x32xf32>
    %382 = arith.addf %332, %381 : vector<16x32xf32>
    %c6_93 = arith.constant 6 : index
    %c0_94 = arith.constant 0 : index
    %383 = vector.load %arg2[%c6_93, %c0_94] : memref<19x128xf32, #tpu.memory_space<vmem>>, vector<1x32xf32>
    %c7 = arith.constant 7 : index
    %c0_95 = arith.constant 0 : index
    %384 = vector.load %arg2[%c7, %c0_95] : memref<19x128xf32, #tpu.memory_space<vmem>>, vector<1x32xf32>
    %cst_96 = arith.constant dense<0.000000e+00> : vector<16xf32>
    %385 = vector.multi_reduction <add>, %382, %cst_96 [1] : vector<16x32xf32> to vector<16xf32>
    %386 = vector.shape_cast %385 : vector<16xf32> to vector<16x1xf32>
    %cst_97 = arith.constant 3.200000e+01 : f32
    %387 = vector.broadcast %cst_97 : f32 to vector<16x1xf32>
    %388 = arith.divf %386, %387 : vector<16x1xf32>
    %389 = arith.mulf %382, %382 : vector<16x32xf32>
    %cst_98 = arith.constant dense<0.000000e+00> : vector<16xf32>
    %390 = vector.multi_reduction <add>, %389, %cst_98 [1] : vector<16x32xf32> to vector<16xf32>
    %391 = vector.shape_cast %390 : vector<16xf32> to vector<16x1xf32>
    %cst_99 = arith.constant 3.200000e+01 : f32
    %392 = vector.broadcast %cst_99 : f32 to vector<16x1xf32>
    %393 = arith.divf %391, %392 : vector<16x1xf32>
    %394 = arith.mulf %388, %388 : vector<16x1xf32>
    %395 = arith.subf %393, %394 : vector<16x1xf32>
    %396 = vector.broadcast %388 : vector<16x1xf32> to vector<16x32xf32>
    %397 = arith.subf %382, %396 : vector<16x32xf32>
    %cst_100 = arith.constant 9.99999974E-6 : f32
    %398 = vector.broadcast %cst_100 : f32 to vector<16x1xf32>
    %399 = arith.addf %395, %398 : vector<16x1xf32>
    %400 = math.rsqrt %399 : vector<16x1xf32>
    %401 = vector.broadcast %400 : vector<16x1xf32> to vector<16x32xf32>
    %402 = arith.mulf %397, %401 : vector<16x32xf32>
    %403 = vector.broadcast %383 : vector<1x32xf32> to vector<16x32xf32>
    %404 = arith.mulf %402, %403 : vector<16x32xf32>
    %405 = vector.broadcast %384 : vector<1x32xf32> to vector<16x32xf32>
    %406 = arith.addf %404, %405 : vector<16x32xf32>
    %c192 = arith.constant 192 : index
    %c0_101 = arith.constant 0 : index
    %407 = vector.load %arg1[%c192, %c0_101] : memref<520x128xf32, #tpu.memory_space<vmem>>, vector<32x64xf32>
    %cst_102 = arith.constant dense<0.000000e+00> : vector<16x64xf32>
    %408 = tpu.matmul %406, %407, %cst_102 {dimension_numbers = #tpu.dot_dimension_numbers<[1], [0], [0], [1], [0, 0, 1, 1], [], []>} : vector<16x32xf32>, vector<32x64xf32>, vector<16x64xf32> -> vector<16x64xf32>
    %c4_103 = arith.constant 4 : index
    %c0_104 = arith.constant 0 : index
    %409 = vector.load %arg2[%c4_103, %c0_104] : memref<19x128xf32, #tpu.memory_space<vmem>>, vector<1x64xf32>
    %410 = vector.broadcast %409 : vector<1x64xf32> to vector<16x64xf32>
    %411 = arith.addf %408, %410 : vector<16x64xf32>
    %cst_105 = arith.constant 0.000000e+00 : f32
    %412 = vector.broadcast %cst_105 : f32 to vector<16x64xf32>
    %413 = arith.maximumf %411, %412 : vector<16x64xf32>
    %c224 = arith.constant 224 : index
    %c0_106 = arith.constant 0 : index
    %414 = vector.load %arg1[%c224, %c0_106] : memref<520x128xf32, #tpu.memory_space<vmem>>, vector<64x32xf32>
    %cst_107 = arith.constant dense<0.000000e+00> : vector<16x32xf32>
    %415 = tpu.matmul %413, %414, %cst_107 {dimension_numbers = #tpu.dot_dimension_numbers<[1], [0], [0], [1], [0, 0, 1, 1], [], []>} : vector<16x64xf32>, vector<64x32xf32>, vector<16x32xf32> -> vector<16x32xf32>
    %c5 = arith.constant 5 : index
    %c0_108 = arith.constant 0 : index
    %416 = vector.load %arg2[%c5, %c0_108] : memref<19x128xf32, #tpu.memory_space<vmem>>, vector<1x32xf32>
    %417 = vector.broadcast %416 : vector<1x32xf32> to vector<16x32xf32>
    %418 = arith.addf %415, %417 : vector<16x32xf32>
    %419 = arith.addf %406, %418 : vector<16x32xf32>
    %c8_109 = arith.constant 8 : index
    %c0_110 = arith.constant 0 : index
    %420 = vector.load %arg2[%c8_109, %c0_110] : memref<19x128xf32, #tpu.memory_space<vmem>>, vector<1x32xf32>
    %c9 = arith.constant 9 : index
    %c0_111 = arith.constant 0 : index
    %421 = vector.load %arg2[%c9, %c0_111] : memref<19x128xf32, #tpu.memory_space<vmem>>, vector<1x32xf32>
    %cst_112 = arith.constant dense<0.000000e+00> : vector<16xf32>
    %422 = vector.multi_reduction <add>, %419, %cst_112 [1] : vector<16x32xf32> to vector<16xf32>
    %423 = vector.shape_cast %422 : vector<16xf32> to vector<16x1xf32>
    %cst_113 = arith.constant 3.200000e+01 : f32
    %424 = vector.broadcast %cst_113 : f32 to vector<16x1xf32>
    %425 = arith.divf %423, %424 : vector<16x1xf32>
    %426 = arith.mulf %419, %419 : vector<16x32xf32>
    %cst_114 = arith.constant dense<0.000000e+00> : vector<16xf32>
    %427 = vector.multi_reduction <add>, %426, %cst_114 [1] : vector<16x32xf32> to vector<16xf32>
    %428 = vector.shape_cast %427 : vector<16xf32> to vector<16x1xf32>
    %cst_115 = arith.constant 3.200000e+01 : f32
    %429 = vector.broadcast %cst_115 : f32 to vector<16x1xf32>
    %430 = arith.divf %428, %429 : vector<16x1xf32>
    %431 = arith.mulf %425, %425 : vector<16x1xf32>
    %432 = arith.subf %430, %431 : vector<16x1xf32>
    %433 = vector.broadcast %425 : vector<16x1xf32> to vector<16x32xf32>
    %434 = arith.subf %419, %433 : vector<16x32xf32>
    %cst_116 = arith.constant 9.99999974E-6 : f32
    %435 = vector.broadcast %cst_116 : f32 to vector<16x1xf32>
    %436 = arith.addf %432, %435 : vector<16x1xf32>
    %437 = math.rsqrt %436 : vector<16x1xf32>
    %438 = vector.broadcast %437 : vector<16x1xf32> to vector<16x32xf32>
    %439 = arith.mulf %434, %438 : vector<16x32xf32>
    %440 = vector.broadcast %420 : vector<1x32xf32> to vector<16x32xf32>
    %441 = arith.mulf %439, %440 : vector<16x32xf32>
    %442 = vector.broadcast %421 : vector<1x32xf32> to vector<16x32xf32>
    %443 = arith.addf %441, %442 : vector<16x32xf32>
    %c288 = arith.constant 288 : index
    %c0_117 = arith.constant 0 : index
    %444 = vector.load %arg1[%c288, %c0_117] : memref<520x128xf32, #tpu.memory_space<vmem>>, vector<32x96xf32>
    %cst_118 = arith.constant dense<0.000000e+00> : vector<16x96xf32>
    %445 = tpu.matmul %443, %444, %cst_118 {dimension_numbers = #tpu.dot_dimension_numbers<[1], [0], [0], [1], [0, 0, 1, 1], [], []>} : vector<16x32xf32>, vector<32x96xf32>, vector<16x96xf32> -> vector<16x96xf32>
    %c10_119 = arith.constant 10 : index
    %c0_120 = arith.constant 0 : index
    %446 = vector.load %arg2[%c10_119, %c0_120] : memref<19x128xf32, #tpu.memory_space<vmem>>, vector<1x96xf32>
    %447 = vector.broadcast %446 : vector<1x96xf32> to vector<16x96xf32>
    %448 = arith.addf %445, %447 : vector<16x96xf32>
    %449 = vector.extract_strided_slice %448 {offsets = [0, 0], sizes = [16, 32], strides = [1, 1]} : vector<16x96xf32> to vector<16x32xf32>
    %450 = vector.shape_cast %449 : vector<16x32xf32> to vector<8x2x32xf32>
    %451 = vector.extract_strided_slice %448 {offsets = [0, 32], sizes = [16, 32], strides = [1, 1]} : vector<16x96xf32> to vector<16x32xf32>
    %452 = vector.shape_cast %451 : vector<16x32xf32> to vector<8x2x32xf32>
    %453 = vector.extract_strided_slice %448 {offsets = [0, 64], sizes = [16, 32], strides = [1, 1]} : vector<16x96xf32> to vector<16x32xf32>
    %454 = vector.shape_cast %453 : vector<16x32xf32> to vector<8x2x32xf32>
    %455 = vector.extract_strided_slice %452 {offsets = [0, 0, 0], sizes = [8, 1, 32], strides = [1, 1, 1]} : vector<8x2x32xf32> to vector<8x1x32xf32>
    %456 = vector.broadcast %455 : vector<8x1x32xf32> to vector<8x2x32xf32>
    %457 = arith.mulf %450, %456 : vector<8x2x32xf32>
    %458 = vector.shape_cast %457 : vector<8x2x32xf32> to vector<16x32xf32>
    %cst_121 = arith.constant dense<0.000000e+00> : vector<16x2xf32>
    %459 = tpu.matmul %458, %333, %cst_121 {dimension_numbers = #tpu.dot_dimension_numbers<[1], [0], [0], [1], [0, 0, 1, 1], [], []>} : vector<16x32xf32>, vector<32x2xf32>, vector<16x2xf32> -> vector<16x2xf32>
    %460 = vector.extract_strided_slice %452 {offsets = [0, 1, 0], sizes = [8, 1, 32], strides = [1, 1, 1]} : vector<8x2x32xf32> to vector<8x1x32xf32>
    %461 = vector.broadcast %460 : vector<8x1x32xf32> to vector<8x2x32xf32>
    %462 = arith.mulf %450, %461 : vector<8x2x32xf32>
    %463 = vector.shape_cast %462 : vector<8x2x32xf32> to vector<16x32xf32>
    %cst_122 = arith.constant dense<0.000000e+00> : vector<16x2xf32>
    %464 = tpu.matmul %463, %333, %cst_122 {dimension_numbers = #tpu.dot_dimension_numbers<[1], [0], [0], [1], [0, 0, 1, 1], [], []>} : vector<16x32xf32>, vector<32x2xf32>, vector<16x2xf32> -> vector<16x2xf32>
    %465 = arith.maximumf %459, %464 : vector<16x2xf32>
    %466 = arith.subf %459, %465 : vector<16x2xf32>
    %467 = math.exp %466 : vector<16x2xf32>
    %468 = arith.subf %464, %465 : vector<16x2xf32>
    %469 = math.exp %468 : vector<16x2xf32>
    %470 = arith.addf %467, %469 : vector<16x2xf32>
    %471 = tpu.reciprocal %470 {approx = true} : vector<16x2xf32> -> vector<16x2xf32>
    %472 = arith.mulf %467, %471 : vector<16x2xf32>
    %cst_123 = arith.constant dense<0.000000e+00> : vector<16x32xf32>
    %473 = tpu.matmul %472, %334, %cst_123 {dimension_numbers = #tpu.dot_dimension_numbers<[1], [0], [0], [1], [0, 0, 1, 1], [], []>} : vector<16x2xf32>, vector<2x32xf32>, vector<16x32xf32> -> vector<16x32xf32>
    %474 = vector.shape_cast %473 : vector<16x32xf32> to vector<8x2x32xf32>
    %475 = vector.extract_strided_slice %454 {offsets = [0, 0, 0], sizes = [8, 1, 32], strides = [1, 1, 1]} : vector<8x2x32xf32> to vector<8x1x32xf32>
    %476 = vector.broadcast %475 : vector<8x1x32xf32> to vector<8x2x32xf32>
    %477 = arith.mulf %474, %476 : vector<8x2x32xf32>
    %478 = arith.mulf %469, %471 : vector<16x2xf32>
    %cst_124 = arith.constant dense<0.000000e+00> : vector<16x32xf32>
    %479 = tpu.matmul %478, %334, %cst_124 {dimension_numbers = #tpu.dot_dimension_numbers<[1], [0], [0], [1], [0, 0, 1, 1], [], []>} : vector<16x2xf32>, vector<2x32xf32>, vector<16x32xf32> -> vector<16x32xf32>
    %480 = vector.shape_cast %479 : vector<16x32xf32> to vector<8x2x32xf32>
    %481 = vector.extract_strided_slice %454 {offsets = [0, 1, 0], sizes = [8, 1, 32], strides = [1, 1, 1]} : vector<8x2x32xf32> to vector<8x1x32xf32>
    %482 = vector.broadcast %481 : vector<8x1x32xf32> to vector<8x2x32xf32>
    %483 = arith.mulf %480, %482 : vector<8x2x32xf32>
    %484 = arith.addf %477, %483 : vector<8x2x32xf32>
    %485 = vector.shape_cast %484 : vector<8x2x32xf32> to vector<16x32xf32>
    %c320 = arith.constant 320 : index
    %c0_125 = arith.constant 0 : index
    %486 = vector.load %arg1[%c320, %c0_125] : memref<520x128xf32, #tpu.memory_space<vmem>>, vector<32x32xf32>
    %cst_126 = arith.constant dense<0.000000e+00> : vector<16x32xf32>
    %487 = tpu.matmul %485, %486, %cst_126 {dimension_numbers = #tpu.dot_dimension_numbers<[1], [0], [0], [1], [0, 0, 1, 1], [], []>} : vector<16x32xf32>, vector<32x32xf32>, vector<16x32xf32> -> vector<16x32xf32>
    %c11 = arith.constant 11 : index
    %c0_127 = arith.constant 0 : index
    %488 = vector.load %arg2[%c11, %c0_127] : memref<19x128xf32, #tpu.memory_space<vmem>>, vector<1x32xf32>
    %489 = vector.broadcast %488 : vector<1x32xf32> to vector<16x32xf32>
    %490 = arith.addf %487, %489 : vector<16x32xf32>
    %491 = arith.addf %443, %490 : vector<16x32xf32>
    %c14_128 = arith.constant 14 : index
    %c0_129 = arith.constant 0 : index
    %492 = vector.load %arg2[%c14_128, %c0_129] : memref<19x128xf32, #tpu.memory_space<vmem>>, vector<1x32xf32>
    %c15 = arith.constant 15 : index
    %c0_130 = arith.constant 0 : index
    %493 = vector.load %arg2[%c15, %c0_130] : memref<19x128xf32, #tpu.memory_space<vmem>>, vector<1x32xf32>
    %cst_131 = arith.constant dense<0.000000e+00> : vector<16xf32>
    %494 = vector.multi_reduction <add>, %491, %cst_131 [1] : vector<16x32xf32> to vector<16xf32>
    %495 = vector.shape_cast %494 : vector<16xf32> to vector<16x1xf32>
    %cst_132 = arith.constant 3.200000e+01 : f32
    %496 = vector.broadcast %cst_132 : f32 to vector<16x1xf32>
    %497 = arith.divf %495, %496 : vector<16x1xf32>
    %498 = arith.mulf %491, %491 : vector<16x32xf32>
    %cst_133 = arith.constant dense<0.000000e+00> : vector<16xf32>
    %499 = vector.multi_reduction <add>, %498, %cst_133 [1] : vector<16x32xf32> to vector<16xf32>
    %500 = vector.shape_cast %499 : vector<16xf32> to vector<16x1xf32>
    %cst_134 = arith.constant 3.200000e+01 : f32
    %501 = vector.broadcast %cst_134 : f32 to vector<16x1xf32>
    %502 = arith.divf %500, %501 : vector<16x1xf32>
    %503 = arith.mulf %497, %497 : vector<16x1xf32>
    %504 = arith.subf %502, %503 : vector<16x1xf32>
    %505 = vector.broadcast %497 : vector<16x1xf32> to vector<16x32xf32>
    %506 = arith.subf %491, %505 : vector<16x32xf32>
    %cst_135 = arith.constant 9.99999974E-6 : f32
    %507 = vector.broadcast %cst_135 : f32 to vector<16x1xf32>
    %508 = arith.addf %504, %507 : vector<16x1xf32>
    %509 = math.rsqrt %508 : vector<16x1xf32>
    %510 = vector.broadcast %509 : vector<16x1xf32> to vector<16x32xf32>
    %511 = arith.mulf %506, %510 : vector<16x32xf32>
    %512 = vector.broadcast %492 : vector<1x32xf32> to vector<16x32xf32>
    %513 = arith.mulf %511, %512 : vector<16x32xf32>
    %514 = vector.broadcast %493 : vector<1x32xf32> to vector<16x32xf32>
    %515 = arith.addf %513, %514 : vector<16x32xf32>
    %c352 = arith.constant 352 : index
    %c0_136 = arith.constant 0 : index
    %516 = vector.load %arg1[%c352, %c0_136] : memref<520x128xf32, #tpu.memory_space<vmem>>, vector<32x64xf32>
    %cst_137 = arith.constant dense<0.000000e+00> : vector<16x64xf32>
    %517 = tpu.matmul %515, %516, %cst_137 {dimension_numbers = #tpu.dot_dimension_numbers<[1], [0], [0], [1], [0, 0, 1, 1], [], []>} : vector<16x32xf32>, vector<32x64xf32>, vector<16x64xf32> -> vector<16x64xf32>
    %c12_138 = arith.constant 12 : index
    %c0_139 = arith.constant 0 : index
    %518 = vector.load %arg2[%c12_138, %c0_139] : memref<19x128xf32, #tpu.memory_space<vmem>>, vector<1x64xf32>
    %519 = vector.broadcast %518 : vector<1x64xf32> to vector<16x64xf32>
    %520 = arith.addf %517, %519 : vector<16x64xf32>
    %cst_140 = arith.constant 0.000000e+00 : f32
    %521 = vector.broadcast %cst_140 : f32 to vector<16x64xf32>
    %522 = arith.maximumf %520, %521 : vector<16x64xf32>
    %c384 = arith.constant 384 : index
    %c0_141 = arith.constant 0 : index
    %523 = vector.load %arg1[%c384, %c0_141] : memref<520x128xf32, #tpu.memory_space<vmem>>, vector<64x32xf32>
    %cst_142 = arith.constant dense<0.000000e+00> : vector<16x32xf32>
    %524 = tpu.matmul %522, %523, %cst_142 {dimension_numbers = #tpu.dot_dimension_numbers<[1], [0], [0], [1], [0, 0, 1, 1], [], []>} : vector<16x64xf32>, vector<64x32xf32>, vector<16x32xf32> -> vector<16x32xf32>
    %c13 = arith.constant 13 : index
    %c0_143 = arith.constant 0 : index
    %525 = vector.load %arg2[%c13, %c0_143] : memref<19x128xf32, #tpu.memory_space<vmem>>, vector<1x32xf32>
    %526 = vector.broadcast %525 : vector<1x32xf32> to vector<16x32xf32>
    %527 = arith.addf %524, %526 : vector<16x32xf32>
    %528 = arith.addf %515, %527 : vector<16x32xf32>
    %c16_144 = arith.constant 16 : index
    %c0_145 = arith.constant 0 : index
    %529 = vector.load %arg2[%c16_144, %c0_145] : memref<19x128xf32, #tpu.memory_space<vmem>>, vector<1x32xf32>
    %c17 = arith.constant 17 : index
    %c0_146 = arith.constant 0 : index
    %530 = vector.load %arg2[%c17, %c0_146] : memref<19x128xf32, #tpu.memory_space<vmem>>, vector<1x32xf32>
    %cst_147 = arith.constant dense<0.000000e+00> : vector<16xf32>
    %531 = vector.multi_reduction <add>, %528, %cst_147 [1] : vector<16x32xf32> to vector<16xf32>
    %532 = vector.shape_cast %531 : vector<16xf32> to vector<16x1xf32>
    %cst_148 = arith.constant 3.200000e+01 : f32
    %533 = vector.broadcast %cst_148 : f32 to vector<16x1xf32>
    %534 = arith.divf %532, %533 : vector<16x1xf32>
    %535 = arith.mulf %528, %528 : vector<16x32xf32>
    %cst_149 = arith.constant dense<0.000000e+00> : vector<16xf32>
    %536 = vector.multi_reduction <add>, %535, %cst_149 [1] : vector<16x32xf32> to vector<16xf32>
    %537 = vector.shape_cast %536 : vector<16xf32> to vector<16x1xf32>
    %cst_150 = arith.constant 3.200000e+01 : f32
    %538 = vector.broadcast %cst_150 : f32 to vector<16x1xf32>
    %539 = arith.divf %537, %538 : vector<16x1xf32>
    %540 = arith.mulf %534, %534 : vector<16x1xf32>
    %541 = arith.subf %539, %540 : vector<16x1xf32>
    %542 = vector.broadcast %534 : vector<16x1xf32> to vector<16x32xf32>
    %543 = arith.subf %528, %542 : vector<16x32xf32>
    %cst_151 = arith.constant 9.99999974E-6 : f32
    %544 = vector.broadcast %cst_151 : f32 to vector<16x1xf32>
    %545 = arith.addf %541, %544 : vector<16x1xf32>
    %546 = math.rsqrt %545 : vector<16x1xf32>
    %547 = vector.broadcast %546 : vector<16x1xf32> to vector<16x32xf32>
    %548 = arith.mulf %543, %547 : vector<16x32xf32>
    %549 = vector.broadcast %529 : vector<1x32xf32> to vector<16x32xf32>
    %550 = arith.mulf %548, %549 : vector<16x32xf32>
    %551 = vector.broadcast %530 : vector<1x32xf32> to vector<16x32xf32>
    %552 = arith.addf %550, %551 : vector<16x32xf32>
    %553 = vector.extract_strided_slice %552 {offsets = [14, 0], sizes = [2, 32], strides = [1, 1]} : vector<16x32xf32> to vector<2x32xf32>
    %c448 = arith.constant 448 : index
    %c0_152 = arith.constant 0 : index
    %554 = vector.load %arg1[%c448, %c0_152] : memref<520x128xf32, #tpu.memory_space<vmem>>, vector<32x4xf32>
    %cst_153 = arith.constant dense<0.000000e+00> : vector<2x4xf32>
    %555 = tpu.matmul %553, %554, %cst_153 {dimension_numbers = #tpu.dot_dimension_numbers<[1], [0], [0], [1], [0, 0, 1, 1], [], []>} : vector<2x32xf32>, vector<32x4xf32>, vector<2x4xf32> -> vector<2x4xf32>
    %c18 = arith.constant 18 : index
    %c0_154 = arith.constant 0 : index
    %556 = vector.load %arg2[%c18, %c0_154] : memref<19x128xf32, #tpu.memory_space<vmem>>, vector<1x4xf32>
    %557 = vector.broadcast %556 : vector<1x4xf32> to vector<2x4xf32>
    %558 = arith.addf %555, %557 : vector<2x4xf32>
    %c0_155 = arith.constant 0 : index
    %c0_156 = arith.constant 0 : index
    %559 = vector.load %arg3[%c0_155, %c0_156] : memref<2x4xf32, #tpu.memory_space<vmem>>, vector<2x4xf32>
    tpu.vector_store %arg3[%c0_155, %c0_156], %558 {strides = array<i32>} : memref<2x4xf32, #tpu.memory_space<vmem>>, vector<2x4xf32>,
    return
  }
}

</mosaic_0001>

<llo_original>
// kernel: tpu_custom_call.1
$region0: #{tpu_custom_call.1}
  #allocation0 [shape = 'u32[]', space=smem, size = 0x4, offset = 0x4, fixed_abs, tag = 'smem constant byte address 0x4 - core index']
  #allocation1 [shape = 'u32[144,128]{1,0:T(1,128)}', space=vmem, size = 0x12000, scoped, tag = 'internal scratch']
  #allocation2 [shape = 'f32[16,32]{1,0:T(8,128)}', space=vmem, size = 0x2000, scoped, tag = 'scratch operand']
  %s0 = inlined_call_operand.hbm [shape: f32[2,8,16], index: 0, kind: input, shape index: {}]
  %s1 = inlined_call_operand.hbm [shape: f32[520,128], index: 1, kind: input, shape index: {}]
  %s2 = inlined_call_operand.hbm [shape: f32[19,128], index: 2, kind: input, shape index: {}]
  %s3 = inlined_call_operand.hbm [shape: f32[2,4], index: 3, kind: output, shape index: {}]
  %s4 = sld [smem:[#allocation0]]
  $region34: #{tpu_custom_call.1} parent=0
    _
  %s6 = ssub.s32 1, %s4
  %s7 = scalar_select 0, %s6, %s4
  $region1: #{tpu_custom_call.1} parent=0
    #allocation3 [shape = 'u8[8192]{0}', space=vmem, size = 0x2000, scoped, tag = 'input window, operand 0, single buffered']
    #allocation4 [shape = 's32[1]{0}', space=sflag, size = 0x4, scoped, tag = 'scoped memory for tpu_custom_call.1']
    #allocation5 [shape = 's32[1]{0}', space=sflag, size = 0x4, scoped, tag = 'scoped memory for tpu_custom_call.1']
    #allocation6 [shape = 'u8[266240]{0}', space=vmem, size = 0x41000, scoped, tag = 'input window, operand 1, single buffered']
    #allocation7 [shape = 's32[1]{0}', space=sflag, size = 0x4, scoped, tag = 'scoped memory for tpu_custom_call.1']
    #allocation8 [shape = 'u8[12288]{0}', space=vmem, size = 0x3000, scoped, tag = 'input window, operand 2, single buffered']
    #allocation9 [shape = 'u8[1024]{0}', space=vmem, size = 0x400, scoped, tag = 'output window, operand 0, single buffered']
    %8 = vsyncpa [#allocation4], 0
    %9 = vsyncpa [#allocation7], 0
    %10 = vsyncpa [#allocation5], 0
    // Predicated region
    $region2: #{tpu_custom_call.1} parent=1 // pred_check
      _
    $region3: #{tpu_custom_call.1} parent=1 // pred_check_branch
      %12 = sbr.rel (0) target = $region5
    $region4: #{tpu_custom_call.1} parent=1 // pred_region
      %s14 = ssub.s32 256, 256
      %15 = vsyncadd [#allocation4], %s14
      %s16 = sshll.u32 [#allocation3], 4
      %s17 = int_to_ptr.vmem [resolvable:$true] %s16
      %22 = dma.hbm_to_vmem [thread:$0]  %s0, 256, %s17, [#allocation4], 128, 128, 8
    $region5: #{tpu_custom_call.1} parent=1 // pred_fallthru
      _
    // Predicated region
    $region6: #{tpu_custom_call.1} parent=1 // pred_check
      _
    $region7: #{tpu_custom_call.1} parent=1 // pred_check_branch
      %24 = sbr.rel (0) target = $region9
    $region8: #{tpu_custom_call.1} parent=1 // pred_region
      %s26 = ssub.s32 8320, 8320
      %27 = vsyncadd [#allocation7], %s26
      %s28 = sshll.u32 [#allocation6], 4
      %s29 = int_to_ptr.vmem [resolvable:$true] %s28
      %34 = dma.hbm_to_vmem [thread:$0]  %s1, 8320, %s29, [#allocation7], 128, 128, 8
    $region9: #{tpu_custom_call.1} parent=1 // pred_fallthru
      _
    // Predicated region
    $region10: #{tpu_custom_call.1} parent=1 // pred_check
      _
    $region11: #{tpu_custom_call.1} parent=1 // pred_check_branch
      %36 = sbr.rel (0) target = $region13
    $region12: #{tpu_custom_call.1} parent=1 // pred_region
      %s38 = ssub.s32 384, 384
      %39 = vsyncadd [#allocation7], %s38
      %s40 = sshll.u32 [#allocation8], 4
      %s41 = int_to_ptr.vmem [resolvable:$true] %s40
      %46 = dma.hbm_to_vmem [thread:$0]  %s2, 384, %s41, [#allocation7], 128, 128, 8
    $region13: #{tpu_custom_call.1} parent=1 // pred_fallthru
      _
    // Predicated region
    $region14: #{tpu_custom_call.1} parent=1 // pred_check
      _
    $region15: #{tpu_custom_call.1} parent=1 // pred_check_branch
      %48 = sbr.rel (0) target = $region17
    $region16: #{tpu_custom_call.1} parent=1 // pred_region
      %49 = dma.done [#allocation4], 256
    $region17: #{tpu_custom_call.1} parent=1 // pred_fallthru
      _
    // Predicated region
    $region18: #{tpu_custom_call.1} parent=1 // pred_check
      _
    $region19: #{tpu_custom_call.1} parent=1 // pred_check_branch
      %51 = sbr.rel (0) target = $region21
    $region20: #{tpu_custom_call.1} parent=1 // pred_region
      %52 = dma.done [#allocation7], 8320
    $region21: #{tpu_custom_call.1} parent=1 // pred_fallthru
      _
    // Predicated region
    $region22: #{tpu_custom_call.1} parent=1 // pred_check
      _
    $region23: #{tpu_custom_call.1} parent=1 // pred_check_branch
      %54 = sbr.rel (0) target = $region25
    $region24: #{tpu_custom_call.1} parent=1 // pred_region
      %55 = dma.done [#allocation7], 384
    $region25: #{tpu_custom_call.1} parent=1 // pred_fallthru
      _
    %v56 = vld [vmem:[#allocation6] sm:$0xff]
    %v57 = vld [vmem:[#allocation6 + $0x8] sm:$0xff]
    %v58 = vld [vmem:[#allocation3] sm:$0xff]
    %v59 = vld [vmem:[#allocation3 + $0x8] sm:$0xff]
    %61 = vset.pattern.permute.xlu0 0
    %62 = vperm.xlu0 %61, %v57
    %v63 = vpop.permute.xlu0 %62
    %vm65 = vcmask 64512
    %v67 = vsel %vm65, %v56, 0
    %69 = vmatprep.subr.mxu0 0.0
    %70 = vmatpush1.msra.mxu0 %v58
    %71 = vmatprep.subr.mxu0 0.0
    %72 = vmatpush1.msra.mxu0 0.0
    %73 = vmatprep.subr.mxu0 0.0
    %74 = vmatpush1.msra.mxu0 0.0
    %75 = vmatprep.subr.mxu0 0.0
    %76 = vmatpush1.msra.mxu0 0.0
    %77 = vmatprep.subr.mxu0 0.0
    %78 = vmatpush1.msra.mxu0 0.0
    %79 = vmatprep.subr.mxu0 0.0
    %80 = vmatpush1.msra.mxu0 0.0
    %81 = vmatprep.subr.mxu0 0.0
    %82 = vmatpush1.msra.mxu0 0.0
    %83 = vmatprep.subr.mxu0 0.0
    %84 = vmatpush1.msra.mxu0 0.0
    %85 = vmatprep.subr.mxu0 0.0
    %86 = vmatpush1.msra.mxu0 0.0
    %87 = vmatprep.subr.mxu0 0.0
    %88 = vmatpush1.msra.mxu0 0.0
    %89 = vmatprep.subr.mxu0 0.0
    %90 = vmatpush1.msra.mxu0 0.0
    %91 = vmatprep.subr.mxu0 0.0
    %92 = vmatpush1.msra.mxu0 0.0
    %93 = vmatprep.subr.mxu0 0.0
    %94 = vmatpush1.msra.mxu0 0.0
    %95 = vmatprep.subr.mxu0 0.0
    %96 = vmatpush1.msra.mxu0 0.0
    %97 = vmatprep.subr.mxu0 0.0
    %98 = vmatpush1.msra.mxu0 0.0
    %99 = vmatprep.subr.mxu0 0.0
    %100 = vmatpush1.msra.mxu0 0.0
    %101 = vmatprep.subr.mxu0 0.0
    %102 = vmatpush1.msra.mxu0 0.0
    %103 = vmatprep.subr.mxu0 0.0
    %104 = vmatpush1.msra.mxu0 0.0
    %105 = vmatprep.subr.mxu0 0.0
    %106 = vmatpush1.msra.mxu0 0.0
    %107 = vmatprep.subr.mxu0 0.0
    %108 = vmatpush1.msra.mxu0 0.0
    %109 = vmatprep.subr.mxu0 0.0
    %110 = vmatpush1.msra.mxu0 0.0
    %111 = vmatprep.subr.mxu0 0.0
    %112 = vmatpush1.msra.mxu0 0.0
    %113 = vmatprep.subr.mxu0 0.0
    %114 = vmatpush1.msra.mxu0 0.0
    %115 = vmatprep.subr.mxu0 0.0
    %116 = vmatpush1.msra.mxu0 0.0
    %117 = vmatprep.subr.mxu0 0.0
    %118 = vmatpush1.msra.mxu0 0.0
    %119 = vmatprep.subr.mxu0 0.0
    %120 = vmatpush1.msra.mxu0 0.0
    %121 = vmatprep.subr.mxu0 0.0
    %122 = vmatpush1.msra.mxu0 0.0
    %123 = vmatprep.subr.mxu0 0.0
    %124 = vmatpush1.msra.mxu0 0.0
    %125 = vmatprep.subr.mxu0 0.0
    %126 = vmatpush1.msra.mxu0 0.0
    %127 = vmatprep.subr.mxu0 0.0
    %128 = vmatpush1.msra.mxu0 0.0
    %129 = vmatprep.subr.mxu0 0.0
    %130 = vmatpush1.msra.mxu0 0.0
    %131 = vmatprep.subr.mxu0 0.0
    %132 = vmatpush1.msra.mxu0 0.0
    %133 = vmatprep.mubr.f32.mxu0 0.0
    %134 = vmatmul.mubr.f32.gmra.mrb[0].mxu0 %v67
    %v135 = vpop.f32.mrb[0].mxu0
    %v136 = vadd.f32 %v63, %v135
    %v137 = vpop.f32.mrb[0].mxu0
    %138 = vdwg.mxu0
    %139 = vmatprep.subr.mxu0 0.0
    %140 = vmatpush1.msra.mxu0 %v59
    %141 = vmatprep.subr.mxu0 0.0
    %142 = vmatpush1.msra.mxu0 0.0
    %143 = vmatprep.subr.mxu0 0.0
    %144 = vmatpush1.msra.mxu0 0.0
    %145 = vmatprep.subr.mxu0 0.0
    %146 = vmatpush1.msra.mxu0 0.0
    %147 = vmatprep.subr.mxu0 0.0
    %148 = vmatpush1.msra.mxu0 0.0
    %149 = vmatprep.subr.mxu0 0.0
    %150 = vmatpush1.msra.mxu0 0.0
    %151 = vmatprep.subr.mxu0 0.0
    %152 = vmatpush1.msra.mxu0 0.0
    %153 = vmatprep.subr.mxu0 0.0
    %154 = vmatpush1.msra.mxu0 0.0
    %155 = vmatprep.subr.mxu0 0.0
    %156 = vmatpush1.msra.mxu0 0.0
    %157 = vmatprep.subr.mxu0 0.0
    %158 = vmatpush1.msra.mxu0 0.0
    %159 = vmatprep.subr.mxu0 0.0
    %160 = vmatpush1.msra.mxu0 0.0
    %161 = vmatprep.subr.mxu0 0.0
    %162 = vmatpush1.msra.mxu0 0.0
    %163 = vmatprep.subr.mxu0 0.0
    %164 = vmatpush1.msra.mxu0 0.0
    %165 = vmatprep.subr.mxu0 0.0
    %166 = vmatpush1.msra.mxu0 0.0
    %167 = vmatprep.subr.mxu0 0.0
    %168 = vmatpush1.msra.mxu0 0.0
    %169 = vmatprep.subr.mxu0 0.0
    %170 = vmatpush1.msra.mxu0 0.0
    %171 = vmatprep.subr.mxu0 0.0
    %172 = vmatpush1.msra.mxu0 0.0
    %173 = vmatprep.subr.mxu0 0.0
    %174 = vmatpush1.msra.mxu0 0.0
    %175 = vmatprep.subr.mxu0 0.0
    %176 = vmatpush1.msra.mxu0 0.0
    %177 = vmatprep.subr.mxu0 0.0
    %178 = vmatpush1.msra.mxu0 0.0
    %179 = vmatprep.subr.mxu0 0.0
    %180 = vmatpush1.msra.mxu0 0.0
    %181 = vmatprep.subr.mxu0 0.0
    %182 = vmatpush1.msra.mxu0 0.0
    %183 = vmatprep.subr.mxu0 0.0
    %184 = vmatpush1.msra.mxu0 0.0
    %185 = vmatprep.subr.mxu0 0.0
    %186 = vmatpush1.msra.mxu0 0.0
    %187 = vmatprep.subr.mxu0 0.0
    %188 = vmatpush1.msra.mxu0 0.0
    %189 = vmatprep.subr.mxu0 0.0
    %190 = vmatpush1.msra.mxu0 0.0
    %191 = vmatprep.subr.mxu0 0.0
    %192 = vmatpush1.msra.mxu0 0.0
    %193 = vmatprep.subr.mxu0 0.0
    %194 = vmatpush1.msra.mxu0 0.0
    %195 = vmatprep.subr.mxu0 0.0
    %196 = vmatpush1.msra.mxu0 0.0
    %197 = vmatprep.subr.mxu0 0.0
    %198 = vmatpush1.msra.mxu0 0.0
    %199 = vmatprep.subr.mxu0 0.0
    %200 = vmatpush1.msra.mxu0 0.0
    %201 = vmatprep.subr.mxu0 0.0
    %202 = vmatpush1.msra.mxu0 0.0
    %203 = vmatprep.mubr.f32.mxu0 0.0
    %204 = vmatmul.mubr.f32.gmra.mrb[0].mxu0 %v67
    %v205 = vpop.f32.mrb[0].mxu0
    %v206 = vadd.f32 %v63, %v205
    %v207 = vpop.f32.mrb[0].mxu0
    %208 = vdwg.mxu0
    %v209 = vcombine.high %v136, 0.0
    %v211 = vunpack.c.l.s4 1983009808
    %v212 = vunpack.c.0.s8 %v211
    %v213 = vlaneseq
    %v214 = vshrl.u32 %v213, 7
    %v215 = vsub.s32 %v212, %v214
    %v216 = vrot.slane %v136, %v215
    %v218 = vunpack.c.l.s4 1983009808
    %v219 = vunpack.c.0.s8 %v218
    %v220 = vlaneseq
    %v221 = vshrl.u32 %v220, 7
    %v222 = vsub.s32 %v219, %v221
    %v223 = vrot.slane %v209, %v222
    %v224 = vcombine.high %v206, 0.0
    %v226 = vunpack.c.l.s4 1983009808
    %v227 = vunpack.c.0.s8 %v226
    %v228 = vlaneseq
    %v229 = vshrl.u32 %v228, 7
    %v230 = vsub.s32 %v227, %v229
    %v231 = vrot.slane %v206, %v230
    %v233 = vunpack.c.l.s4 1983009808
    %v234 = vunpack.c.0.s8 %v233
    %v235 = vlaneseq
    %v236 = vshrl.u32 %v235, 7
    %v237 = vsub.s32 %v234, %v236
    %v238 = vrot.slane %v224, %v237
    %v239 = vcombine.low %v216, %v231
    %v240 = vcombine.high %v216, %v231
    %v242 = vunpack.c.l.s4 1934713408
    %v243 = vunpack.c.0.s8 %v242
    %v244 = vlaneseq
    %v245 = vshrl.u32 %v244, 7
    %v246 = vsub.s32 %v243, %v245
    %v247 = vrot.slane %v239, %v246
    %v249 = vunpack.c.l.s4 1934713408
    %v250 = vunpack.c.0.s8 %v249
    %v251 = vlaneseq
    %v252 = vshrl.u32 %v251, 7
    %v253 = vsub.s32 %v250, %v252
    %v254 = vrot.slane %v240, %v253
    %v255 = vcombine.low %v223, %v238
    %v256 = vcombine.high %v223, %v238
    %v258 = vunpack.c.l.s4 1934713408
    %v259 = vunpack.c.0.s8 %v258
    %v260 = vlaneseq
    %v261 = vshrl.u32 %v260, 7
    %v262 = vsub.s32 %v259, %v261
    %v263 = vrot.slane %v255, %v262
    %v265 = vunpack.c.l.s4 1934713408
    %v266 = vunpack.c.0.s8 %v265
    %v267 = vlaneseq
    %v268 = vshrl.u32 %v267, 7
    %v269 = vsub.s32 %v266, %v268
    %v270 = vrot.slane %v256, %v269
    %v271 = vcombine.high %v247, 0.0
    %v272 = vcombine.high %v254, 0.0
    %v273 = vcombine.high %v263, 0.0
    %v274 = vcombine.high %v270, 0.0
    %v275 = vld [vmem:[#allocation6 + $0x10] sm:$0xff]
    %v276 = vld [vmem:[#allocation6 + $0x18] sm:$0xff]
    %v277 = vld [vmem:[#allocation6 + $0x20] sm:$0xff]
    %v278 = vld [vmem:[#allocation6 + $0x28] sm:$0xff]
    %v279 = vld [vmem:[#allocation6 + $0x30] sm:$0xff]
    %v280 = vld [vmem:[#allocation6 + $0x38] sm:$0xff]
    %v281 = vld [vmem:[#allocation8] sm:$0x1]
    %v282 = vlaneseq
    %v283 = vshrl.u32 %v282, 7
    %v284 = vsub.s32 0, %v283
    %v285 = vrot.slane %v281, %v284
    %v294 = vcombine.low %v247, %v271
    %v295 = vcombine.low %v254, %v272
    %v297 = vunpack.c.l.s4 1983009808
    %v298 = vunpack.c.0.s8 %v297
    %v299 = vlaneseq
    %v300 = vshrl.u32 %v299, 7
    %v301 = vsub.s32 %v298, %v300
    %v302 = vrot.slane %v294, %v301
    %v304 = vunpack.c.l.s4 1983009808
    %v305 = vunpack.c.0.s8 %v304
    %v306 = vlaneseq
    %v307 = vshrl.u32 %v306, 7
    %v308 = vsub.s32 %v305, %v307
    %v309 = vrot.slane %v295, %v308
    %v310 = vcombine.low %v302, %v309
    %v311 = vcombine.low %v263, %v273
    %v312 = vcombine.low %v270, %v274
    %v314 = vunpack.c.l.s4 1983009808
    %v315 = vunpack.c.0.s8 %v314
    %v316 = vlaneseq
    %v317 = vshrl.u32 %v316, 7
    %v318 = vsub.s32 %v315, %v317
    %v319 = vrot.slane %v311, %v318
    %v321 = vunpack.c.l.s4 1983009808
    %v322 = vunpack.c.0.s8 %v321
    %v323 = vlaneseq
    %v324 = vshrl.u32 %v323, 7
    %v325 = vsub.s32 %v322, %v324
    %v326 = vrot.slane %v312, %v325
    %v327 = vcombine.low %v319, %v326
    %vm328 = vcmask 130048
    %v329 = vsel %vm328, %v310, 0
    %v331 = vsel %vm328, %v327, 0
    %333 = vmatprep.subr.mxu0 0.0
    %334 = vmatpush1.msra.mxu0 %v275
    %335 = vmatprep.subr.mxu0 0.0
    %336 = vmatpush1.msra.mxu0 %v276
    %337 = vmatprep.subr.mxu0 0.0
    %338 = vmatpush1.msra.mxu0 0.0
    %339 = vmatprep.subr.mxu0 0.0
    %340 = vmatpush1.msra.mxu0 0.0
    %341 = vmatprep.subr.mxu0 0.0
    %342 = vmatpush1.msra.mxu0 0.0
    %343 = vmatprep.subr.mxu0 0.0
    %344 = vmatpush1.msra.mxu0 0.0
    %345 = vmatprep.subr.mxu0 0.0
    %346 = vmatpush1.msra.mxu0 0.0
    %347 = vmatprep.subr.mxu0 0.0
    %348 = vmatpush1.msra.mxu0 0.0
    %349 = vmatprep.subr.mxu0 0.0
    %350 = vmatpush1.msra.mxu0 0.0
    %351 = vmatprep.subr.mxu0 0.0
    %352 = vmatpush1.msra.mxu0 0.0
    %353 = vmatprep.subr.mxu0 0.0
    %354 = vmatpush1.msra.mxu0 0.0
    %355 = vmatprep.subr.mxu0 0.0
    %356 = vmatpush1.msra.mxu0 0.0
    %357 = vmatprep.subr.mxu0 0.0
    %358 = vmatpush1.msra.mxu0 0.0
    %359 = vmatprep.subr.mxu0 0.0
    %360 = vmatpush1.msra.mxu0 0.0
    %361 = vmatprep.subr.mxu0 0.0
    %362 = vmatpush1.msra.mxu0 0.0
    %363 = vmatprep.subr.mxu0 0.0
    %364 = vmatpush1.msra.mxu0 0.0
    %365 = vmatprep.subr.mxu0 0.0
    %366 = vmatpush1.msra.mxu0 0.0
    %367 = vmatprep.subr.mxu0 0.0
    %368 = vmatpush1.msra.mxu0 0.0
    %369 = vmatprep.subr.mxu0 0.0
    %370 = vmatpush1.msra.mxu0 0.0
    %371 = vmatprep.subr.mxu0 0.0
    %372 = vmatpush1.msra.mxu0 0.0
    %373 = vmatprep.subr.mxu0 0.0
    %374 = vmatpush1.msra.mxu0 0.0
    %375 = vmatprep.subr.mxu0 0.0
    %376 = vmatpush1.msra.mxu0 0.0
    %377 = vmatprep.subr.mxu0 0.0
    %378 = vmatpush1.msra.mxu0 0.0
    %379 = vmatprep.subr.mxu0 0.0
    %380 = vmatpush1.msra.mxu0 0.0
    %381 = vmatprep.subr.mxu0 0.0
    %382 = vmatpush1.msra.mxu0 0.0
    %383 = vmatprep.subr.mxu0 0.0
    %384 = vmatpush1.msra.mxu0 0.0
    %385 = vmatprep.subr.mxu0 0.0
    %386 = vmatpush1.msra.mxu0 0.0
    %387 = vmatprep.subr.mxu0 0.0
    %388 = vmatpush1.msra.mxu0 0.0
    %389 = vmatprep.subr.mxu0 0.0
    %390 = vmatpush1.msra.mxu0 0.0
    %391 = vmatprep.subr.mxu0 0.0
    %392 = vmatpush1.msra.mxu0 0.0
    %393 = vmatprep.subr.mxu0 0.0
    %394 = vmatpush1.msra.mxu0 0.0
    %395 = vmatprep.subr.mxu0 0.0
    %396 = vmatpush1.msra.mxu0 0.0
    %397 = vmatprep.mubr.f32.mxu0 0.0
    %398 = vmatmul.mubr.f32.gmra.mrb[0].mxu0 %v329
    %v399 = vpop.f32.mrb[0].mxu0
    %v400 = vadd.f32 %v285, %v399
    %v401 = vpop.f32.mrb[0].mxu0
    %402 = vmatprep.mubr.f32.mxu0 0.0
    %403 = vmatmul.mubr.f32.gmra.mrb[0].mxu0 %v331
    %v404 = vpop.f32.mrb[0].mxu0
    %v405 = vadd.f32 %v285, %v404
    %v406 = vpop.f32.mrb[0].mxu0
    %407 = vdwg.mxu0
    %vm408 = vcmask 261120
    %v410 = vsel %vm408, 0.0, 0
    %412 = vmatprep.subr.mxu0 0.0
    %413 = vmatpush1.msra.mxu0 %v277
    %414 = vmatprep.subr.mxu0 0.0
    %415 = vmatpush1.msra.mxu0 %v278
    %416 = vmatprep.subr.mxu0 0.0
    %417 = vmatpush1.msra.mxu0 %v279
    %418 = vmatprep.subr.mxu0 0.0
    %419 = vmatpush1.msra.mxu0 %v280
    %420 = vmatprep.subr.mxu0 0.0
    %421 = vmatpush1.msra.mxu0 0.0
    %422 = vmatprep.subr.mxu0 0.0
    %423 = vmatpush1.msra.mxu0 0.0
    %424 = vmatprep.subr.mxu0 0.0
    %425 = vmatpush1.msra.mxu0 0.0
    %426 = vmatprep.subr.mxu0 0.0
    %427 = vmatpush1.msra.mxu0 0.0
    %428 = vmatprep.subr.mxu0 0.0
    %429 = vmatpush1.msra.mxu0 0.0
    %430 = vmatprep.subr.mxu0 0.0
    %431 = vmatpush1.msra.mxu0 0.0
    %432 = vmatprep.subr.mxu0 0.0
    %433 = vmatpush1.msra.mxu0 0.0
    %434 = vmatprep.subr.mxu0 0.0
    %435 = vmatpush1.msra.mxu0 0.0
    %436 = vmatprep.subr.mxu0 0.0
    %437 = vmatpush1.msra.mxu0 0.0
    %438 = vmatprep.subr.mxu0 0.0
    %439 = vmatpush1.msra.mxu0 0.0
    %440 = vmatprep.subr.mxu0 0.0
    %441 = vmatpush1.msra.mxu0 0.0
    %442 = vmatprep.subr.mxu0 0.0
    %443 = vmatpush1.msra.mxu0 0.0
    %444 = vmatprep.subr.mxu0 0.0
    %445 = vmatpush1.msra.mxu0 0.0
    %446 = vmatprep.subr.mxu0 0.0
    %447 = vmatpush1.msra.mxu0 0.0
    %448 = vmatprep.subr.mxu0 0.0
    %449 = vmatpush1.msra.mxu0 0.0
    %450 = vmatprep.subr.mxu0 0.0
    %451 = vmatpush1.msra.mxu0 0.0
    %452 = vmatprep.subr.mxu0 0.0
    %453 = vmatpush1.msra.mxu0 0.0
    %454 = vmatprep.subr.mxu0 0.0
    %455 = vmatpush1.msra.mxu0 0.0
    %456 = vmatprep.subr.mxu0 0.0
    %457 = vmatpush1.msra.mxu0 0.0
    %458 = vmatprep.subr.mxu0 0.0
    %459 = vmatpush1.msra.mxu0 0.0
    %460 = vmatprep.subr.mxu0 0.0
    %461 = vmatpush1.msra.mxu0 0.0
    %462 = vmatprep.subr.mxu0 0.0
    %463 = vmatpush1.msra.mxu0 0.0
    %464 = vmatprep.subr.mxu0 0.0
    %465 = vmatpush1.msra.mxu0 0.0
    %466 = vmatprep.subr.mxu0 0.0
    %467 = vmatpush1.msra.mxu0 0.0
    %468 = vmatprep.subr.mxu0 0.0
    %469 = vmatpush1.msra.mxu0 0.0
    %470 = vmatprep.subr.mxu0 0.0
    %471 = vmatpush1.msra.mxu0 0.0
    %472 = vmatprep.subr.mxu0 0.0
    %473 = vmatpush1.msra.mxu0 0.0
    %474 = vmatprep.subr.mxu0 0.0
    %475 = vmatpush1.msra.mxu0 0.0
    %476 = vmatprep.mubr.f32.mxu0 0.0
    %477 = vmatmul.mubr.f32.gmra.mrb[0].mxu0 %v410
    %v478 = vpop.f32.mrb[0].mxu0
    %v479 = vadd.f32 0.0, %v478
    %v480 = vpop.f32.mrb[0].mxu0
    %481 = vdwg.mxu0
    %v482 = vadd.f32 %v400, %v479
    %v483 = vxor.u32 %v482, 2147483648
    %v484 = vmul.f32 %v483, 1.442695
    %v485 = vpow.pop %v484
    %v486 = vadd.f32 %v485, 1.0
    %v487 = vrcp.pop %v486
    %v488 = vmul.f32 1.0, %v487
    %v489 = vtanh.pop %v482
    %v490 = vmul.f32 %v488, 0.0
    %492 = vrot.lane.b32.xlu0 %v489, 64
    %v493 = vpop.permute.xlu0 %492
    %v495 = vmul.f32 %v488, %v493
    %497 = vrot.lane.b32.xlu0 %v495, 32
    %v498 = vpop.permute.xlu0 %497
    %v500 = vadd.f32 %v490, %v498
    %v501 = vtanh.pop %v500
    %503 = vrot.lane.b32.xlu0 %v501, 64
    %v504 = vpop.permute.xlu0 %503
    %v506 = vmul.f32 %v488, %v504
    %508 = vrot.lane.b32.xlu0 %v506, 32
    %v509 = vpop.permute.xlu0 %508
    %vm511 = vcmask 254976
    %512 = vst.msk [vmem:[#allocation2] sm:$0x3] %vm511, %v509
    %v513 = vsel %vm408, %v509, 0
    %515 = vmatprep.subr.mxu0 0.0
    %516 = vmatpush1.msra.mxu0 %v277
    %517 = vmatprep.subr.mxu0 0.0
    %518 = vmatpush1.msra.mxu0 %v278
    %519 = vmatprep.subr.mxu0 0.0
    %520 = vmatpush1.msra.mxu0 %v279
    %521 = vmatprep.subr.mxu0 0.0
    %522 = vmatpush1.msra.mxu0 %v280
    %523 = vmatprep.subr.mxu0 0.0
    %524 = vmatpush1.msra.mxu0 0.0
    %525 = vmatprep.subr.mxu0 0.0
    %526 = vmatpush1.msra.mxu0 0.0
    %527 = vmatprep.subr.mxu0 0.0
    %528 = vmatpush1.msra.mxu0 0.0
    %529 = vmatprep.subr.mxu0 0.0
    %530 = vmatpush1.msra.mxu0 0.0
    %531 = vmatprep.subr.mxu0 0.0
    %532 = vmatpush1.msra.mxu0 0.0
    %533 = vmatprep.subr.mxu0 0.0
    %534 = vmatpush1.msra.mxu0 0.0
    %535 = vmatprep.subr.mxu0 0.0
    %536 = vmatpush1.msra.mxu0 0.0
    %537 = vmatprep.subr.mxu0 0.0
    %538 = vmatpush1.msra.mxu0 0.0
    %539 = vmatprep.subr.mxu0 0.0
    %540 = vmatpush1.msra.mxu0 0.0
    %541 = vmatprep.subr.mxu0 0.0
    %542 = vmatpush1.msra.mxu0 0.0
    %543 = vmatprep.subr.mxu0 0.0
    %544 = vmatpush1.msra.mxu0 0.0
    %545 = vmatprep.subr.mxu0 0.0
    %546 = vmatpush1.msra.mxu0 0.0
    %547 = vmatprep.subr.mxu0 0.0
    %548 = vmatpush1.msra.mxu0 0.0
    %549 = vmatprep.subr.mxu0 0.0
    %550 = vmatpush1.msra.mxu0 0.0
    %551 = vmatprep.subr.mxu0 0.0
    %552 = vmatpush1.msra.mxu0 0.0
    %553 = vmatprep.subr.mxu0 0.0
    %554 = vmatpush1.msra.mxu0 0.0
    %555 = vmatprep.subr.mxu0 0.0
    %556 = vmatpush1.msra.mxu0 0.0
    %557 = vmatprep.subr.mxu0 0.0
    %558 = vmatpush1.msra.mxu0 0.0
    %559 = vmatprep.subr.mxu0 0.0
    %560 = vmatpush1.msra.mxu0 0.0
    %561 = vmatprep.subr.mxu0 0.0
    %562 = vmatpush1.msra.mxu0 0.0
    %563 = vmatprep.subr.mxu0 0.0
    %564 = vmatpush1.msra.mxu0 0.0
    %565 = vmatprep.subr.mxu0 0.0
    %566 = vmatpush1.msra.mxu0 0.0
    %567 = vmatprep.subr.mxu0 0.0
    %568 = vmatpush1.msra.mxu0 0.0
    %569 = vmatprep.subr.mxu0 0.0
    %570 = vmatpush1.msra.mxu0 0.0
    %571 = vmatprep.subr.mxu0 0.0
    %572 = vmatpush1.msra.mxu0 0.0
    %573 = vmatprep.subr.mxu0 0.0
    %574 = vmatpush1.msra.mxu0 0.0
    %575 = vmatprep.subr.mxu0 0.0
    %576 = vmatpush1.msra.mxu0 0.0
    %577 = vmatprep.subr.mxu0 0.0
    %578 = vmatpush1.msra.mxu0 0.0
    %579 = vmatprep.mubr.f32.mxu0 0.0
    %580 = vmatmul.mubr.f32.gmra.mrb[0].mxu0 %v513
    %v581 = vpop.f32.mrb[0].mxu0
    %v582 = vadd.f32 0.0, %v581
    %v583 = vpop.f32.mrb[0].mxu0
    %584 = vdwg.mxu0
    %v586 = vrot.slane %v582, 6
    %v588 = vadd.f32 %v400, %v586
    %v589 = vxor.u32 %v588, 2147483648
    %v590 = vmul.f32 %v589, 1.442695
    %v591 = vpow.pop %v590
    %v592 = vadd.f32 %v591, 1.0
    %v593 = vrcp.pop %v592
    %v594 = vmul.f32 1.0, %v593
    %v595 = vtanh.pop %v588
    %v597 = vrot.slane %v500, 6
    %v599 = vmul.f32 %v594, %v597
    %601 = vrot.lane.b32.xlu0 %v595, 64
    %v602 = vpop.permute.xlu0 %601
    %v604 = vmul.f32 %v594, %v602
    %606 = vrot.lane.b32.xlu0 %v604, 32
    %v607 = vpop.permute.xlu0 %606
    %v609 = vadd.f32 %v599, %v607
    %v610 = vtanh.pop %v609
    %612 = vrot.lane.b32.xlu0 %v610, 64
    %v613 = vpop.permute.xlu0 %612
    %v615 = vmul.f32 %v594, %v613
    %617 = vrot.lane.b32.xlu0 %v615, 32
    %v618 = vpop.permute.xlu0 %617
    %vm620 = vcmask 257026
    %621 = vst.msk [vmem:[#allocation2] sm:$0xc] %vm620, %v618
    %v622 = vrot.slane %v615, 2
    %623 = vrot.lane.b32.xlu0 %v622, 32
    %v624 = vpop.permute.xlu0 %623
    %v625 = vsel %vm408, %v624, 0
    %627 = vmatprep.subr.mxu0 0.0
    %628 = vmatpush1.msra.mxu0 %v277
    %629 = vmatprep.subr.mxu0 0.0
    %630 = vmatpush1.msra.mxu0 %v278
    %631 = vmatprep.subr.mxu0 0.0
    %632 = vmatpush1.msra.mxu0 %v279
    %633 = vmatprep.subr.mxu0 0.0
    %634 = vmatpush1.msra.mxu0 %v280
    %635 = vmatprep.subr.mxu0 0.0
    %636 = vmatpush1.msra.mxu0 0.0
    %637 = vmatprep.subr.mxu0 0.0
    %638 = vmatpush1.msra.mxu0 0.0
    %639 = vmatprep.subr.mxu0 0.0
    %640 = vmatpush1.msra.mxu0 0.0
    %641 = vmatprep.subr.mxu0 0.0
    %642 = vmatpush1.msra.mxu0 0.0
    %643 = vmatprep.subr.mxu0 0.0
    %644 = vmatpush1.msra.mxu0 0.0
    %645 = vmatprep.subr.mxu0 0.0
    %646 = vmatpush1.msra.mxu0 0.0
    %647 = vmatprep.subr.mxu0 0.0
    %648 = vmatpush1.msra.mxu0 0.0
    %649 = vmatprep.subr.mxu0 0.0
    %650 = vmatpush1.msra.mxu0 0.0
    %651 = vmatprep.subr.mxu0 0.0
    %652 = vmatpush1.msra.mxu0 0.0
    %653 = vmatprep.subr.mxu0 0.0
    %654 = vmatpush1.msra.mxu0 0.0
    %655 = vmatprep.subr.mxu0 0.0
    %656 = vmatpush1.msra.mxu0 0.0
    %657 = vmatprep.subr.mxu0 0.0
    %658 = vmatpush1.msra.mxu0 0.0
    %659 = vmatprep.subr.mxu0 0.0
    %660 = vmatpush1.msra.mxu0 0.0
    %661 = vmatprep.subr.mxu0 0.0
    %662 = vmatpush1.msra.mxu0 0.0
    %663 = vmatprep.subr.mxu0 0.0
    %664 = vmatpush1.msra.mxu0 0.0
    %665 = vmatprep.subr.mxu0 0.0
    %666 = vmatpush1.msra.mxu0 0.0
    %667 = vmatprep.subr.mxu0 0.0
    %668 = vmatpush1.msra.mxu0 0.0
    %669 = vmatprep.subr.mxu0 0.0
    %670 = vmatpush1.msra.mxu0 0.0
    %671 = vmatprep.subr.mxu0 0.0
    %672 = vmatpush1.msra.mxu0 0.0
    %673 = vmatprep.subr.mxu0 0.0
    %674 = vmatpush1.msra.mxu0 0.0
    %675 = vmatprep.subr.mxu0 0.0
    %676 = vmatpush1.msra.mxu0 0.0
    %677 = vmatprep.subr.mxu0 0.0
    %678 = vmatpush1.msra.mxu0 0.0
    %679 = vmatprep.subr.mxu0 0.0
    %680 = vmatpush1.msra.mxu0 0.0
    %681 = vmatprep.subr.mxu0 0.0
    %682 = vmatpush1.msra.mxu0 0.0
    %683 = vmatprep.subr.mxu0 0.0
    %684 = vmatpush1.msra.mxu0 0.0
    %685 = vmatprep.subr.mxu0 0.0
    %686 = vmatpush1.msra.mxu0 0.0
    %687 = vmatprep.subr.mxu0 0.0
    %688 = vmatpush1.msra.mxu0 0.0
    %689 = vmatprep.subr.mxu0 0.0
    %690 = vmatpush1.msra.mxu0 0.0
    %691 = vmatprep.mubr.f32.mxu0 0.0
    %692 = vmatmul.mubr.f32.gmra.mrb[0].mxu0 %v625
    %v693 = vpop.f32.mrb[0].mxu0
    %v694 = vadd.f32 0.0, %v693
    %v695 = vpop.f32.mrb[0].mxu0
    %696 = vdwg.mxu0
    %v698 = vrot.slane %v694, 4
    %v700 = vadd.f32 %v400, %v698
    %v701 = vxor.u32 %v700, 2147483648
    %v702 = vmul.f32 %v701, 1.442695
    %v703 = vpow.pop %v702
    %v704 = vadd.f32 %v703, 1.0
    %v705 = vrcp.pop %v704
    %v706 = vmul.f32 1.0, %v705
    %v707 = vtanh.pop %v700
    %v709 = vrot.slane %v609, 6
    %v711 = vmul.f32 %v706, %v709
    %713 = vrot.lane.b32.xlu0 %v707, 64
    %v714 = vpop.permute.xlu0 %713
    %v716 = vmul.f32 %v706, %v714
    %718 = vrot.lane.b32.xlu0 %v716, 32
    %v719 = vpop.permute.xlu0 %718
    %v721 = vadd.f32 %v711, %v719
    %v722 = vtanh.pop %v721
    %724 = vrot.lane.b32.xlu0 %v722, 64
    %v725 = vpop.permute.xlu0 %724
    %v727 = vmul.f32 %v706, %v725
    %729 = vrot.lane.b32.xlu0 %v727, 32
    %v730 = vpop.permute.xlu0 %729
    %vm732 = vcmask 259076
    %733 = vst.msk [vmem:[#allocation2] sm:$0x30] %vm732, %v730
    %v734 = vrot.slane %v727, 4
    %735 = vrot.lane.b32.xlu0 %v734, 32
    %v736 = vpop.permute.xlu0 %735
    %v737 = vsel %vm408, %v736, 0
    %739 = vmatprep.subr.mxu0 0.0
    %740 = vmatpush1.msra.mxu0 %v277
    %741 = vmatprep.subr.mxu0 0.0
    %742 = vmatpush1.msra.mxu0 %v278
    %743 = vmatprep.subr.mxu0 0.0
    %744 = vmatpush1.msra.mxu0 %v279
    %745 = vmatprep.subr.mxu0 0.0
    %746 = vmatpush1.msra.mxu0 %v280
    %747 = vmatprep.subr.mxu0 0.0
    %748 = vmatpush1.msra.mxu0 0.0
    %749 = vmatprep.subr.mxu0 0.0
    %750 = vmatpush1.msra.mxu0 0.0
    %751 = vmatprep.subr.mxu0 0.0
    %752 = vmatpush1.msra.mxu0 0.0
    %753 = vmatprep.subr.mxu0 0.0
    %754 = vmatpush1.msra.mxu0 0.0
    %755 = vmatprep.subr.mxu0 0.0
    %756 = vmatpush1.msra.mxu0 0.0
    %757 = vmatprep.subr.mxu0 0.0
    %758 = vmatpush1.msra.mxu0 0.0
    %759 = vmatprep.subr.mxu0 0.0
    %760 = vmatpush1.msra.mxu0 0.0
    %761 = vmatprep.subr.mxu0 0.0
    %762 = vmatpush1.msra.mxu0 0.0
    %763 = vmatprep.subr.mxu0 0.0
    %764 = vmatpush1.msra.mxu0 0.0
    %765 = vmatprep.subr.mxu0 0.0
    %766 = vmatpush1.msra.mxu0 0.0
    %767 = vmatprep.subr.mxu0 0.0
    %768 = vmatpush1.msra.mxu0 0.0
    %769 = vmatprep.subr.mxu0 0.0
    %770 = vmatpush1.msra.mxu0 0.0
    %771 = vmatprep.subr.mxu0 0.0
    %772 = vmatpush1.msra.mxu0 0.0
    %773 = vmatprep.subr.mxu0 0.0
    %774 = vmatpush1.msra.mxu0 0.0
    %775 = vmatprep.subr.mxu0 0.0
    %776 = vmatpush1.msra.mxu0 0.0
    %777 = vmatprep.subr.mxu0 0.0
    %778 = vmatpush1.msra.mxu0 0.0
    %779 = vmatprep.subr.mxu0 0.0
    %780 = vmatpush1.msra.mxu0 0.0
    %781 = vmatprep.subr.mxu0 0.0
    %782 = vmatpush1.msra.mxu0 0.0
    %783 = vmatprep.subr.mxu0 0.0
    %784 = vmatpush1.msra.mxu0 0.0
    %785 = vmatprep.subr.mxu0 0.0
    %786 = vmatpush1.msra.mxu0 0.0
    %787 = vmatprep.subr.mxu0 0.0
    %788 = vmatpush1.msra.mxu0 0.0
    %789 = vmatprep.subr.mxu0 0.0
    %790 = vmatpush1.msra.mxu0 0.0
    %791 = vmatprep.subr.mxu0 0.0
    %792 = vmatpush1.msra.mxu0 0.0
    %793 = vmatprep.subr.mxu0 0.0
    %794 = vmatpush1.msra.mxu0 0.0
    %795 = vmatprep.subr.mxu0 0.0
    %796 = vmatpush1.msra.mxu0 0.0
    %797 = vmatprep.subr.mxu0 0.0
    %798 = vmatpush1.msra.mxu0 0.0
    %799 = vmatprep.subr.mxu0 0.0
    %800 = vmatpush1.msra.mxu0 0.0
    %801 = vmatprep.subr.mxu0 0.0
    %802 = vmatpush1.msra.mxu0 0.0
    %803 = vmatprep.mubr.f32.mxu0 0.0
    %804 = vmatmul.mubr.f32.gmra.mrb[0].mxu0 %v737
    %v805 = vpop.f32.mrb[0].mxu0
    %v806 = vadd.f32 0.0, %v805
    %v807 = vpop.f32.mrb[0].mxu0
    %808 = vdwg.mxu0
    %v810 = vrot.slane %v806, 2
    %v812 = vadd.f32 %v400, %v810
    %v813 = vxor.u32 %v812, 2147483648
    %v814 = vmul.f32 %v813, 1.442695
    %v815 = vpow.pop %v814
    %v816 = vadd.f32 %v815, 1.0
    %v817 = vrcp.pop %v816
    %v818 = vmul.f32 1.0, %v817
    %v819 = vtanh.pop %v812
    %v821 = vrot.slane %v721, 6
    %v823 = vmul.f32 %v818, %v821
    %825 = vrot.lane.b32.xlu0 %v819, 64
    %v826 = vpop.permute.xlu0 %825
    %v828 = vmul.f32 %v818, %v826
    %830 = vrot.lane.b32.xlu0 %v828, 32
    %v831 = vpop.permute.xlu0 %830
    %v833 = vadd.f32 %v823, %v831
    %v834 = vtanh.pop %v833
    %836 = vrot.lane.b32.xlu0 %v834, 64
    %v837 = vpop.permute.xlu0 %836
    %v839 = vmul.f32 %v818, %v837
    %841 = vrot.lane.b32.xlu0 %v839, 32
    %v842 = vpop.permute.xlu0 %841
    %vm844 = vcmask 261126
    %845 = vst.msk [vmem:[#allocation2] sm:$0xc0] %vm844, %v842
    %v846 = vrot.slane %v839, 6
    %847 = vrot.lane.b32.xlu0 %v846, 32
    %v848 = vpop.permute.xlu0 %847
    %v849 = vsel %vm408, %v848, 0
    %851 = vmatprep.subr.mxu0 0.0
    %852 = vmatpush1.msra.mxu0 %v277
    %853 = vmatprep.subr.mxu0 0.0
    %854 = vmatpush1.msra.mxu0 %v278
    %855 = vmatprep.subr.mxu0 0.0
    %856 = vmatpush1.msra.mxu0 %v279
    %857 = vmatprep.subr.mxu0 0.0
    %858 = vmatpush1.msra.mxu0 %v280
    %859 = vmatprep.subr.mxu0 0.0
    %860 = vmatpush1.msra.mxu0 0.0
    %861 = vmatprep.subr.mxu0 0.0
    %862 = vmatpush1.msra.mxu0 0.0
    %863 = vmatprep.subr.mxu0 0.0
    %864 = vmatpush1.msra.mxu0 0.0
    %865 = vmatprep.subr.mxu0 0.0
    %866 = vmatpush1.msra.mxu0 0.0
    %867 = vmatprep.subr.mxu0 0.0
    %868 = vmatpush1.msra.mxu0 0.0
    %869 = vmatprep.subr.mxu0 0.0
    %870 = vmatpush1.msra.mxu0 0.0
    %871 = vmatprep.subr.mxu0 0.0
    %872 = vmatpush1.msra.mxu0 0.0
    %873 = vmatprep.subr.mxu0 0.0
    %874 = vmatpush1.msra.mxu0 0.0
    %875 = vmatprep.subr.mxu0 0.0
    %876 = vmatpush1.msra.mxu0 0.0
    %877 = vmatprep.subr.mxu0 0.0
    %878 = vmatpush1.msra.mxu0 0.0
    %879 = vmatprep.subr.mxu0 0.0
    %880 = vmatpush1.msra.mxu0 0.0
    %881 = vmatprep.subr.mxu0 0.0
    %882 = vmatpush1.msra.mxu0 0.0
    %883 = vmatprep.subr.mxu0 0.0
    %884 = vmatpush1.msra.mxu0 0.0
    %885 = vmatprep.subr.mxu0 0.0
    %886 = vmatpush1.msra.mxu0 0.0
    %887 = vmatprep.subr.mxu0 0.0
    %888 = vmatpush1.msra.mxu0 0.0
    %889 = vmatprep.subr.mxu0 0.0
    %890 = vmatpush1.msra.mxu0 0.0
    %891 = vmatprep.subr.mxu0 0.0
    %892 = vmatpush1.msra.mxu0 0.0
    %893 = vmatprep.subr.mxu0 0.0
    %894 = vmatpush1.msra.mxu0 0.0
    %895 = vmatprep.subr.mxu0 0.0
    %896 = vmatpush1.msra.mxu0 0.0
    %897 = vmatprep.subr.mxu0 0.0
    %898 = vmatpush1.msra.mxu0 0.0
    %899 = vmatprep.subr.mxu0 0.0
    %900 = vmatpush1.msra.mxu0 0.0
    %901 = vmatprep.subr.mxu0 0.0
    %902 = vmatpush1.msra.mxu0 0.0
    %903 = vmatprep.subr.mxu0 0.0
    %904 = vmatpush1.msra.mxu0 0.0
    %905 = vmatprep.subr.mxu0 0.0
    %906 = vmatpush1.msra.mxu0 0.0
    %907 = vmatprep.subr.mxu0 0.0
    %908 = vmatpush1.msra.mxu0 0.0
    %909 = vmatprep.subr.mxu0 0.0
    %910 = vmatpush1.msra.mxu0 0.0
    %911 = vmatprep.subr.mxu0 0.0
    %912 = vmatpush1.msra.mxu0 0.0
    %913 = vmatprep.subr.mxu0 0.0
    %914 = vmatpush1.msra.mxu0 0.0
    %915 = vmatprep.mubr.f32.mxu0 0.0
    %916 = vmatmul.mubr.f32.gmra.mrb[0].mxu0 %v849
    %v917 = vpop.f32.mrb[0].mxu0
    %v918 = vadd.f32 0.0, %v917
    %v919 = vpop.f32.mrb[0].mxu0
    %920 = vdwg.mxu0
    %v921 = vadd.f32 %v405, %v918
    %v922 = vxor.u32 %v921, 2147483648
    %v923 = vmul.f32 %v922, 1.442695
    %v924 = vpow.pop %v923
    %v925 = vadd.f32 %v924, 1.0
    %v926 = vrcp.pop %v925
    %v927 = vmul.f32 1.0, %v926
    %v928 = vtanh.pop %v921
    %v930 = vrot.slane %v833, 6
    %v932 = vmul.f32 %v927, %v930
    %934 = vrot.lane.b32.xlu0 %v928, 64
    %v935 = vpop.permute.xlu0 %934
    %v937 = vmul.f32 %v927, %v935
    %939 = vrot.lane.b32.xlu0 %v937, 32
    %v940 = vpop.permute.xlu0 %939
    %v942 = vadd.f32 %v932, %v940
    %v943 = vtanh.pop %v942
    %945 = vrot.lane.b32.xlu0 %v943, 64
    %v946 = vpop.permute.xlu0 %945
    %v948 = vmul.f32 %v927, %v946
    %950 = vrot.lane.b32.xlu0 %v948, 32
    %v951 = vpop.permute.xlu0 %950
    %953 = vst.msk [vmem:[#allocation2 + $0x8] sm:$0x3] %vm511, %v951
    %v954 = vsel %vm408, %v951, 0
    %956 = vmatprep.subr.mxu0 0.0
    %957 = vmatpush1.msra.mxu0 %v277
    %958 = vmatprep.subr.mxu0 0.0
    %959 = vmatpush1.msra.mxu0 %v278
    %960 = vmatprep.subr.mxu0 0.0
    %961 = vmatpush1.msra.mxu0 %v279
    %962 = vmatprep.subr.mxu0 0.0
    %963 = vmatpush1.msra.mxu0 %v280
    %964 = vmatprep.subr.mxu0 0.0
    %965 = vmatpush1.msra.mxu0 0.0
    %966 = vmatprep.subr.mxu0 0.0
    %967 = vmatpush1.msra.mxu0 0.0
    %968 = vmatprep.subr.mxu0 0.0
    %969 = vmatpush1.msra.mxu0 0.0
    %970 = vmatprep.subr.mxu0 0.0
    %971 = vmatpush1.msra.mxu0 0.0
    %972 = vmatprep.subr.mxu0 0.0
    %973 = vmatpush1.msra.mxu0 0.0
    %974 = vmatprep.subr.mxu0 0.0
    %975 = vmatpush1.msra.mxu0 0.0
    %976 = vmatprep.subr.mxu0 0.0
    %977 = vmatpush1.msra.mxu0 0.0
    %978 = vmatprep.subr.mxu0 0.0
    %979 = vmatpush1.msra.mxu0 0.0
    %980 = vmatprep.subr.mxu0 0.0
    %981 = vmatpush1.msra.mxu0 0.0
    %982 = vmatprep.subr.mxu0 0.0
    %983 = vmatpush1.msra.mxu0 0.0
    %984 = vmatprep.subr.mxu0 0.0
    %985 = vmatpush1.msra.mxu0 0.0
    %986 = vmatprep.subr.mxu0 0.0
    %987 = vmatpush1.msra.mxu0 0.0
    %988 = vmatprep.subr.mxu0 0.0
    %989 = vmatpush1.msra.mxu0 0.0
    %990 = vmatprep.subr.mxu0 0.0
    %991 = vmatpush1.msra.mxu0 0.0
    %992 = vmatprep.subr.mxu0 0.0
    %993 = vmatpush1.msra.mxu0 0.0
    %994 = vmatprep.subr.mxu0 0.0
    %995 = vmatpush1.msra.mxu0 0.0
    %996 = vmatprep.subr.mxu0 0.0
    %997 = vmatpush1.msra.mxu0 0.0
    %998 = vmatprep.subr.mxu0 0.0
    %999 = vmatpush1.msra.mxu0 0.0
    %1000 = vmatprep.subr.mxu0 0.0
    %1001 = vmatpush1.msra.mxu0 0.0
    %1002 = vmatprep.subr.mxu0 0.0
    %1003 = vmatpush1.msra.mxu0 0.0
    %1004 = vmatprep.subr.mxu0 0.0
    %1005 = vmatpush1.msra.mxu0 0.0
    %1006 = vmatprep.subr.mxu0 0.0
    %1007 = vmatpush1.msra.mxu0 0.0
    %1008 = vmatprep.subr.mxu0 0.0
    %1009 = vmatpush1.msra.mxu0 0.0
    %1010 = vmatprep.subr.mxu0 0.0
    %1011 = vmatpush1.msra.mxu0 0.0
    %1012 = vmatprep.subr.mxu0 0.0
    %1013 = vmatpush1.msra.mxu0 0.0
    %1014 = vmatprep.subr.mxu0 0.0
    %1015 = vmatpush1.msra.mxu0 0.0
    %1016 = vmatprep.subr.mxu0 0.0
    %1017 = vmatpush1.msra.mxu0 0.0
    %1018 = vmatprep.subr.mxu0 0.0
    %1019 = vmatpush1.msra.mxu0 0.0
    %1020 = vmatprep.mubr.f32.mxu0 0.0
    %1021 = vmatmul.mubr.f32.gmra.mrb[0].mxu0 %v954
    %v1022 = vpop.f32.mrb[0].mxu0
    %v1023 = vadd.f32 0.0, %v1022
    %v1024 = vpop.f32.mrb[0].mxu0
    %1025 = vdwg.mxu0
    %v1027 = vrot.slane %v1023, 6
    %v1029 = vadd.f32 %v405, %v1027
    %v1030 = vxor.u32 %v1029, 2147483648
    %v1031 = vmul.f32 %v1030, 1.442695
    %v1032 = vpow.pop %v1031
    %v1033 = vadd.f32 %v1032, 1.0
    %v1034 = vrcp.pop %v1033
    %v1035 = vmul.f32 1.0, %v1034
    %v1036 = vtanh.pop %v1029
    %v1038 = vrot.slane %v942, 6
    %v1040 = vmul.f32 %v1035, %v1038
    %1042 = vrot.lane.b32.xlu0 %v1036, 64
    %v1043 = vpop.permute.xlu0 %1042
    %v1045 = vmul.f32 %v1035, %v1043
    %1047 = vrot.lane.b32.xlu0 %v1045, 32
    %v1048 = vpop.permute.xlu0 %1047
    %v1050 = vadd.f32 %v1040, %v1048
    %v1051 = vtanh.pop %v1050
    %1053 = vrot.lane.b32.xlu0 %v1051, 64
    %v1054 = vpop.permute.xlu0 %1053
    %v1056 = vmul.f32 %v1035, %v1054
    %1058 = vrot.lane.b32.xlu0 %v1056, 32
    %v1059 = vpop.permute.xlu0 %1058
    %1061 = vst.msk [vmem:[#allocation2 + $0x8] sm:$0xc] %vm620, %v1059
    %v1062 = vrot.slane %v1056, 2
    %1063 = vrot.lane.b32.xlu0 %v1062, 32
    %v1064 = vpop.permute.xlu0 %1063
    %v1065 = vsel %vm408, %v1064, 0
    %1067 = vmatprep.subr.mxu0 0.0
    %1068 = vmatpush1.msra.mxu0 %v277
    %1069 = vmatprep.subr.mxu0 0.0
    %1070 = vmatpush1.msra.mxu0 %v278
    %1071 = vmatprep.subr.mxu0 0.0
    %1072 = vmatpush1.msra.mxu0 %v279
    %1073 = vmatprep.subr.mxu0 0.0
    %1074 = vmatpush1.msra.mxu0 %v280
    %1075 = vmatprep.subr.mxu0 0.0
    %1076 = vmatpush1.msra.mxu0 0.0
    %1077 = vmatprep.subr.mxu0 0.0
    %1078 = vmatpush1.msra.mxu0 0.0
    %1079 = vmatprep.subr.mxu0 0.0
    %1080 = vmatpush1.msra.mxu0 0.0
    %1081 = vmatprep.subr.mxu0 0.0
    %1082 = vmatpush1.msra.mxu0 0.0
    %1083 = vmatprep.subr.mxu0 0.0
    %1084 = vmatpush1.msra.mxu0 0.0
    %1085 = vmatprep.subr.mxu0 0.0
    %1086 = vmatpush1.msra.mxu0 0.0
    %1087 = vmatprep.subr.mxu0 0.0
    %1088 = vmatpush1.msra.mxu0 0.0
    %1089 = vmatprep.subr.mxu0 0.0
    %1090 = vmatpush1.msra.mxu0 0.0
    %1091 = vmatprep.subr.mxu0 0.0
    %1092 = vmatpush1.msra.mxu0 0.0
    %1093 = vmatprep.subr.mxu0 0.0
    %1094 = vmatpush1.msra.mxu0 0.0
    %1095 = vmatprep.subr.mxu0 0.0
    %1096 = vmatpush1.msra.mxu0 0.0
    %1097 = vmatprep.subr.mxu0 0.0
    %1098 = vmatpush1.msra.mxu0 0.0
    %1099 = vmatprep.subr.mxu0 0.0
    %1100 = vmatpush1.msra.mxu0 0.0
    %1101 = vmatprep.subr.mxu0 0.0
    %1102 = vmatpush1.msra.mxu0 0.0
    %1103 = vmatprep.subr.mxu0 0.0
    %1104 = vmatpush1.msra.mxu0 0.0
    %1105 = vmatprep.subr.mxu0 0.0
    %1106 = vmatpush1.msra.mxu0 0.0
    %1107 = vmatprep.subr.mxu0 0.0
    %1108 = vmatpush1.msra.mxu0 0.0
    %1109 = vmatprep.subr.mxu0 0.0
    %1110 = vmatpush1.msra.mxu0 0.0
    %1111 = vmatprep.subr.mxu0 0.0
    %1112 = vmatpush1.msra.mxu0 0.0
    %1113 = vmatprep.subr.mxu0 0.0
    %1114 = vmatpush1.msra.mxu0 0.0
    %1115 = vmatprep.subr.mxu0 0.0
    %1116 = vmatpush1.msra.mxu0 0.0
    %1117 = vmatprep.subr.mxu0 0.0
    %1118 = vmatpush1.msra.mxu0 0.0
    %1119 = vmatprep.subr.mxu0 0.0
    %1120 = vmatpush1.msra.mxu0 0.0
    %1121 = vmatprep.subr.mxu0 0.0
    %1122 = vmatpush1.msra.mxu0 0.0
    %1123 = vmatprep.subr.mxu0 0.0
    %1124 = vmatpush1.msra.mxu0 0.0
    %1125 = vmatprep.subr.mxu0 0.0
    %1126 = vmatpush1.msra.mxu0 0.0
    %1127 = vmatprep.subr.mxu0 0.0
    %1128 = vmatpush1.msra.mxu0 0.0
    %1129 = vmatprep.subr.mxu0 0.0
    %1130 = vmatpush1.msra.mxu0 0.0
    %1131 = vmatprep.mubr.f32.mxu0 0.0
    %1132 = vmatmul.mubr.f32.gmra.mrb[0].mxu0 %v1065
    %v1133 = vpop.f32.mrb[0].mxu0
    %v1134 = vadd.f32 0.0, %v1133
    %v1135 = vpop.f32.mrb[0].mxu0
    %1136 = vdwg.mxu0
    %v1138 = vrot.slane %v1134, 4
    %v1140 = vadd.f32 %v405, %v1138
    %v1141 = vxor.u32 %v1140, 2147483648
    %v1142 = vmul.f32 %v1141, 1.442695
    %v1143 = vpow.pop %v1142
    %v1144 = vadd.f32 %v1143, 1.0
    %v1145 = vrcp.pop %v1144
    %v1146 = vmul.f32 1.0, %v1145
    %v1147 = vtanh.pop %v1140
    %v1149 = vrot.slane %v1050, 6
    %v1151 = vmul.f32 %v1146, %v1149
    %1153 = vrot.lane.b32.xlu0 %v1147, 64
    %v1154 = vpop.permute.xlu0 %1153
    %v1156 = vmul.f32 %v1146, %v1154
    %1158 = vrot.lane.b32.xlu0 %v1156, 32
    %v1159 = vpop.permute.xlu0 %1158
    %v1161 = vadd.f32 %v1151, %v1159
    %v1162 = vtanh.pop %v1161
    %1164 = vrot.lane.b32.xlu0 %v1162, 64
    %v1165 = vpop.permute.xlu0 %1164
    %v1167 = vmul.f32 %v1146, %v1165
    %1169 = vrot.lane.b32.xlu0 %v1167, 32
    %v1170 = vpop.permute.xlu0 %1169
    %1172 = vst.msk [vmem:[#allocation2 + $0x8] sm:$0x30] %vm732, %v1170
    %v1173 = vrot.slane %v1167, 4
    %1174 = vrot.lane.b32.xlu0 %v1173, 32
    %v1175 = vpop.permute.xlu0 %1174
    %v1176 = vsel %vm408, %v1175, 0
    %1178 = vmatprep.subr.mxu0 0.0
    %1179 = vmatpush1.msra.mxu0 %v277
    %1180 = vmatprep.subr.mxu0 0.0
    %1181 = vmatpush1.msra.mxu0 %v278
    %1182 = vmatprep.subr.mxu0 0.0
    %1183 = vmatpush1.msra.mxu0 %v279
    %1184 = vmatprep.subr.mxu0 0.0
    %1185 = vmatpush1.msra.mxu0 %v280
    %1186 = vmatprep.subr.mxu0 0.0
    %1187 = vmatpush1.msra.mxu0 0.0
    %1188 = vmatprep.subr.mxu0 0.0
    %1189 = vmatpush1.msra.mxu0 0.0
    %1190 = vmatprep.subr.mxu0 0.0
    %1191 = vmatpush1.msra.mxu0 0.0
    %1192 = vmatprep.subr.mxu0 0.0
    %1193 = vmatpush1.msra.mxu0 0.0
    %1194 = vmatprep.subr.mxu0 0.0
    %1195 = vmatpush1.msra.mxu0 0.0
    %1196 = vmatprep.subr.mxu0 0.0
    %1197 = vmatpush1.msra.mxu0 0.0
    %1198 = vmatprep.subr.mxu0 0.0
    %1199 = vmatpush1.msra.mxu0 0.0
    %1200 = vmatprep.subr.mxu0 0.0
    %1201 = vmatpush1.msra.mxu0 0.0
    %1202 = vmatprep.subr.mxu0 0.0
    %1203 = vmatpush1.msra.mxu0 0.0
    %1204 = vmatprep.subr.mxu0 0.0
    %1205 = vmatpush1.msra.mxu0 0.0
    %1206 = vmatprep.subr.mxu0 0.0
    %1207 = vmatpush1.msra.mxu0 0.0
    %1208 = vmatprep.subr.mxu0 0.0
    %1209 = vmatpush1.msra.mxu0 0.0
    %1210 = vmatprep.subr.mxu0 0.0
    %1211 = vmatpush1.msra.mxu0 0.0
    %1212 = vmatprep.subr.mxu0 0.0
    %1213 = vmatpush1.msra.mxu0 0.0
    %1214 = vmatprep.subr.mxu0 0.0
    %1215 = vmatpush1.msra.mxu0 0.0
    %1216 = vmatprep.subr.mxu0 0.0
    %1217 = vmatpush1.msra.mxu0 0.0
    %1218 = vmatprep.subr.mxu0 0.0
    %1219 = vmatpush1.msra.mxu0 0.0
    %1220 = vmatprep.subr.mxu0 0.0
    %1221 = vmatpush1.msra.mxu0 0.0
    %1222 = vmatprep.subr.mxu0 0.0
    %1223 = vmatpush1.msra.mxu0 0.0
    %1224 = vmatprep.subr.mxu0 0.0
    %1225 = vmatpush1.msra.mxu0 0.0
    %1226 = vmatprep.subr.mxu0 0.0
    %1227 = vmatpush1.msra.mxu0 0.0
    %1228 = vmatprep.subr.mxu0 0.0
    %1229 = vmatpush1.msra.mxu0 0.0
    %1230 = vmatprep.subr.mxu0 0.0
    %1231 = vmatpush1.msra.mxu0 0.0
    %1232 = vmatprep.subr.mxu0 0.0
    %1233 = vmatpush1.msra.mxu0 0.0
    %1234 = vmatprep.subr.mxu0 0.0
    %1235 = vmatpush1.msra.mxu0 0.0
    %1236 = vmatprep.subr.mxu0 0.0
    %1237 = vmatpush1.msra.mxu0 0.0
    %1238 = vmatprep.subr.mxu0 0.0
    %1239 = vmatpush1.msra.mxu0 0.0
    %1240 = vmatprep.subr.mxu0 0.0
    %1241 = vmatpush1.msra.mxu0 0.0
    %1242 = vmatprep.mubr.f32.mxu0 0.0
    %1243 = vmatmul.mubr.f32.gmra.mrb[0].mxu0 %v1176
    %v1244 = vpop.f32.mrb[0].mxu0
    %v1245 = vadd.f32 0.0, %v1244
    %v1246 = vpop.f32.mrb[0].mxu0
    %1247 = vdwg.mxu0
    %v1249 = vrot.slane %v1245, 2
    %v1251 = vadd.f32 %v405, %v1249
    %v1252 = vxor.u32 %v1251, 2147483648
    %v1253 = vmul.f32 %v1252, 1.442695
    %v1254 = vpow.pop %v1253
    %v1255 = vadd.f32 %v1254, 1.0
    %v1256 = vrcp.pop %v1255
    %v1257 = vmul.f32 1.0, %v1256
    %v1258 = vtanh.pop %v1251
    %v1260 = vrot.slane %v1161, 6
    %v1262 = vmul.f32 %v1257, %v1260
    %1264 = vrot.lane.b32.xlu0 %v1258, 64
    %v1265 = vpop.permute.xlu0 %1264
    %v1267 = vmul.f32 %v1257, %v1265
    %1269 = vrot.lane.b32.xlu0 %v1267, 32
    %v1270 = vpop.permute.xlu0 %1269
    %v1272 = vadd.f32 %v1262, %v1270
    %v1273 = vtanh.pop %v1272
    %1275 = vrot.lane.b32.xlu0 %v1273, 64
    %v1276 = vpop.permute.xlu0 %1275
    %v1278 = vmul.f32 %v1257, %v1276
    %1280 = vrot.lane.b32.xlu0 %v1278, 32
    %v1281 = vpop.permute.xlu0 %1280
    %1283 = vst.msk [vmem:[#allocation2 + $0x8] sm:$0xc0] %vm844, %v1281
    %v1284 = vld [vmem:[#allocation6 + $0x40] sm:$0xff]
    %v1285 = vld [vmem:[#allocation6 + $0x48] sm:$0xff]
    %v1286 = vld [vmem:[#allocation6 + $0x50] sm:$0xff]
    %v1287 = vld [vmem:[#allocation6 + $0x58] sm:$0xff]
    %v1288 = vld [vmem:[#allocation6 + $0x60] sm:$0xff]
    %v1289 = vld [vmem:[#allocation6 + $0x68] sm:$0xff]
    %v1290 = vld [vmem:[#allocation6 + $0x70] sm:$0xff]
    %v1291 = vld [vmem:[#allocation6 + $0x78] sm:$0xff]
    %v1292 = vld [vmem:[#allocation8 + $0x1] sm:$0x1]
    %v1293 = vld [vmem:[#allocation2] sm:$0xff]
    %v1294 = vld [vmem:[#allocation2 + $0x8] sm:$0xff]
    %v1295 = vlaneseq
    %v1296 = vshrl.u32 %v1295, 7
    %v1297 = vsub.s32 0, %v1296
    %v1298 = vrot.slane %v1292, %v1297
    %v1300 = vsel %vm408, %v1293, 0
    %v1303 = vsel %vm408, %v1294, 0
    %1305 = vmatprep.subr.mxu0 0.0
    %1306 = vmatpush1.msra.mxu0 %v1284
    %1307 = vmatprep.subr.mxu0 0.0
    %1308 = vmatpush1.msra.mxu0 %v1285
    %1309 = vmatprep.subr.mxu0 0.0
    %1310 = vmatpush1.msra.mxu0 %v1286
    %1311 = vmatprep.subr.mxu0 0.0
    %1312 = vmatpush1.msra.mxu0 %v1287
    %1313 = vmatprep.subr.mxu0 0.0
    %1314 = vmatpush1.msra.mxu0 0.0
    %1315 = vmatprep.subr.mxu0 0.0
    %1316 = vmatpush1.msra.mxu0 0.0
    %1317 = vmatprep.subr.mxu0 0.0
    %1318 = vmatpush1.msra.mxu0 0.0
    %1319 = vmatprep.subr.mxu0 0.0
    %1320 = vmatpush1.msra.mxu0 0.0
    %1321 = vmatprep.subr.mxu0 0.0
    %1322 = vmatpush1.msra.mxu0 0.0
    %1323 = vmatprep.subr.mxu0 0.0
    %1324 = vmatpush1.msra.mxu0 0.0
    %1325 = vmatprep.subr.mxu0 0.0
    %1326 = vmatpush1.msra.mxu0 0.0
    %1327 = vmatprep.subr.mxu0 0.0
    %1328 = vmatpush1.msra.mxu0 0.0
    %1329 = vmatprep.subr.mxu0 0.0
    %1330 = vmatpush1.msra.mxu0 0.0
    %1331 = vmatprep.subr.mxu0 0.0
    %1332 = vmatpush1.msra.mxu0 0.0
    %1333 = vmatprep.subr.mxu0 0.0
    %1334 = vmatpush1.msra.mxu0 0.0
    %1335 = vmatprep.subr.mxu0 0.0
    %1336 = vmatpush1.msra.mxu0 0.0
    %1337 = vmatprep.subr.mxu0 0.0
    %1338 = vmatpush1.msra.mxu0 0.0
    %1339 = vmatprep.subr.mxu0 0.0
    %1340 = vmatpush1.msra.mxu0 0.0
    %1341 = vmatprep.subr.mxu0 0.0
    %1342 = vmatpush1.msra.mxu0 0.0
    %1343 = vmatprep.subr.mxu0 0.0
    %1344 = vmatpush1.msra.mxu0 0.0
    %1345 = vmatprep.subr.mxu0 0.0
    %1346 = vmatpush1.msra.mxu0 0.0
    %1347 = vmatprep.subr.mxu0 0.0
    %1348 = vmatpush1.msra.mxu0 0.0
    %1349 = vmatprep.subr.mxu0 0.0
    %1350 = vmatpush1.msra.mxu0 0.0
    %1351 = vmatprep.subr.mxu0 0.0
    %1352 = vmatpush1.msra.mxu0 0.0
    %1353 = vmatprep.subr.mxu0 0.0
    %1354 = vmatpush1.msra.mxu0 0.0
    %1355 = vmatprep.subr.mxu0 0.0
    %1356 = vmatpush1.msra.mxu0 0.0
    %1357 = vmatprep.subr.mxu0 0.0
    %1358 = vmatpush1.msra.mxu0 0.0
    %1359 = vmatprep.subr.mxu0 0.0
    %1360 = vmatpush1.msra.mxu0 0.0
    %1361 = vmatprep.subr.mxu0 0.0
    %1362 = vmatpush1.msra.mxu0 0.0
    %1363 = vmatprep.subr.mxu0 0.0
    %1364 = vmatpush1.msra.mxu0 0.0
    %1365 = vmatprep.subr.mxu0 0.0
    %1366 = vmatpush1.msra.mxu0 0.0
    %1367 = vmatprep.subr.mxu0 0.0
    %1368 = vmatpush1.msra.mxu0 0.0
    %1369 = vmatprep.mubr.f32.mxu0 0.0
    %1370 = vmatmul.mubr.f32.gmra.mrb[0].mxu0 %v1300
    %v1371 = vpop.f32.mrb[0].mxu0
    %v1372 = vadd.f32 %v1298, %v1371
    %v1373 = vpop.f32.mrb[0].mxu0
    %1374 = vmatprep.mubr.f32.mxu0 0.0
    %1375 = vmatmul.mubr.f32.gmra.mrb[0].mxu0 %v1303
    %v1376 = vpop.f32.mrb[0].mxu0
    %v1377 = vadd.f32 %v1298, %v1376
    %v1378 = vpop.f32.mrb[0].mxu0
    %1379 = vdwg.mxu0
    %1380 = vmatprep.subr.mxu0 0.0
    %1381 = vmatpush1.msra.mxu0 %v1288
    %1382 = vmatprep.subr.mxu0 0.0
    %1383 = vmatpush1.msra.mxu0 %v1289
    %1384 = vmatprep.subr.mxu0 0.0
    %1385 = vmatpush1.msra.mxu0 %v1290
    %1386 = vmatprep.subr.mxu0 0.0
    %1387 = vmatpush1.msra.mxu0 %v1291
    %1388 = vmatprep.subr.mxu0 0.0
    %1389 = vmatpush1.msra.mxu0 0.0
    %1390 = vmatprep.subr.mxu0 0.0
    %1391 = vmatpush1.msra.mxu0 0.0
    %1392 = vmatprep.subr.mxu0 0.0
    %1393 = vmatpush1.msra.mxu0 0.0
    %1394 = vmatprep.subr.mxu0 0.0
    %1395 = vmatpush1.msra.mxu0 0.0
    %1396 = vmatprep.subr.mxu0 0.0
    %1397 = vmatpush1.msra.mxu0 0.0
    %1398 = vmatprep.subr.mxu0 0.0
    %1399 = vmatpush1.msra.mxu0 0.0
    %1400 = vmatprep.subr.mxu0 0.0
    %1401 = vmatpush1.msra.mxu0 0.0
    %1402 = vmatprep.subr.mxu0 0.0
    %1403 = vmatpush1.msra.mxu0 0.0
    %1404 = vmatprep.subr.mxu0 0.0
    %1405 = vmatpush1.msra.mxu0 0.0
    %1406 = vmatprep.subr.mxu0 0.0
    %1407 = vmatpush1.msra.mxu0 0.0
    %1408 = vmatprep.subr.mxu0 0.0
    %1409 = vmatpush1.msra.mxu0 0.0
    %1410 = vmatprep.subr.mxu0 0.0
    %1411 = vmatpush1.msra.mxu0 0.0
    %1412 = vmatprep.subr.mxu0 0.0
    %1413 = vmatpush1.msra.mxu0 0.0
    %1414 = vmatprep.subr.mxu0 0.0
    %1415 = vmatpush1.msra.mxu0 0.0
    %1416 = vmatprep.subr.mxu0 0.0
    %1417 = vmatpush1.msra.mxu0 0.0
    %1418 = vmatprep.subr.mxu0 0.0
    %1419 = vmatpush1.msra.mxu0 0.0
    %1420 = vmatprep.subr.mxu0 0.0
    %1421 = vmatpush1.msra.mxu0 0.0
    %1422 = vmatprep.subr.mxu0 0.0
    %1423 = vmatpush1.msra.mxu0 0.0
    %1424 = vmatprep.subr.mxu0 0.0
    %1425 = vmatpush1.msra.mxu0 0.0
    %1426 = vmatprep.subr.mxu0 0.0
    %1427 = vmatpush1.msra.mxu0 0.0
    %1428 = vmatprep.subr.mxu0 0.0
    %1429 = vmatpush1.msra.mxu0 0.0
    %1430 = vmatprep.subr.mxu0 0.0
    %1431 = vmatpush1.msra.mxu0 0.0
    %1432 = vmatprep.subr.mxu0 0.0
    %1433 = vmatpush1.msra.mxu0 0.0
    %1434 = vmatprep.subr.mxu0 0.0
    %1435 = vmatpush1.msra.mxu0 0.0
    %1436 = vmatprep.subr.mxu0 0.0
    %1437 = vmatpush1.msra.mxu0 0.0
    %1438 = vmatprep.subr.mxu0 0.0
    %1439 = vmatpush1.msra.mxu0 0.0
    %1440 = vmatprep.subr.mxu0 0.0
    %1441 = vmatpush1.msra.mxu0 0.0
    %1442 = vmatprep.subr.mxu0 0.0
    %1443 = vmatpush1.msra.mxu0 0.0
    %1444 = vmatprep.mubr.f32.mxu0 0.0
    %1445 = vmatmul.mubr.f32.gmra.mrb[0].mxu0 %v410
    %v1446 = vpop.f32.mrb[0].mxu0
    %v1447 = vadd.f32 0.0, %v1446
    %v1448 = vpop.f32.mrb[0].mxu0
    %1449 = vdwg.mxu0
    %v1450 = vadd.f32 %v1372, %v1447
    %v1451 = vxor.u32 %v1450, 2147483648
    %v1452 = vmul.f32 %v1451, 1.442695
    %v1453 = vpow.pop %v1452
    %v1454 = vadd.f32 %v1453, 1.0
    %v1455 = vrcp.pop %v1454
    %v1456 = vmul.f32 1.0, %v1455
    %v1457 = vtanh.pop %v1450
    %v1458 = vmul.f32 %v1456, 0.0
    %1460 = vrot.lane.b32.xlu0 %v1457, 64
    %v1461 = vpop.permute.xlu0 %1460
    %v1463 = vmul.f32 %v1456, %v1461
    %1465 = vrot.lane.b32.xlu0 %v1463, 32
    %v1466 = vpop.permute.xlu0 %1465
    %v1468 = vadd.f32 %v1458, %v1466
    %v1469 = vtanh.pop %v1468
    %1471 = vrot.lane.b32.xlu0 %v1469, 64
    %v1472 = vpop.permute.xlu0 %1471
    %v1474 = vmul.f32 %v1456, %v1472
    %1476 = vrot.lane.b32.xlu0 %v1474, 32
    %v1477 = vpop.permute.xlu0 %1476
    %1479 = vst.msk [vmem:[#allocation2] sm:$0x3] %vm511, %v1477
    %v1480 = vsel %vm408, %v1477, 0
    %1482 = vmatprep.subr.mxu0 0.0
    %1483 = vmatpush1.msra.mxu0 %v1288
    %1484 = vmatprep.subr.mxu0 0.0
    %1485 = vmatpush1.msra.mxu0 %v1289
    %1486 = vmatprep.subr.mxu0 0.0
    %1487 = vmatpush1.msra.mxu0 %v1290
    %1488 = vmatprep.subr.mxu0 0.0
    %1489 = vmatpush1.msra.mxu0 %v1291
    %1490 = vmatprep.subr.mxu0 0.0
    %1491 = vmatpush1.msra.mxu0 0.0
    %1492 = vmatprep.subr.mxu0 0.0
    %1493 = vmatpush1.msra.mxu0 0.0
    %1494 = vmatprep.subr.mxu0 0.0
    %1495 = vmatpush1.msra.mxu0 0.0
    %1496 = vmatprep.subr.mxu0 0.0
    %1497 = vmatpush1.msra.mxu0 0.0
    %1498 = vmatprep.subr.mxu0 0.0
    %1499 = vmatpush1.msra.mxu0 0.0
    %1500 = vmatprep.subr.mxu0 0.0
    %1501 = vmatpush1.msra.mxu0 0.0
    %1502 = vmatprep.subr.mxu0 0.0
    %1503 = vmatpush1.msra.mxu0 0.0
    %1504 = vmatprep.subr.mxu0 0.0
    %1505 = vmatpush1.msra.mxu0 0.0
    %1506 = vmatprep.subr.mxu0 0.0
    %1507 = vmatpush1.msra.mxu0 0.0
    %1508 = vmatprep.subr.mxu0 0.0
    %1509 = vmatpush1.msra.mxu0 0.0
    %1510 = vmatprep.subr.mxu0 0.0
    %1511 = vmatpush1.msra.mxu0 0.0
    %1512 = vmatprep.subr.mxu0 0.0
    %1513 = vmatpush1.msra.mxu0 0.0
    %1514 = vmatprep.subr.mxu0 0.0
    %1515 = vmatpush1.msra.mxu0 0.0
    %1516 = vmatprep.subr.mxu0 0.0
    %1517 = vmatpush1.msra.mxu0 0.0
    %1518 = vmatprep.subr.mxu0 0.0
    %1519 = vmatpush1.msra.mxu0 0.0
    %1520 = vmatprep.subr.mxu0 0.0
    %1521 = vmatpush1.msra.mxu0 0.0
    %1522 = vmatprep.subr.mxu0 0.0
    %1523 = vmatpush1.msra.mxu0 0.0
    %1524 = vmatprep.subr.mxu0 0.0
    %1525 = vmatpush1.msra.mxu0 0.0
    %1526 = vmatprep.subr.mxu0 0.0
    %1527 = vmatpush1.msra.mxu0 0.0
    %1528 = vmatprep.subr.mxu0 0.0
    %1529 = vmatpush1.msra.mxu0 0.0
    %1530 = vmatprep.subr.mxu0 0.0
    %1531 = vmatpush1.msra.mxu0 0.0
    %1532 = vmatprep.subr.mxu0 0.0
    %1533 = vmatpush1.msra.mxu0 0.0
    %1534 = vmatprep.subr.mxu0 0.0
    %1535 = vmatpush1.msra.mxu0 0.0
    %1536 = vmatprep.subr.mxu0 0.0
    %1537 = vmatpush1.msra.mxu0 0.0
    %1538 = vmatprep.subr.mxu0 0.0
    %1539 = vmatpush1.msra.mxu0 0.0
    %1540 = vmatprep.subr.mxu0 0.0
    %1541 = vmatpush1.msra.mxu0 0.0
    %1542 = vmatprep.subr.mxu0 0.0
    %1543 = vmatpush1.msra.mxu0 0.0
    %1544 = vmatprep.subr.mxu0 0.0
    %1545 = vmatpush1.msra.mxu0 0.0
    %1546 = vmatprep.mubr.f32.mxu0 0.0
    %1547 = vmatmul.mubr.f32.gmra.mrb[0].mxu0 %v1480
    %v1548 = vpop.f32.mrb[0].mxu0
    %v1549 = vadd.f32 0.0, %v1548
    %v1550 = vpop.f32.mrb[0].mxu0
    %1551 = vdwg.mxu0
    %v1553 = vrot.slane %v1549, 6
    %v1555 = vadd.f32 %v1372, %v1553
    %v1556 = vxor.u32 %v1555, 2147483648
    %v1557 = vmul.f32 %v1556, 1.442695
    %v1558 = vpow.pop %v1557
    %v1559 = vadd.f32 %v1558, 1.0
    %v1560 = vrcp.pop %v1559
    %v1561 = vmul.f32 1.0, %v1560
    %v1562 = vtanh.pop %v1555
    %v1564 = vrot.slane %v1468, 6
    %v1566 = vmul.f32 %v1561, %v1564
    %1568 = vrot.lane.b32.xlu0 %v1562, 64
    %v1569 = vpop.permute.xlu0 %1568
    %v1571 = vmul.f32 %v1561, %v1569
    %1573 = vrot.lane.b32.xlu0 %v1571, 32
    %v1574 = vpop.permute.xlu0 %1573
    %v1576 = vadd.f32 %v1566, %v1574
    %v1577 = vtanh.pop %v1576
    %1579 = vrot.lane.b32.xlu0 %v1577, 64
    %v1580 = vpop.permute.xlu0 %1579
    %v1582 = vmul.f32 %v1561, %v1580
    %1584 = vrot.lane.b32.xlu0 %v1582, 32
    %v1585 = vpop.permute.xlu0 %1584
    %1587 = vst.msk [vmem:[#allocation2] sm:$0xc] %vm620, %v1585
    %v1588 = vrot.slane %v1582, 2
    %1589 = vrot.lane.b32.xlu0 %v1588, 32
    %v1590 = vpop.permute.xlu0 %1589
    %v1591 = vsel %vm408, %v1590, 0
    %1593 = vmatprep.subr.mxu0 0.0
    %1594 = vmatpush1.msra.mxu0 %v1288
    %1595 = vmatprep.subr.mxu0 0.0
    %1596 = vmatpush1.msra.mxu0 %v1289
    %1597 = vmatprep.subr.mxu0 0.0
    %1598 = vmatpush1.msra.mxu0 %v1290
    %1599 = vmatprep.subr.mxu0 0.0
    %1600 = vmatpush1.msra.mxu0 %v1291
    %1601 = vmatprep.subr.mxu0 0.0
    %1602 = vmatpush1.msra.mxu0 0.0
    %1603 = vmatprep.subr.mxu0 0.0
    %1604 = vmatpush1.msra.mxu0 0.0
    %1605 = vmatprep.subr.mxu0 0.0
    %1606 = vmatpush1.msra.mxu0 0.0
    %1607 = vmatprep.subr.mxu0 0.0
    %1608 = vmatpush1.msra.mxu0 0.0
    %1609 = vmatprep.subr.mxu0 0.0
    %1610 = vmatpush1.msra.mxu0 0.0
    %1611 = vmatprep.subr.mxu0 0.0
    %1612 = vmatpush1.msra.mxu0 0.0
    %1613 = vmatprep.subr.mxu0 0.0
    %1614 = vmatpush1.msra.mxu0 0.0
    %1615 = vmatprep.subr.mxu0 0.0
    %1616 = vmatpush1.msra.mxu0 0.0
    %1617 = vmatprep.subr.mxu0 0.0
    %1618 = vmatpush1.msra.mxu0 0.0
    %1619 = vmatprep.subr.mxu0 0.0
    %1620 = vmatpush1.msra.mxu0 0.0
    %1621 = vmatprep.subr.mxu0 0.0
    %1622 = vmatpush1.msra.mxu0 0.0
    %1623 = vmatprep.subr.mxu0 0.0
    %1624 = vmatpush1.msra.mxu0 0.0
    %1625 = vmatprep.subr.mxu0 0.0
    %1626 = vmatpush1.msra.mxu0 0.0
    %1627 = vmatprep.subr.mxu0 0.0
    %1628 = vmatpush1.msra.mxu0 0.0
    %1629 = vmatprep.subr.mxu0 0.0
    %1630 = vmatpush1.msra.mxu0 0.0
    %1631 = vmatprep.subr.mxu0 0.0
    %1632 = vmatpush1.msra.mxu0 0.0
    %1633 = vmatprep.subr.mxu0 0.0
    %1634 = vmatpush1.msra.mxu0 0.0
    %1635 = vmatprep.subr.mxu0 0.0
    %1636 = vmatpush1.msra.mxu0 0.0
    %1637 = vmatprep.subr.mxu0 0.0
    %1638 = vmatpush1.msra.mxu0 0.0
    %1639 = vmatprep.subr.mxu0 0.0
    %1640 = vmatpush1.msra.mxu0 0.0
    %1641 = vmatprep.subr.mxu0 0.0
    %1642 = vmatpush1.msra.mxu0 0.0
    %1643 = vmatprep.subr.mxu0 0.0
    %1644 = vmatpush1.msra.mxu0 0.0
    %1645 = vmatprep.subr.mxu0 0.0
    %1646 = vmatpush1.msra.mxu0 0.0
    %1647 = vmatprep.subr.mxu0 0.0
    %1648 = vmatpush1.msra.mxu0 0.0
    %1649 = vmatprep.subr.mxu0 0.0
    %1650 = vmatpush1.msra.mxu0 0.0
    %1651 = vmatprep.subr.mxu0 0.0
    %1652 = vmatpush1.msra.mxu0 0.0
    %1653 = vmatprep.subr.mxu0 0.0
    %1654 = vmatpush1.msra.mxu0 0.0
    %1655 = vmatprep.subr.mxu0 0.0
    %1656 = vmatpush1.msra.mxu0 0.0
    %1657 = vmatprep.mubr.f32.mxu0 0.0
    %1658 = vmatmul.mubr.f32.gmra.mrb[0].mxu0 %v1591
    %v1659 = vpop.f32.mrb[0].mxu0
    %v1660 = vadd.f32 0.0, %v1659
    %v1661 = vpop.f32.mrb[0].mxu0
    %1662 = vdwg.mxu0
    %v1664 = vrot.slane %v1660, 4
    %v1666 = vadd.f32 %v1372, %v1664
    %v1667 = vxor.u32 %v1666, 2147483648
    %v1668 = vmul.f32 %v1667, 1.442695
    %v1669 = vpow.pop %v1668
    %v1670 = vadd.f32 %v1669, 1.0
    %v1671 = vrcp.pop %v1670
    %v1672 = vmul.f32 1.0, %v1671
    %v1673 = vtanh.pop %v1666
    %v1675 = vrot.slane %v1576, 6
    %v1677 = vmul.f32 %v1672, %v1675
    %1679 = vrot.lane.b32.xlu0 %v1673, 64
    %v1680 = vpop.permute.xlu0 %1679
    %v1682 = vmul.f32 %v1672, %v1680
    %1684 = vrot.lane.b32.xlu0 %v1682, 32
    %v1685 = vpop.permute.xlu0 %1684
    %v1687 = vadd.f32 %v1677, %v1685
    %v1688 = vtanh.pop %v1687
    %1690 = vrot.lane.b32.xlu0 %v1688, 64
    %v1691 = vpop.permute.xlu0 %1690
    %v1693 = vmul.f32 %v1672, %v1691
    %1695 = vrot.lane.b32.xlu0 %v1693, 32
    %v1696 = vpop.permute.xlu0 %1695
    %1698 = vst.msk [vmem:[#allocation2] sm:$0x30] %vm732, %v1696
    %v1699 = vrot.slane %v1693, 4
    %1700 = vrot.lane.b32.xlu0 %v1699, 32
    %v1701 = vpop.permute.xlu0 %1700
    %v1702 = vsel %vm408, %v1701, 0
    %1704 = vmatprep.subr.mxu0 0.0
    %1705 = vmatpush1.msra.mxu0 %v1288
    %1706 = vmatprep.subr.mxu0 0.0
    %1707 = vmatpush1.msra.mxu0 %v1289
    %1708 = vmatprep.subr.mxu0 0.0
    %1709 = vmatpush1.msra.mxu0 %v1290
    %1710 = vmatprep.subr.mxu0 0.0
    %1711 = vmatpush1.msra.mxu0 %v1291
    %1712 = vmatprep.subr.mxu0 0.0
    %1713 = vmatpush1.msra.mxu0 0.0
    %1714 = vmatprep.subr.mxu0 0.0
    %1715 = vmatpush1.msra.mxu0 0.0
    %1716 = vmatprep.subr.mxu0 0.0
    %1717 = vmatpush1.msra.mxu0 0.0
    %1718 = vmatprep.subr.mxu0 0.0
    %1719 = vmatpush1.msra.mxu0 0.0
    %1720 = vmatprep.subr.mxu0 0.0
    %1721 = vmatpush1.msra.mxu0 0.0
    %1722 = vmatprep.subr.mxu0 0.0
    %1723 = vmatpush1.msra.mxu0 0.0
    %1724 = vmatprep.subr.mxu0 0.0
    %1725 = vmatpush1.msra.mxu0 0.0
    %1726 = vmatprep.subr.mxu0 0.0
    %1727 = vmatpush1.msra.mxu0 0.0
    %1728 = vmatprep.subr.mxu0 0.0
    %1729 = vmatpush1.msra.mxu0 0.0
    %1730 = vmatprep.subr.mxu0 0.0
    %1731 = vmatpush1.msra.mxu0 0.0
    %1732 = vmatprep.subr.mxu0 0.0
    %1733 = vmatpush1.msra.mxu0 0.0
    %1734 = vmatprep.subr.mxu0 0.0
    %1735 = vmatpush1.msra.mxu0 0.0
    %1736 = vmatprep.subr.mxu0 0.0
    %1737 = vmatpush1.msra.mxu0 0.0
    %1738 = vmatprep.subr.mxu0 0.0
    %1739 = vmatpush1.msra.mxu0 0.0
    %1740 = vmatprep.subr.mxu0 0.0
    %1741 = vmatpush1.msra.mxu0 0.0
    %1742 = vmatprep.subr.mxu0 0.0
    %1743 = vmatpush1.msra.mxu0 0.0
    %1744 = vmatprep.subr.mxu0 0.0
    %1745 = vmatpush1.msra.mxu0 0.0
    %1746 = vmatprep.subr.mxu0 0.0
    %1747 = vmatpush1.msra.mxu0 0.0
    %1748 = vmatprep.subr.mxu0 0.0
    %1749 = vmatpush1.msra.mxu0 0.0
    %1750 = vmatprep.subr.mxu0 0.0
    %1751 = vmatpush1.msra.mxu0 0.0
    %1752 = vmatprep.subr.mxu0 0.0
    %1753 = vmatpush1.msra.mxu0 0.0
    %1754 = vmatprep.subr.mxu0 0.0
    %1755 = vmatpush1.msra.mxu0 0.0
    %1756 = vmatprep.subr.mxu0 0.0
    %1757 = vmatpush1.msra.mxu0 0.0
    %1758 = vmatprep.subr.mxu0 0.0
    %1759 = vmatpush1.msra.mxu0 0.0
    %1760 = vmatprep.subr.mxu0 0.0
    %1761 = vmatpush1.msra.mxu0 0.0
    %1762 = vmatprep.subr.mxu0 0.0
    %1763 = vmatpush1.msra.mxu0 0.0
    %1764 = vmatprep.subr.mxu0 0.0
    %1765 = vmatpush1.msra.mxu0 0.0
    %1766 = vmatprep.subr.mxu0 0.0
    %1767 = vmatpush1.msra.mxu0 0.0
    %1768 = vmatprep.mubr.f32.mxu0 0.0
    %1769 = vmatmul.mubr.f32.gmra.mrb[0].mxu0 %v1702
    %v1770 = vpop.f32.mrb[0].mxu0
    %v1771 = vadd.f32 0.0, %v1770
    %v1772 = vpop.f32.mrb[0].mxu0
    %1773 = vdwg.mxu0
    %v1775 = vrot.slane %v1771, 2
    %v1777 = vadd.f32 %v1372, %v1775
    %v1778 = vxor.u32 %v1777, 2147483648
    %v1779 = vmul.f32 %v1778, 1.442695
    %v1780 = vpow.pop %v1779
    %v1781 = vadd.f32 %v1780, 1.0
    %v1782 = vrcp.pop %v1781
    %v1783 = vmul.f32 1.0, %v1782
    %v1784 = vtanh.pop %v1777
    %v1786 = vrot.slane %v1687, 6
    %v1788 = vmul.f32 %v1783, %v1786
    %1790 = vrot.lane.b32.xlu0 %v1784, 64
    %v1791 = vpop.permute.xlu0 %1790
    %v1793 = vmul.f32 %v1783, %v1791
    %1795 = vrot.lane.b32.xlu0 %v1793, 32
    %v1796 = vpop.permute.xlu0 %1795
    %v1798 = vadd.f32 %v1788, %v1796
    %v1799 = vtanh.pop %v1798
    %1801 = vrot.lane.b32.xlu0 %v1799, 64
    %v1802 = vpop.permute.xlu0 %1801
    %v1804 = vmul.f32 %v1783, %v1802
    %1806 = vrot.lane.b32.xlu0 %v1804, 32
    %v1807 = vpop.permute.xlu0 %1806
    %1809 = vst.msk [vmem:[#allocation2] sm:$0xc0] %vm844, %v1807
    %v1810 = vrot.slane %v1804, 6
    %1811 = vrot.lane.b32.xlu0 %v1810, 32
    %v1812 = vpop.permute.xlu0 %1811
    %v1813 = vsel %vm408, %v1812, 0
    %1815 = vmatprep.subr.mxu0 0.0
    %1816 = vmatpush1.msra.mxu0 %v1288
    %1817 = vmatprep.subr.mxu0 0.0
    %1818 = vmatpush1.msra.mxu0 %v1289
    %1819 = vmatprep.subr.mxu0 0.0
    %1820 = vmatpush1.msra.mxu0 %v1290
    %1821 = vmatprep.subr.mxu0 0.0
    %1822 = vmatpush1.msra.mxu0 %v1291
    %1823 = vmatprep.subr.mxu0 0.0
    %1824 = vmatpush1.msra.mxu0 0.0
    %1825 = vmatprep.subr.mxu0 0.0
    %1826 = vmatpush1.msra.mxu0 0.0
    %1827 = vmatprep.subr.mxu0 0.0
    %1828 = vmatpush1.msra.mxu0 0.0
    %1829 = vmatprep.subr.mxu0 0.0
    %1830 = vmatpush1.msra.mxu0 0.0
    %1831 = vmatprep.subr.mxu0 0.0
    %1832 = vmatpush1.msra.mxu0 0.0
    %1833 = vmatprep.subr.mxu0 0.0
    %1834 = vmatpush1.msra.mxu0 0.0
    %1835 = vmatprep.subr.mxu0 0.0
    %1836 = vmatpush1.msra.mxu0 0.0
    %1837 = vmatprep.subr.mxu0 0.0
    %1838 = vmatpush1.msra.mxu0 0.0
    %1839 = vmatprep.subr.mxu0 0.0
    %1840 = vmatpush1.msra.mxu0 0.0
    %1841 = vmatprep.subr.mxu0 0.0
    %1842 = vmatpush1.msra.mxu0 0.0
    %1843 = vmatprep.subr.mxu0 0.0
    %1844 = vmatpush1.msra.mxu0 0.0
    %1845 = vmatprep.subr.mxu0 0.0
    %1846 = vmatpush1.msra.mxu0 0.0
    %1847 = vmatprep.subr.mxu0 0.0
    %1848 = vmatpush1.msra.mxu0 0.0
    %1849 = vmatprep.subr.mxu0 0.0
    %1850 = vmatpush1.msra.mxu0 0.0
    %1851 = vmatprep.subr.mxu0 0.0
    %1852 = vmatpush1.msra.mxu0 0.0
    %1853 = vmatprep.subr.mxu0 0.0
    %1854 = vmatpush1.msra.mxu0 0.0
    %1855 = vmatprep.subr.mxu0 0.0
    %1856 = vmatpush1.msra.mxu0 0.0
    %1857 = vmatprep.subr.mxu0 0.0
    %1858 = vmatpush1.msra.mxu0 0.0
    %1859 = vmatprep.subr.mxu0 0.0
    %1860 = vmatpush1.msra.mxu0 0.0
    %1861 = vmatprep.subr.mxu0 0.0
    %1862 = vmatpush1.msra.mxu0 0.0
    %1863 = vmatprep.subr.mxu0 0.0
    %1864 = vmatpush1.msra.mxu0 0.0
    %1865 = vmatprep.subr.mxu0 0.0
    %1866 = vmatpush1.msra.mxu0 0.0
    %1867 = vmatprep.subr.mxu0 0.0
    %1868 = vmatpush1.msra.mxu0 0.0
    %1869 = vmatprep.subr.mxu0 0.0
    %1870 = vmatpush1.msra.mxu0 0.0
    %1871 = vmatprep.subr.mxu0 0.0
    %1872 = vmatpush1.msra.mxu0 0.0
    %1873 = vmatprep.subr.mxu0 0.0
    %1874 = vmatpush1.msra.mxu0 0.0
    %1875 = vmatprep.subr.mxu0 0.0
    %1876 = vmatpush1.msra.mxu0 0.0
    %1877 = vmatprep.subr.mxu0 0.0
    %1878 = vmatpush1.msra.mxu0 0.0
    %1879 = vmatprep.mubr.f32.mxu0 0.0
    %1880 = vmatmul.mubr.f32.gmra.mrb[0].mxu0 %v1813
    %v1881 = vpop.f32.mrb[0].mxu0
    %v1882 = vadd.f32 0.0, %v1881
    %v1883 = vpop.f32.mrb[0].mxu0
    %1884 = vdwg.mxu0
    %v1885 = vadd.f32 %v1377, %v1882
    %v1886 = vxor.u32 %v1885, 2147483648
    %v1887 = vmul.f32 %v1886, 1.442695
    %v1888 = vpow.pop %v1887
    %v1889 = vadd.f32 %v1888, 1.0
    %v1890 = vrcp.pop %v1889
    %v1891 = vmul.f32 1.0, %v1890
    %v1892 = vtanh.pop %v1885
    %v1894 = vrot.slane %v1798, 6
    %v1896 = vmul.f32 %v1891, %v1894
    %1898 = vrot.lane.b32.xlu0 %v1892, 64
    %v1899 = vpop.permute.xlu0 %1898
    %v1901 = vmul.f32 %v1891, %v1899
    %1903 = vrot.lane.b32.xlu0 %v1901, 32
    %v1904 = vpop.permute.xlu0 %1903
    %v1906 = vadd.f32 %v1896, %v1904
    %v1907 = vtanh.pop %v1906
    %1909 = vrot.lane.b32.xlu0 %v1907, 64
    %v1910 = vpop.permute.xlu0 %1909
    %v1912 = vmul.f32 %v1891, %v1910
    %1914 = vrot.lane.b32.xlu0 %v1912, 32
    %v1915 = vpop.permute.xlu0 %1914
    %1917 = vst.msk [vmem:[#allocation2 + $0x8] sm:$0x3] %vm511, %v1915
    %v1918 = vsel %vm408, %v1915, 0
    %1920 = vmatprep.subr.mxu0 0.0
    %1921 = vmatpush1.msra.mxu0 %v1288
    %1922 = vmatprep.subr.mxu0 0.0
    %1923 = vmatpush1.msra.mxu0 %v1289
    %1924 = vmatprep.subr.mxu0 0.0
    %1925 = vmatpush1.msra.mxu0 %v1290
    %1926 = vmatprep.subr.mxu0 0.0
    %1927 = vmatpush1.msra.mxu0 %v1291
    %1928 = vmatprep.subr.mxu0 0.0
    %1929 = vmatpush1.msra.mxu0 0.0
    %1930 = vmatprep.subr.mxu0 0.0
    %1931 = vmatpush1.msra.mxu0 0.0
    %1932 = vmatprep.subr.mxu0 0.0
    %1933 = vmatpush1.msra.mxu0 0.0
    %1934 = vmatprep.subr.mxu0 0.0
    %1935 = vmatpush1.msra.mxu0 0.0
    %1936 = vmatprep.subr.mxu0 0.0
    %1937 = vmatpush1.msra.mxu0 0.0
    %1938 = vmatprep.subr.mxu0 0.0
    %1939 = vmatpush1.msra.mxu0 0.0
    %1940 = vmatprep.subr.mxu0 0.0
    %1941 = vmatpush1.msra.mxu0 0.0
    %1942 = vmatprep.subr.mxu0 0.0
    %1943 = vmatpush1.msra.mxu0 0.0
    %1944 = vmatprep.subr.mxu0 0.0
    %1945 = vmatpush1.msra.mxu0 0.0
    %1946 = vmatprep.subr.mxu0 0.0
    %1947 = vmatpush1.msra.mxu0 0.0
    %1948 = vmatprep.subr.mxu0 0.0
    %1949 = vmatpush1.msra.mxu0 0.0
    %1950 = vmatprep.subr.mxu0 0.0
    %1951 = vmatpush1.msra.mxu0 0.0
    %1952 = vmatprep.subr.mxu0 0.0
    %1953 = vmatpush1.msra.mxu0 0.0
    %1954 = vmatprep.subr.mxu0 0.0
    %1955 = vmatpush1.msra.mxu0 0.0
    %1956 = vmatprep.subr.mxu0 0.0
    %1957 = vmatpush1.msra.mxu0 0.0
    %1958 = vmatprep.subr.mxu0 0.0
    %1959 = vmatpush1.msra.mxu0 0.0
    %1960 = vmatprep.subr.mxu0 0.0
    %1961 = vmatpush1.msra.mxu0 0.0
    %1962 = vmatprep.subr.mxu0 0.0
    %1963 = vmatpush1.msra.mxu0 0.0
    %1964 = vmatprep.subr.mxu0 0.0
    %1965 = vmatpush1.msra.mxu0 0.0
    %1966 = vmatprep.subr.mxu0 0.0
    %1967 = vmatpush1.msra.mxu0 0.0
    %1968 = vmatprep.subr.mxu0 0.0
    %1969 = vmatpush1.msra.mxu0 0.0
    %1970 = vmatprep.subr.mxu0 0.0
    %1971 = vmatpush1.msra.mxu0 0.0
    %1972 = vmatprep.subr.mxu0 0.0
    %1973 = vmatpush1.msra.mxu0 0.0
    %1974 = vmatprep.subr.mxu0 0.0
    %1975 = vmatpush1.msra.mxu0 0.0
    %1976 = vmatprep.subr.mxu0 0.0
    %1977 = vmatpush1.msra.mxu0 0.0
    %1978 = vmatprep.subr.mxu0 0.0
    %1979 = vmatpush1.msra.mxu0 0.0
    %1980 = vmatprep.subr.mxu0 0.0
    %1981 = vmatpush1.msra.mxu0 0.0
    %1982 = vmatprep.subr.mxu0 0.0
    %1983 = vmatpush1.msra.mxu0 0.0
    %1984 = vmatprep.mubr.f32.mxu0 0.0
    %1985 = vmatmul.mubr.f32.gmra.mrb[0].mxu0 %v1918
    %v1986 = vpop.f32.mrb[0].mxu0
    %v1987 = vadd.f32 0.0, %v1986
    %v1988 = vpop.f32.mrb[0].mxu0
    %1989 = vdwg.mxu0
    %v1991 = vrot.slane %v1987, 6
    %v1993 = vadd.f32 %v1377, %v1991
    %v1994 = vxor.u32 %v1993, 2147483648
    %v1995 = vmul.f32 %v1994, 1.442695
    %v1996 = vpow.pop %v1995
    %v1997 = vadd.f32 %v1996, 1.0
    %v1998 = vrcp.pop %v1997
    %v1999 = vmul.f32 1.0, %v1998
    %v2000 = vtanh.pop %v1993
    %v2002 = vrot.slane %v1906, 6
    %v2004 = vmul.f32 %v1999, %v2002
    %2006 = vrot.lane.b32.xlu0 %v2000, 64
    %v2007 = vpop.permute.xlu0 %2006
    %v2009 = vmul.f32 %v1999, %v2007
    %2011 = vrot.lane.b32.xlu0 %v2009, 32
    %v2012 = vpop.permute.xlu0 %2011
    %v2014 = vadd.f32 %v2004, %v2012
    %v2015 = vtanh.pop %v2014
    %2017 = vrot.lane.b32.xlu0 %v2015, 64
    %v2018 = vpop.permute.xlu0 %2017
    %v2020 = vmul.f32 %v1999, %v2018
    %2022 = vrot.lane.b32.xlu0 %v2020, 32
    %v2023 = vpop.permute.xlu0 %2022
    %2025 = vst.msk [vmem:[#allocation2 + $0x8] sm:$0xc] %vm620, %v2023
    %v2026 = vrot.slane %v2020, 2
    %2027 = vrot.lane.b32.xlu0 %v2026, 32
    %v2028 = vpop.permute.xlu0 %2027
    %v2029 = vsel %vm408, %v2028, 0
    %2031 = vmatprep.subr.mxu0 0.0
    %2032 = vmatpush1.msra.mxu0 %v1288
    %2033 = vmatprep.subr.mxu0 0.0
    %2034 = vmatpush1.msra.mxu0 %v1289
    %2035 = vmatprep.subr.mxu0 0.0
    %2036 = vmatpush1.msra.mxu0 %v1290
    %2037 = vmatprep.subr.mxu0 0.0
    %2038 = vmatpush1.msra.mxu0 %v1291
    %2039 = vmatprep.subr.mxu0 0.0
    %2040 = vmatpush1.msra.mxu0 0.0
    %2041 = vmatprep.subr.mxu0 0.0
    %2042 = vmatpush1.msra.mxu0 0.0
    %2043 = vmatprep.subr.mxu0 0.0
    %2044 = vmatpush1.msra.mxu0 0.0
    %2045 = vmatprep.subr.mxu0 0.0
    %2046 = vmatpush1.msra.mxu0 0.0
    %2047 = vmatprep.subr.mxu0 0.0
    %2048 = vmatpush1.msra.mxu0 0.0
    %2049 = vmatprep.subr.mxu0 0.0
    %2050 = vmatpush1.msra.mxu0 0.0
    %2051 = vmatprep.subr.mxu0 0.0
    %2052 = vmatpush1.msra.mxu0 0.0
    %2053 = vmatprep.subr.mxu0 0.0
    %2054 = vmatpush1.msra.mxu0 0.0
    %2055 = vmatprep.subr.mxu0 0.0
    %2056 = vmatpush1.msra.mxu0 0.0
    %2057 = vmatprep.subr.mxu0 0.0
    %2058 = vmatpush1.msra.mxu0 0.0
    %2059 = vmatprep.subr.mxu0 0.0
    %2060 = vmatpush1.msra.mxu0 0.0
    %2061 = vmatprep.subr.mxu0 0.0
    %2062 = vmatpush1.msra.mxu0 0.0
    %2063 = vmatprep.subr.mxu0 0.0
    %2064 = vmatpush1.msra.mxu0 0.0
    %2065 = vmatprep.subr.mxu0 0.0
    %2066 = vmatpush1.msra.mxu0 0.0
    %2067 = vmatprep.subr.mxu0 0.0
    %2068 = vmatpush1.msra.mxu0 0.0
    %2069 = vmatprep.subr.mxu0 0.0
    %2070 = vmatpush1.msra.mxu0 0.0
    %2071 = vmatprep.subr.mxu0 0.0
    %2072 = vmatpush1.msra.mxu0 0.0
    %2073 = vmatprep.subr.mxu0 0.0
    %2074 = vmatpush1.msra.mxu0 0.0
    %2075 = vmatprep.subr.mxu0 0.0
    %2076 = vmatpush1.msra.mxu0 0.0
    %2077 = vmatprep.subr.mxu0 0.0
    %2078 = vmatpush1.msra.mxu0 0.0
    %2079 = vmatprep.subr.mxu0 0.0
    %2080 = vmatpush1.msra.mxu0 0.0
    %2081 = vmatprep.subr.mxu0 0.0
    %2082 = vmatpush1.msra.mxu0 0.0
    %2083 = vmatprep.subr.mxu0 0.0
    %2084 = vmatpush1.msra.mxu0 0.0
    %2085 = vmatprep.subr.mxu0 0.0
    %2086 = vmatpush1.msra.mxu0 0.0
    %2087 = vmatprep.subr.mxu0 0.0
    %2088 = vmatpush1.msra.mxu0 0.0
    %2089 = vmatprep.subr.mxu0 0.0
    %2090 = vmatpush1.msra.mxu0 0.0
    %2091 = vmatprep.subr.mxu0 0.0
    %2092 = vmatpush1.msra.mxu0 0.0
    %2093 = vmatprep.subr.mxu0 0.0
    %2094 = vmatpush1.msra.mxu0 0.0
    %2095 = vmatprep.mubr.f32.mxu0 0.0
    %2096 = vmatmul.mubr.f32.gmra.mrb[0].mxu0 %v2029
    %v2097 = vpop.f32.mrb[0].mxu0
    %v2098 = vadd.f32 0.0, %v2097
    %v2099 = vpop.f32.mrb[0].mxu0
    %2100 = vdwg.mxu0
    %v2102 = vrot.slane %v2098, 4
    %v2104 = vadd.f32 %v1377, %v2102
    %v2105 = vxor.u32 %v2104, 2147483648
    %v2106 = vmul.f32 %v2105, 1.442695
    %v2107 = vpow.pop %v2106
    %v2108 = vadd.f32 %v2107, 1.0
    %v2109 = vrcp.pop %v2108
    %v2110 = vmul.f32 1.0, %v2109
    %v2111 = vtanh.pop %v2104
    %v2113 = vrot.slane %v2014, 6
    %v2115 = vmul.f32 %v2110, %v2113
    %2117 = vrot.lane.b32.xlu0 %v2111, 64
    %v2118 = vpop.permute.xlu0 %2117
    %v2120 = vmul.f32 %v2110, %v2118
    %2122 = vrot.lane.b32.xlu0 %v2120, 32
    %v2123 = vpop.permute.xlu0 %2122
    %v2125 = vadd.f32 %v2115, %v2123
    %v2126 = vtanh.pop %v2125
    %2128 = vrot.lane.b32.xlu0 %v2126, 64
    %v2129 = vpop.permute.xlu0 %2128
    %v2131 = vmul.f32 %v2110, %v2129
    %2133 = vrot.lane.b32.xlu0 %v2131, 32
    %v2134 = vpop.permute.xlu0 %2133
    %2136 = vst.msk [vmem:[#allocation2 + $0x8] sm:$0x30] %vm732, %v2134
    %v2137 = vrot.slane %v2131, 4
    %2138 = vrot.lane.b32.xlu0 %v2137, 32
    %v2139 = vpop.permute.xlu0 %2138
    %v2140 = vsel %vm408, %v2139, 0
    %2142 = vmatprep.subr.mxu0 0.0
    %2143 = vmatpush1.msra.mxu0 %v1288
    %2144 = vmatprep.subr.mxu0 0.0
    %2145 = vmatpush1.msra.mxu0 %v1289
    %2146 = vmatprep.subr.mxu0 0.0
    %2147 = vmatpush1.msra.mxu0 %v1290
    %2148 = vmatprep.subr.mxu0 0.0
    %2149 = vmatpush1.msra.mxu0 %v1291
    %2150 = vmatprep.subr.mxu0 0.0
    %2151 = vmatpush1.msra.mxu0 0.0
    %2152 = vmatprep.subr.mxu0 0.0
    %2153 = vmatpush1.msra.mxu0 0.0
    %2154 = vmatprep.subr.mxu0 0.0
    %2155 = vmatpush1.msra.mxu0 0.0
    %2156 = vmatprep.subr.mxu0 0.0
    %2157 = vmatpush1.msra.mxu0 0.0
    %2158 = vmatprep.subr.mxu0 0.0
    %2159 = vmatpush1.msra.mxu0 0.0
    %2160 = vmatprep.subr.mxu0 0.0
    %2161 = vmatpush1.msra.mxu0 0.0
    %2162 = vmatprep.subr.mxu0 0.0
    %2163 = vmatpush1.msra.mxu0 0.0
    %2164 = vmatprep.subr.mxu0 0.0
    %2165 = vmatpush1.msra.mxu0 0.0
    %2166 = vmatprep.subr.mxu0 0.0
    %2167 = vmatpush1.msra.mxu0 0.0
    %2168 = vmatprep.subr.mxu0 0.0
    %2169 = vmatpush1.msra.mxu0 0.0
    %2170 = vmatprep.subr.mxu0 0.0
    %2171 = vmatpush1.msra.mxu0 0.0
    %2172 = vmatprep.subr.mxu0 0.0
    %2173 = vmatpush1.msra.mxu0 0.0
    %2174 = vmatprep.subr.mxu0 0.0
    %2175 = vmatpush1.msra.mxu0 0.0
    %2176 = vmatprep.subr.mxu0 0.0
    %2177 = vmatpush1.msra.mxu0 0.0
    %2178 = vmatprep.subr.mxu0 0.0
    %2179 = vmatpush1.msra.mxu0 0.0
    %2180 = vmatprep.subr.mxu0 0.0
    %2181 = vmatpush1.msra.mxu0 0.0
    %2182 = vmatprep.subr.mxu0 0.0
    %2183 = vmatpush1.msra.mxu0 0.0
    %2184 = vmatprep.subr.mxu0 0.0
    %2185 = vmatpush1.msra.mxu0 0.0
    %2186 = vmatprep.subr.mxu0 0.0
    %2187 = vmatpush1.msra.mxu0 0.0
    %2188 = vmatprep.subr.mxu0 0.0
    %2189 = vmatpush1.msra.mxu0 0.0
    %2190 = vmatprep.subr.mxu0 0.0
    %2191 = vmatpush1.msra.mxu0 0.0
    %2192 = vmatprep.subr.mxu0 0.0
    %2193 = vmatpush1.msra.mxu0 0.0
    %2194 = vmatprep.subr.mxu0 0.0
    %2195 = vmatpush1.msra.mxu0 0.0
    %2196 = vmatprep.subr.mxu0 0.0
    %2197 = vmatpush1.msra.mxu0 0.0
    %2198 = vmatprep.subr.mxu0 0.0
    %2199 = vmatpush1.msra.mxu0 0.0
    %2200 = vmatprep.subr.mxu0 0.0
    %2201 = vmatpush1.msra.mxu0 0.0
    %2202 = vmatprep.subr.mxu0 0.0
    %2203 = vmatpush1.msra.mxu0 0.0
    %2204 = vmatprep.subr.mxu0 0.0
    %2205 = vmatpush1.msra.mxu0 0.0
    %2206 = vmatprep.mubr.f32.mxu0 0.0
    %2207 = vmatmul.mubr.f32.gmra.mrb[0].mxu0 %v2140
    %v2208 = vpop.f32.mrb[0].mxu0
    %v2209 = vadd.f32 0.0, %v2208
    %v2210 = vpop.f32.mrb[0].mxu0
    %2211 = vdwg.mxu0
    %v2213 = vrot.slane %v2209, 2
    %v2215 = vadd.f32 %v1377, %v2213
    %v2216 = vxor.u32 %v2215, 2147483648
    %v2217 = vmul.f32 %v2216, 1.442695
    %v2218 = vpow.pop %v2217
    %v2219 = vadd.f32 %v2218, 1.0
    %v2220 = vrcp.pop %v2219
    %v2221 = vmul.f32 1.0, %v2220
    %v2222 = vtanh.pop %v2215
    %v2224 = vrot.slane %v2125, 6
    %v2226 = vmul.f32 %v2221, %v2224
    %2228 = vrot.lane.b32.xlu0 %v2222, 64
    %v2229 = vpop.permute.xlu0 %2228
    %v2231 = vmul.f32 %v2221, %v2229
    %2233 = vrot.lane.b32.xlu0 %v2231, 32
    %v2234 = vpop.permute.xlu0 %2233
    %v2236 = vadd.f32 %v2226, %v2234
    %v2237 = vtanh.pop %v2236
    %2239 = vrot.lane.b32.xlu0 %v2237, 64
    %v2240 = vpop.permute.xlu0 %2239
    %v2242 = vmul.f32 %v2221, %v2240
    %2244 = vrot.lane.b32.xlu0 %v2242, 32
    %v2245 = vpop.permute.xlu0 %2244
    %2247 = vst.msk [vmem:[#allocation2 + $0x8] sm:$0xc0] %vm844, %v2245
    %v2248 = vld [vmem:[#allocation2] sm:$0xff]
    %v2249 = vld [vmem:[#allocation2 + $0x8] sm:$0xff]
    %v2250 = vld [vmem:[#allocation6 + $0x1e0] sm:$0xff]
    %v2251 = vld [vmem:[#allocation6 + $0x1e8] sm:$0xff]
    %v2252 = vld [vmem:[#allocation6 + $0x1f0] sm:$0xff]
    %v2253 = vld [vmem:[#allocation6 + $0x1f8] sm:$0xff]
    %v2254 = vld [vmem:[#allocation6 + $0x200] sm:$0x3]
    %v2255 = vld [vmem:[#allocation6 + $0x80] sm:$0xff]
    %v2256 = vld [vmem:[#allocation6 + $0x88] sm:$0xff]
    %v2257 = vld [vmem:[#allocation6 + $0x90] sm:$0xff]
    %v2258 = vld [vmem:[#allocation6 + $0x98] sm:$0xff]
    %v2259 = vld [vmem:[#allocation8 + $0x2] sm:$0x1]
    %v2260 = vlaneseq
    %v2261 = vshrl.u32 %v2260, 7
    %v2262 = vsub.s32 0, %v2261
    %v2263 = vrot.slane %v2259, %v2262
    %v2265 = vsel %vm408, %v2248, 0
    %v2268 = vsel %vm408, %v2249, 0
    %2270 = vmatprep.subr.mxu0 0.0
    %2271 = vmatpush1.msra.mxu0 %v2255
    %2272 = vmatprep.subr.mxu0 0.0
    %2273 = vmatpush1.msra.mxu0 %v2256
    %2274 = vmatprep.subr.mxu0 0.0
    %2275 = vmatpush1.msra.mxu0 %v2257
    %2276 = vmatprep.subr.mxu0 0.0
    %2277 = vmatpush1.msra.mxu0 %v2258
    %2278 = vmatprep.subr.mxu0 0.0
    %2279 = vmatpush1.msra.mxu0 0.0
    %2280 = vmatprep.subr.mxu0 0.0
    %2281 = vmatpush1.msra.mxu0 0.0
    %2282 = vmatprep.subr.mxu0 0.0
    %2283 = vmatpush1.msra.mxu0 0.0
    %2284 = vmatprep.subr.mxu0 0.0
    %2285 = vmatpush1.msra.mxu0 0.0
    %2286 = vmatprep.subr.mxu0 0.0
    %2287 = vmatpush1.msra.mxu0 0.0
    %2288 = vmatprep.subr.mxu0 0.0
    %2289 = vmatpush1.msra.mxu0 0.0
    %2290 = vmatprep.subr.mxu0 0.0
    %2291 = vmatpush1.msra.mxu0 0.0
    %2292 = vmatprep.subr.mxu0 0.0
    %2293 = vmatpush1.msra.mxu0 0.0
    %2294 = vmatprep.subr.mxu0 0.0
    %2295 = vmatpush1.msra.mxu0 0.0
    %2296 = vmatprep.subr.mxu0 0.0
    %2297 = vmatpush1.msra.mxu0 0.0
    %2298 = vmatprep.subr.mxu0 0.0
    %2299 = vmatpush1.msra.mxu0 0.0
    %2300 = vmatprep.subr.mxu0 0.0
    %2301 = vmatpush1.msra.mxu0 0.0
    %2302 = vmatprep.subr.mxu0 0.0
    %2303 = vmatpush1.msra.mxu0 0.0
    %2304 = vmatprep.subr.mxu0 0.0
    %2305 = vmatpush1.msra.mxu0 0.0
    %2306 = vmatprep.subr.mxu0 0.0
    %2307 = vmatpush1.msra.mxu0 0.0
    %2308 = vmatprep.subr.mxu0 0.0
    %2309 = vmatpush1.msra.mxu0 0.0
    %2310 = vmatprep.subr.mxu0 0.0
    %2311 = vmatpush1.msra.mxu0 0.0
    %2312 = vmatprep.subr.mxu0 0.0
    %2313 = vmatpush1.msra.mxu0 0.0
    %2314 = vmatprep.subr.mxu0 0.0
    %2315 = vmatpush1.msra.mxu0 0.0
    %2316 = vmatprep.subr.mxu0 0.0
    %2317 = vmatpush1.msra.mxu0 0.0
    %2318 = vmatprep.subr.mxu0 0.0
    %2319 = vmatpush1.msra.mxu0 0.0
    %2320 = vmatprep.subr.mxu0 0.0
    %2321 = vmatpush1.msra.mxu0 0.0
    %2322 = vmatprep.subr.mxu0 0.0
    %2323 = vmatpush1.msra.mxu0 0.0
    %2324 = vmatprep.subr.mxu0 0.0
    %2325 = vmatpush1.msra.mxu0 0.0
    %2326 = vmatprep.subr.mxu0 0.0
    %2327 = vmatpush1.msra.mxu0 0.0
    %2328 = vmatprep.subr.mxu0 0.0
    %2329 = vmatpush1.msra.mxu0 0.0
    %2330 = vmatprep.subr.mxu0 0.0
    %2331 = vmatpush1.msra.mxu0 0.0
    %2332 = vmatprep.subr.mxu0 0.0
    %2333 = vmatpush1.msra.mxu0 0.0
    %2334 = vmatprep.mubr.f32.mxu0 0.0
    %2335 = vmatmul.mubr.f32.gmra.mrb[0].mxu0 %v2265
    %v2336 = vpop.f32.mrb[0].mxu0
    %v2337 = vadd.f32 %v2263, %v2336
    %v2338 = vpop.f32.mrb[0].mxu0
    %2339 = vmatprep.mubr.f32.mxu0 0.0
    %2340 = vmatmul.mubr.f32.gmra.mrb[0].mxu0 %v2268
    %v2341 = vpop.f32.mrb[0].mxu0
    %v2342 = vadd.f32 %v2263, %v2341
    %v2343 = vpop.f32.mrb[0].mxu0
    %2344 = vdwg.mxu0
    %v2347 = vcombine.high %v2337, %v2337
    %v2349 = vunpack.c.l.s4 1983009808
    %v2350 = vunpack.c.0.s8 %v2349
    %v2351 = vlaneseq
    %v2352 = vshrl.u32 %v2351, 7
    %v2353 = vsub.s32 %v2350, %v2352
    %v2354 = vrot.slane %v2337, %v2353
    %v2356 = vunpack.c.l.s4 1983009808
    %v2357 = vunpack.c.0.s8 %v2356
    %v2358 = vlaneseq
    %v2359 = vshrl.u32 %v2358, 7
    %v2360 = vsub.s32 %v2357, %v2359
    %v2361 = vrot.slane %v2347, %v2360
    %v2362 = vcombine.high %v2354, %v2354
    %v2363 = vcombine.high %v2361, %v2361
    %v2364 = vcombine.high %v2342, %v2342
    %v2366 = vunpack.c.l.s4 1983009808
    %v2367 = vunpack.c.0.s8 %v2366
    %v2368 = vlaneseq
    %v2369 = vshrl.u32 %v2368, 7
    %v2370 = vsub.s32 %v2367, %v2369
    %v2371 = vrot.slane %v2342, %v2370
    %v2373 = vunpack.c.l.s4 1983009808
    %v2374 = vunpack.c.0.s8 %v2373
    %v2375 = vlaneseq
    %v2376 = vshrl.u32 %v2375, 7
    %v2377 = vsub.s32 %v2374, %v2376
    %v2378 = vrot.slane %v2364, %v2377
    %v2379 = vcombine.high %v2371, %v2371
    %v2380 = vcombine.high %v2378, %v2378
    %v2389 = vlaneseq
    %v2390 = vshrl.u32 %v2389, 7
    %v2391 = vsub.s32 0, %v2390
    %v2392 = vrot.slane %v2354, %v2391
    %v2393 = vlaneseq
    %v2394 = vshrl.u32 %v2393, 7
    %v2395 = vsub.s32 0, %v2394
    %v2396 = vrot.slane %v2362, %v2395
    %v2397 = vlaneseq
    %v2398 = vshrl.u32 %v2397, 7
    %v2399 = vsub.s32 0, %v2398
    %v2400 = vrot.slane %v2361, %v2399
    %v2401 = vlaneseq
    %v2402 = vshrl.u32 %v2401, 7
    %v2403 = vsub.s32 0, %v2402
    %v2404 = vrot.slane %v2363, %v2403
    %v2405 = vlaneseq
    %v2406 = vshrl.u32 %v2405, 7
    %v2407 = vsub.s32 0, %v2406
    %v2408 = vrot.slane %v2371, %v2407
    %v2409 = vlaneseq
    %v2410 = vshrl.u32 %v2409, 7
    %v2411 = vsub.s32 0, %v2410
    %v2412 = vrot.slane %v2379, %v2411
    %v2413 = vlaneseq
    %v2414 = vshrl.u32 %v2413, 7
    %v2415 = vsub.s32 0, %v2414
    %v2416 = vrot.slane %v2378, %v2415
    %v2417 = vlaneseq
    %v2418 = vshrl.u32 %v2417, 7
    %v2419 = vsub.s32 0, %v2418
    %v2420 = vrot.slane %v2380, %v2419
    %v2430 = vunpack.c.l.s4 1983009808
    %v2431 = vunpack.c.0.s8 %v2430
    %v2432 = vlaneseq
    %v2433 = vshrl.u32 %v2432, 7
    %v2434 = vsub.s32 %v2431, %v2433
    %v2435 = vrot.slane %v2392, %v2434
    %v2437 = vunpack.c.l.s4 1983009808
    %v2438 = vunpack.c.0.s8 %v2437
    %v2439 = vlaneseq
    %v2440 = vshrl.u32 %v2439, 7
    %v2441 = vsub.s32 %v2438, %v2440
    %v2442 = vrot.slane %v2396, %v2441
    %v2444 = vunpack.c.l.s4 1983009808
    %v2445 = vunpack.c.0.s8 %v2444
    %v2446 = vlaneseq
    %v2447 = vshrl.u32 %v2446, 7
    %v2448 = vsub.s32 %v2445, %v2447
    %v2449 = vrot.slane %v2400, %v2448
    %v2451 = vunpack.c.l.s4 1983009808
    %v2452 = vunpack.c.0.s8 %v2451
    %v2453 = vlaneseq
    %v2454 = vshrl.u32 %v2453, 7
    %v2455 = vsub.s32 %v2452, %v2454
    %v2456 = vrot.slane %v2404, %v2455
    %v2458 = vunpack.c.l.s4 1983009808
    %v2459 = vunpack.c.0.s8 %v2458
    %v2460 = vlaneseq
    %v2461 = vshrl.u32 %v2460, 7
    %v2462 = vsub.s32 %v2459, %v2461
    %v2463 = vrot.slane %v2408, %v2462
    %v2465 = vunpack.c.l.s4 1983009808
    %v2466 = vunpack.c.0.s8 %v2465
    %v2467 = vlaneseq
    %v2468 = vshrl.u32 %v2467, 7
    %v2469 = vsub.s32 %v2466, %v2468
    %v2470 = vrot.slane %v2412, %v2469
    %v2472 = vunpack.c.l.s4 1983009808
    %v2473 = vunpack.c.0.s8 %v2472
    %v2474 = vlaneseq
    %v2475 = vshrl.u32 %v2474, 7
    %v2476 = vsub.s32 %v2473, %v2475
    %v2477 = vrot.slane %v2416, %v2476
    %v2479 = vunpack.c.l.s4 1983009808
    %v2480 = vunpack.c.0.s8 %v2479
    %v2481 = vlaneseq
    %v2482 = vshrl.u32 %v2481, 7
    %v2483 = vsub.s32 %v2480, %v2482
    %v2484 = vrot.slane %v2420, %v2483
    %2485 = vrot.lane.b32.xlu0 %v2435, 96
    %v2486 = vpop.permute.xlu0 %2485
    %2487 = vrot.lane.b32.xlu0 %v2442, 96
    %v2488 = vpop.permute.xlu0 %2487
    %2489 = vrot.lane.b32.xlu0 %v2449, 96
    %v2490 = vpop.permute.xlu0 %2489
    %2491 = vrot.lane.b32.xlu0 %v2456, 96
    %v2492 = vpop.permute.xlu0 %2491
    %2493 = vrot.lane.b32.xlu0 %v2463, 96
    %v2494 = vpop.permute.xlu0 %2493
    %2495 = vrot.lane.b32.xlu0 %v2470, 96
    %v2496 = vpop.permute.xlu0 %2495
    %2497 = vrot.lane.b32.xlu0 %v2477, 96
    %v2498 = vpop.permute.xlu0 %2497
    %2499 = vrot.lane.b32.xlu0 %v2484, 96
    %v2500 = vpop.permute.xlu0 %2499
    %v2509 = vmul.f32 %v2354, %v2486
    %v2510 = vmul.f32 %v2362, %v2488
    %v2511 = vmul.f32 %v2361, %v2490
    %v2512 = vmul.f32 %v2363, %v2492
    %v2513 = vmul.f32 %v2371, %v2494
    %v2514 = vmul.f32 %v2379, %v2496
    %v2515 = vmul.f32 %v2378, %v2498
    %v2516 = vmul.f32 %v2380, %v2500
    %v2525 = vcombine.low %v2509, %v2510
    %v2526 = vcombine.low %v2511, %v2512
    %v2528 = vunpack.c.l.s4 1983009808
    %v2529 = vunpack.c.0.s8 %v2528
    %v2530 = vlaneseq
    %v2531 = vshrl.u32 %v2530, 7
    %v2532 = vsub.s32 %v2529, %v2531
    %v2533 = vrot.slane %v2525, %v2532
    %v2535 = vunpack.c.l.s4 1983009808
    %v2536 = vunpack.c.0.s8 %v2535
    %v2537 = vlaneseq
    %v2538 = vshrl.u32 %v2537, 7
    %v2539 = vsub.s32 %v2536, %v2538
    %v2540 = vrot.slane %v2526, %v2539
    %v2541 = vcombine.low %v2533, %v2540
    %v2542 = vcombine.low %v2513, %v2514
    %v2543 = vcombine.low %v2515, %v2516
    %v2545 = vunpack.c.l.s4 1983009808
    %v2546 = vunpack.c.0.s8 %v2545
    %v2547 = vlaneseq
    %v2548 = vshrl.u32 %v2547, 7
    %v2549 = vsub.s32 %v2546, %v2548
    %v2550 = vrot.slane %v2542, %v2549
    %v2552 = vunpack.c.l.s4 1983009808
    %v2553 = vunpack.c.0.s8 %v2552
    %v2554 = vlaneseq
    %v2555 = vshrl.u32 %v2554, 7
    %v2556 = vsub.s32 %v2553, %v2555
    %v2557 = vrot.slane %v2543, %v2556
    %v2558 = vcombine.low %v2550, %v2557
    %v2559 = vsel %vm408, %v2541, 0
    %v2561 = vsel %vm408, %v2558, 0
    %2563 = vmatprep.subr.mxu0 0.0
    %2564 = vmatpush1.msra.mxu0 %v2250
    %2565 = vmatprep.subr.mxu0 0.0
    %2566 = vmatpush1.msra.mxu0 %v2251
    %2567 = vmatprep.subr.mxu0 0.0
    %2568 = vmatpush1.msra.mxu0 %v2252
    %2569 = vmatprep.subr.mxu0 0.0
    %2570 = vmatpush1.msra.mxu0 %v2253
    %2571 = vmatprep.subr.mxu0 0.0
    %2572 = vmatpush1.msra.mxu0 0.0
    %2573 = vmatprep.subr.mxu0 0.0
    %2574 = vmatpush1.msra.mxu0 0.0
    %2575 = vmatprep.subr.mxu0 0.0
    %2576 = vmatpush1.msra.mxu0 0.0
    %2577 = vmatprep.subr.mxu0 0.0
    %2578 = vmatpush1.msra.mxu0 0.0
    %2579 = vmatprep.subr.mxu0 0.0
    %2580 = vmatpush1.msra.mxu0 0.0
    %2581 = vmatprep.subr.mxu0 0.0
    %2582 = vmatpush1.msra.mxu0 0.0
    %2583 = vmatprep.subr.mxu0 0.0
    %2584 = vmatpush1.msra.mxu0 0.0
    %2585 = vmatprep.subr.mxu0 0.0
    %2586 = vmatpush1.msra.mxu0 0.0
    %2587 = vmatprep.subr.mxu0 0.0
    %2588 = vmatpush1.msra.mxu0 0.0
    %2589 = vmatprep.subr.mxu0 0.0
    %2590 = vmatpush1.msra.mxu0 0.0
    %2591 = vmatprep.subr.mxu0 0.0
    %2592 = vmatpush1.msra.mxu0 0.0
    %2593 = vmatprep.subr.mxu0 0.0
    %2594 = vmatpush1.msra.mxu0 0.0
    %2595 = vmatprep.subr.mxu0 0.0
    %2596 = vmatpush1.msra.mxu0 0.0
    %2597 = vmatprep.subr.mxu0 0.0
    %2598 = vmatpush1.msra.mxu0 0.0
    %2599 = vmatprep.subr.mxu0 0.0
    %2600 = vmatpush1.msra.mxu0 0.0
    %2601 = vmatprep.subr.mxu0 0.0
    %2602 = vmatpush1.msra.mxu0 0.0
    %2603 = vmatprep.subr.mxu0 0.0
    %2604 = vmatpush1.msra.mxu0 0.0
    %2605 = vmatprep.subr.mxu0 0.0
    %2606 = vmatpush1.msra.mxu0 0.0
    %2607 = vmatprep.subr.mxu0 0.0
    %2608 = vmatpush1.msra.mxu0 0.0
    %2609 = vmatprep.subr.mxu0 0.0
    %2610 = vmatpush1.msra.mxu0 0.0
    %2611 = vmatprep.subr.mxu0 0.0
    %2612 = vmatpush1.msra.mxu0 0.0
    %2613 = vmatprep.subr.mxu0 0.0
    %2614 = vmatpush1.msra.mxu0 0.0
    %2615 = vmatprep.subr.mxu0 0.0
    %2616 = vmatpush1.msra.mxu0 0.0
    %2617 = vmatprep.subr.mxu0 0.0
    %2618 = vmatpush1.msra.mxu0 0.0
    %2619 = vmatprep.subr.mxu0 0.0
    %2620 = vmatpush1.msra.mxu0 0.0
    %2621 = vmatprep.subr.mxu0 0.0
    %2622 = vmatpush1.msra.mxu0 0.0
    %2623 = vmatprep.subr.mxu0 0.0
    %2624 = vmatpush1.msra.mxu0 0.0
    %2625 = vmatprep.subr.mxu0 0.0
    %2626 = vmatpush1.msra.mxu0 0.0
    %2627 = vmatprep.mubr.f32.mxu0 0.0
    %2628 = vmatmul.mubr.f32.gmra.mrb[0].mxu0 %v2559
    %v2629 = vpop.f32.mrb[0].mxu0
    %v2630 = vadd.f32 0.0, %v2629
    %v2631 = vpop.f32.mrb[0].mxu0
    %2632 = vmatprep.mubr.f32.mxu0 0.0
    %2633 = vmatmul.mubr.f32.gmra.mrb[0].mxu0 %v2561
    %v2634 = vpop.f32.mrb[0].mxu0
    %v2635 = vadd.f32 0.0, %v2634
    %v2636 = vpop.f32.mrb[0].mxu0
    %2637 = vdwg.mxu0
    %v2638 = vlaneseq
    %v2639 = vshrl.u32 %v2638, 7
    %v2640 = vsub.s32 1, %v2639
    %v2641 = vrot.slane %v2354, %v2640
    %v2642 = vlaneseq
    %v2643 = vshrl.u32 %v2642, 7
    %v2644 = vsub.s32 1, %v2643
    %v2645 = vrot.slane %v2362, %v2644
    %v2646 = vlaneseq
    %v2647 = vshrl.u32 %v2646, 7
    %v2648 = vsub.s32 1, %v2647
    %v2649 = vrot.slane %v2361, %v2648
    %v2650 = vlaneseq
    %v2651 = vshrl.u32 %v2650, 7
    %v2652 = vsub.s32 1, %v2651
    %v2653 = vrot.slane %v2363, %v2652
    %v2654 = vlaneseq
    %v2655 = vshrl.u32 %v2654, 7
    %v2656 = vsub.s32 1, %v2655
    %v2657 = vrot.slane %v2371, %v2656
    %v2658 = vlaneseq
    %v2659 = vshrl.u32 %v2658, 7
    %v2660 = vsub.s32 1, %v2659
    %v2661 = vrot.slane %v2379, %v2660
    %v2662 = vlaneseq
    %v2663 = vshrl.u32 %v2662, 7
    %v2664 = vsub.s32 1, %v2663
    %v2665 = vrot.slane %v2378, %v2664
    %v2666 = vlaneseq
    %v2667 = vshrl.u32 %v2666, 7
    %v2668 = vsub.s32 1, %v2667
    %v2669 = vrot.slane %v2380, %v2668
    %v2679 = vunpack.c.l.s4 1983009808
    %v2680 = vunpack.c.0.s8 %v2679
    %v2681 = vlaneseq
    %v2682 = vshrl.u32 %v2681, 7
    %v2683 = vsub.s32 %v2680, %v2682
    %v2684 = vrot.slane %v2641, %v2683
    %v2686 = vunpack.c.l.s4 1983009808
    %v2687 = vunpack.c.0.s8 %v2686
    %v2688 = vlaneseq
    %v2689 = vshrl.u32 %v2688, 7
    %v2690 = vsub.s32 %v2687, %v2689
    %v2691 = vrot.slane %v2645, %v2690
    %v2693 = vunpack.c.l.s4 1983009808
    %v2694 = vunpack.c.0.s8 %v2693
    %v2695 = vlaneseq
    %v2696 = vshrl.u32 %v2695, 7
    %v2697 = vsub.s32 %v2694, %v2696
    %v2698 = vrot.slane %v2649, %v2697
    %v2700 = vunpack.c.l.s4 1983009808
    %v2701 = vunpack.c.0.s8 %v2700
    %v2702 = vlaneseq
    %v2703 = vshrl.u32 %v2702, 7
    %v2704 = vsub.s32 %v2701, %v2703
    %v2705 = vrot.slane %v2653, %v2704
    %v2707 = vunpack.c.l.s4 1983009808
    %v2708 = vunpack.c.0.s8 %v2707
    %v2709 = vlaneseq
    %v2710 = vshrl.u32 %v2709, 7
    %v2711 = vsub.s32 %v2708, %v2710
    %v2712 = vrot.slane %v2657, %v2711
    %v2714 = vunpack.c.l.s4 1983009808
    %v2715 = vunpack.c.0.s8 %v2714
    %v2716 = vlaneseq
    %v2717 = vshrl.u32 %v2716, 7
    %v2718 = vsub.s32 %v2715, %v2717
    %v2719 = vrot.slane %v2661, %v2718
    %v2721 = vunpack.c.l.s4 1983009808
    %v2722 = vunpack.c.0.s8 %v2721
    %v2723 = vlaneseq
    %v2724 = vshrl.u32 %v2723, 7
    %v2725 = vsub.s32 %v2722, %v2724
    %v2726 = vrot.slane %v2665, %v2725
    %v2728 = vunpack.c.l.s4 1983009808
    %v2729 = vunpack.c.0.s8 %v2728
    %v2730 = vlaneseq
    %v2731 = vshrl.u32 %v2730, 7
    %v2732 = vsub.s32 %v2729, %v2731
    %v2733 = vrot.slane %v2669, %v2732
    %2734 = vrot.lane.b32.xlu0 %v2684, 96
    %v2735 = vpop.permute.xlu0 %2734
    %2736 = vrot.lane.b32.xlu0 %v2691, 96
    %v2737 = vpop.permute.xlu0 %2736
    %2738 = vrot.lane.b32.xlu0 %v2698, 96
    %v2739 = vpop.permute.xlu0 %2738
    %2740 = vrot.lane.b32.xlu0 %v2705, 96
    %v2741 = vpop.permute.xlu0 %2740
    %2742 = vrot.lane.b32.xlu0 %v2712, 96
    %v2743 = vpop.permute.xlu0 %2742
    %2744 = vrot.lane.b32.xlu0 %v2719, 96
    %v2745 = vpop.permute.xlu0 %2744
    %2746 = vrot.lane.b32.xlu0 %v2726, 96
    %v2747 = vpop.permute.xlu0 %2746
    %2748 = vrot.lane.b32.xlu0 %v2733, 96
    %v2749 = vpop.permute.xlu0 %2748
    %v2758 = vmul.f32 %v2354, %v2735
    %v2759 = vmul.f32 %v2362, %v2737
    %v2760 = vmul.f32 %v2361, %v2739
    %v2761 = vmul.f32 %v2363, %v2741
    %v2762 = vmul.f32 %v2371, %v2743
    %v2763 = vmul.f32 %v2379, %v2745
    %v2764 = vmul.f32 %v2378, %v2747
    %v2765 = vmul.f32 %v2380, %v2749
    %v2774 = vcombine.low %v2758, %v2759
    %v2775 = vcombine.low %v2760, %v2761
    %v2777 = vunpack.c.l.s4 1983009808
    %v2778 = vunpack.c.0.s8 %v2777
    %v2779 = vlaneseq
    %v2780 = vshrl.u32 %v2779, 7
    %v2781 = vsub.s32 %v2778, %v2780
    %v2782 = vrot.slane %v2774, %v2781
    %v2784 = vunpack.c.l.s4 1983009808
    %v2785 = vunpack.c.0.s8 %v2784
    %v2786 = vlaneseq
    %v2787 = vshrl.u32 %v2786, 7
    %v2788 = vsub.s32 %v2785, %v2787
    %v2789 = vrot.slane %v2775, %v2788
    %v2790 = vcombine.low %v2782, %v2789
    %v2791 = vcombine.low %v2762, %v2763
    %v2792 = vcombine.low %v2764, %v2765
    %v2794 = vunpack.c.l.s4 1983009808
    %v2795 = vunpack.c.0.s8 %v2794
    %v2796 = vlaneseq
    %v2797 = vshrl.u32 %v2796, 7
    %v2798 = vsub.s32 %v2795, %v2797
    %v2799 = vrot.slane %v2791, %v2798
    %v2801 = vunpack.c.l.s4 1983009808
    %v2802 = vunpack.c.0.s8 %v2801
    %v2803 = vlaneseq
    %v2804 = vshrl.u32 %v2803, 7
    %v2805 = vsub.s32 %v2802, %v2804
    %v2806 = vrot.slane %v2792, %v2805
    %v2807 = vcombine.low %v2799, %v2806
    %v2808 = vsel %vm408, %v2790, 0
    %v2810 = vsel %vm408, %v2807, 0
    %2812 = vmatprep.subr.mxu0 0.0
    %2813 = vmatpush1.msra.mxu0 %v2250
    %2814 = vmatprep.subr.mxu0 0.0
    %2815 = vmatpush1.msra.mxu0 %v2251
    %2816 = vmatprep.subr.mxu0 0.0
    %2817 = vmatpush1.msra.mxu0 %v2252
    %2818 = vmatprep.subr.mxu0 0.0
    %2819 = vmatpush1.msra.mxu0 %v2253
    %2820 = vmatprep.subr.mxu0 0.0
    %2821 = vmatpush1.msra.mxu0 0.0
    %2822 = vmatprep.subr.mxu0 0.0
    %2823 = vmatpush1.msra.mxu0 0.0
    %2824 = vmatprep.subr.mxu0 0.0
    %2825 = vmatpush1.msra.mxu0 0.0
    %2826 = vmatprep.subr.mxu0 0.0
    %2827 = vmatpush1.msra.mxu0 0.0
    %2828 = vmatprep.subr.mxu0 0.0
    %2829 = vmatpush1.msra.mxu0 0.0
    %2830 = vmatprep.subr.mxu0 0.0
    %2831 = vmatpush1.msra.mxu0 0.0
    %2832 = vmatprep.subr.mxu0 0.0
    %2833 = vmatpush1.msra.mxu0 0.0
    %2834 = vmatprep.subr.mxu0 0.0
    %2835 = vmatpush1.msra.mxu0 0.0
    %2836 = vmatprep.subr.mxu0 0.0
    %2837 = vmatpush1.msra.mxu0 0.0
    %2838 = vmatprep.subr.mxu0 0.0
    %2839 = vmatpush1.msra.mxu0 0.0
    %2840 = vmatprep.subr.mxu0 0.0
    %2841 = vmatpush1.msra.mxu0 0.0
    %2842 = vmatprep.subr.mxu0 0.0
    %2843 = vmatpush1.msra.mxu0 0.0
    %2844 = vmatprep.subr.mxu0 0.0
    %2845 = vmatpush1.msra.mxu0 0.0
    %2846 = vmatprep.subr.mxu0 0.0
    %2847 = vmatpush1.msra.mxu0 0.0
    %2848 = vmatprep.subr.mxu0 0.0
    %2849 = vmatpush1.msra.mxu0 0.0
    %2850 = vmatprep.subr.mxu0 0.0
    %2851 = vmatpush1.msra.mxu0 0.0
    %2852 = vmatprep.subr.mxu0 0.0
    %2853 = vmatpush1.msra.mxu0 0.0
    %2854 = vmatprep.subr.mxu0 0.0
    %2855 = vmatpush1.msra.mxu0 0.0
    %2856 = vmatprep.subr.mxu0 0.0
    %2857 = vmatpush1.msra.mxu0 0.0
    %2858 = vmatprep.subr.mxu0 0.0
    %2859 = vmatpush1.msra.mxu0 0.0
    %2860 = vmatprep.subr.mxu0 0.0
    %2861 = vmatpush1.msra.mxu0 0.0
    %2862 = vmatprep.subr.mxu0 0.0
    %2863 = vmatpush1.msra.mxu0 0.0
    %2864 = vmatprep.subr.mxu0 0.0
    %2865 = vmatpush1.msra.mxu0 0.0
    %2866 = vmatprep.subr.mxu0 0.0
    %2867 = vmatpush1.msra.mxu0 0.0
    %2868 = vmatprep.subr.mxu0 0.0
    %2869 = vmatpush1.msra.mxu0 0.0
    %2870 = vmatprep.subr.mxu0 0.0
    %2871 = vmatpush1.msra.mxu0 0.0
    %2872 = vmatprep.subr.mxu0 0.0
    %2873 = vmatpush1.msra.mxu0 0.0
    %2874 = vmatprep.subr.mxu0 0.0
    %2875 = vmatpush1.msra.mxu0 0.0
    %2876 = vmatprep.mubr.f32.mxu0 0.0
    %2877 = vmatmul.mubr.f32.gmra.mrb[0].mxu0 %v2808
    %v2878 = vpop.f32.mrb[0].mxu0
    %v2879 = vadd.f32 0.0, %v2878
    %v2880 = vpop.f32.mrb[0].mxu0
    %2881 = vmatprep.mubr.f32.mxu0 0.0
    %2882 = vmatmul.mubr.f32.gmra.mrb[0].mxu0 %v2810
    %v2883 = vpop.f32.mrb[0].mxu0
    %v2884 = vadd.f32 0.0, %v2883
    %v2885 = vpop.f32.mrb[0].mxu0
    %2886 = vdwg.mxu0
    %v2887 = vmax.f32 %v2630, %v2879
    %v2888 = vmax.f32 %v2635, %v2884
    %v2889 = vsub.f32 %v2630, %v2887
    %v2890 = vsub.f32 %v2635, %v2888
    %v2891 = vmul.f32 %v2889, 1.442695
    %v2892 = vpow.pop %v2891
    %v2893 = vmul.f32 %v2890, 1.442695
    %v2894 = vpow.pop %v2893
    %v2895 = vsub.f32 %v2879, %v2887
    %v2896 = vsub.f32 %v2884, %v2888
    %v2897 = vmul.f32 %v2895, 1.442695
    %v2898 = vpow.pop %v2897
    %v2899 = vmul.f32 %v2896, 1.442695
    %v2900 = vpow.pop %v2899
    %v2901 = vadd.f32 %v2892, %v2898
    %v2902 = vadd.f32 %v2894, %v2900
    %v2903 = vrcp.pop %v2901
    %v2904 = vrcp.pop %v2902
    %v2905 = vmul.f32 %v2892, %v2903
    %v2906 = vmul.f32 %v2894, %v2904
    %vm2907 = vcmask 15360
    %v2909 = vsel %vm2907, %v2905, 0
    %v2912 = vsel %vm2907, %v2906, 0
    %vm2914 = vcmask 1041408
    %v2916 = vsel %vm2914, %v2254, 0
    %2918 = vmatprep.subr.mxu0 0.0
    %2919 = vmatpush1.msra.mxu0 %v2916
    %2920 = vmatprep.subr.mxu0 0.0
    %2921 = vmatpush1.msra.mxu0 0.0
    %2922 = vmatprep.subr.mxu0 0.0
    %2923 = vmatpush1.msra.mxu0 0.0
    %2924 = vmatprep.subr.mxu0 0.0
    %2925 = vmatpush1.msra.mxu0 0.0
    %2926 = vmatprep.subr.mxu0 0.0
    %2927 = vmatpush1.msra.mxu0 0.0
    %2928 = vmatprep.subr.mxu0 0.0
    %2929 = vmatpush1.msra.mxu0 0.0
    %2930 = vmatprep.subr.mxu0 0.0
    %2931 = vmatpush1.msra.mxu0 0.0
    %2932 = vmatprep.subr.mxu0 0.0
    %2933 = vmatpush1.msra.mxu0 0.0
    %2934 = vmatprep.subr.mxu0 0.0
    %2935 = vmatpush1.msra.mxu0 0.0
    %2936 = vmatprep.subr.mxu0 0.0
    %2937 = vmatpush1.msra.mxu0 0.0
    %2938 = vmatprep.subr.mxu0 0.0
    %2939 = vmatpush1.msra.mxu0 0.0
    %2940 = vmatprep.subr.mxu0 0.0
    %2941 = vmatpush1.msra.mxu0 0.0
    %2942 = vmatprep.subr.mxu0 0.0
    %2943 = vmatpush1.msra.mxu0 0.0
    %2944 = vmatprep.subr.mxu0 0.0
    %2945 = vmatpush1.msra.mxu0 0.0
    %2946 = vmatprep.subr.mxu0 0.0
    %2947 = vmatpush1.msra.mxu0 0.0
    %2948 = vmatprep.subr.mxu0 0.0
    %2949 = vmatpush1.msra.mxu0 0.0
    %2950 = vmatprep.subr.mxu0 0.0
    %2951 = vmatpush1.msra.mxu0 0.0
    %2952 = vmatprep.subr.mxu0 0.0
    %2953 = vmatpush1.msra.mxu0 0.0
    %2954 = vmatprep.subr.mxu0 0.0
    %2955 = vmatpush1.msra.mxu0 0.0
    %2956 = vmatprep.subr.mxu0 0.0
    %2957 = vmatpush1.msra.mxu0 0.0
    %2958 = vmatprep.subr.mxu0 0.0
    %2959 = vmatpush1.msra.mxu0 0.0
    %2960 = vmatprep.subr.mxu0 0.0
    %2961 = vmatpush1.msra.mxu0 0.0
    %2962 = vmatprep.subr.mxu0 0.0
    %2963 = vmatpush1.msra.mxu0 0.0
    %2964 = vmatprep.subr.mxu0 0.0
    %2965 = vmatpush1.msra.mxu0 0.0
    %2966 = vmatprep.subr.mxu0 0.0
    %2967 = vmatpush1.msra.mxu0 0.0
    %2968 = vmatprep.subr.mxu0 0.0
    %2969 = vmatpush1.msra.mxu0 0.0
    %2970 = vmatprep.subr.mxu0 0.0
    %2971 = vmatpush1.msra.mxu0 0.0
    %2972 = vmatprep.subr.mxu0 0.0
    %2973 = vmatpush1.msra.mxu0 0.0
    %2974 = vmatprep.subr.mxu0 0.0
    %2975 = vmatpush1.msra.mxu0 0.0
    %2976 = vmatprep.subr.mxu0 0.0
    %2977 = vmatpush1.msra.mxu0 0.0
    %2978 = vmatprep.subr.mxu0 0.0
    %2979 = vmatpush1.msra.mxu0 0.0
    %2980 = vmatprep.subr.mxu0 0.0
    %2981 = vmatpush1.msra.mxu0 0.0
    %2982 = vmatprep.mubr.f32.mxu0 0.0
    %2983 = vmatmul.mubr.f32.gmra.mrb[0].mxu0 %v2909
    %v2984 = vpop.f32.mrb[0].mxu0
    %v2985 = vadd.f32 0.0, %v2984
    %v2986 = vpop.f32.mrb[0].mxu0
    %2987 = vmatprep.mubr.f32.mxu0 0.0
    %2988 = vmatmul.mubr.f32.gmra.mrb[0].mxu0 %v2912
    %v2989 = vpop.f32.mrb[0].mxu0
    %v2990 = vadd.f32 0.0, %v2989
    %v2991 = vpop.f32.mrb[0].mxu0
    %2992 = vdwg.mxu0
    %v2995 = vcombine.high %v2985, %v2985
    %v2997 = vunpack.c.l.s4 1983009808
    %v2998 = vunpack.c.0.s8 %v2997
    %v2999 = vlaneseq
    %v3000 = vshrl.u32 %v2999, 7
    %v3001 = vsub.s32 %v2998, %v3000
    %v3002 = vrot.slane %v2985, %v3001
    %v3004 = vunpack.c.l.s4 1983009808
    %v3005 = vunpack.c.0.s8 %v3004
    %v3006 = vlaneseq
    %v3007 = vshrl.u32 %v3006, 7
    %v3008 = vsub.s32 %v3005, %v3007
    %v3009 = vrot.slane %v2995, %v3008
    %v3010 = vcombine.high %v3002, %v3002
    %v3011 = vcombine.high %v3009, %v3009
    %v3012 = vcombine.high %v2990, %v2990
    %v3014 = vunpack.c.l.s4 1983009808
    %v3015 = vunpack.c.0.s8 %v3014
    %v3016 = vlaneseq
    %v3017 = vshrl.u32 %v3016, 7
    %v3018 = vsub.s32 %v3015, %v3017
    %v3019 = vrot.slane %v2990, %v3018
    %v3021 = vunpack.c.l.s4 1983009808
    %v3022 = vunpack.c.0.s8 %v3021
    %v3023 = vlaneseq
    %v3024 = vshrl.u32 %v3023, 7
    %v3025 = vsub.s32 %v3022, %v3024
    %v3026 = vrot.slane %v3012, %v3025
    %v3027 = vcombine.high %v3019, %v3019
    %v3028 = vcombine.high %v3026, %v3026
    %3037 = vrot.lane.b32.xlu0 %v2435, 64
    %v3038 = vpop.permute.xlu0 %3037
    %3039 = vrot.lane.b32.xlu0 %v2442, 64
    %v3040 = vpop.permute.xlu0 %3039
    %3041 = vrot.lane.b32.xlu0 %v2449, 64
    %v3042 = vpop.permute.xlu0 %3041
    %3043 = vrot.lane.b32.xlu0 %v2456, 64
    %v3044 = vpop.permute.xlu0 %3043
    %3045 = vrot.lane.b32.xlu0 %v2463, 64
    %v3046 = vpop.permute.xlu0 %3045
    %3047 = vrot.lane.b32.xlu0 %v2470, 64
    %v3048 = vpop.permute.xlu0 %3047
    %3049 = vrot.lane.b32.xlu0 %v2477, 64
    %v3050 = vpop.permute.xlu0 %3049
    %3051 = vrot.lane.b32.xlu0 %v2484, 64
    %v3052 = vpop.permute.xlu0 %3051
    %v3061 = vmul.f32 %v3002, %v3038
    %v3062 = vmul.f32 %v3010, %v3040
    %v3063 = vmul.f32 %v3009, %v3042
    %v3064 = vmul.f32 %v3011, %v3044
    %v3065 = vmul.f32 %v3019, %v3046
    %v3066 = vmul.f32 %v3027, %v3048
    %v3067 = vmul.f32 %v3026, %v3050
    %v3068 = vmul.f32 %v3028, %v3052
    %v3069 = vmul.f32 %v2898, %v2903
    %v3070 = vmul.f32 %v2900, %v2904
    %v3072 = vsel %vm2907, %v3069, 0
    %v3075 = vsel %vm2907, %v3070, 0
    %3077 = vmatprep.subr.mxu0 0.0
    %3078 = vmatpush1.msra.mxu0 %v2916
    %3079 = vmatprep.subr.mxu0 0.0
    %3080 = vmatpush1.msra.mxu0 0.0
    %3081 = vmatprep.subr.mxu0 0.0
    %3082 = vmatpush1.msra.mxu0 0.0
    %3083 = vmatprep.subr.mxu0 0.0
    %3084 = vmatpush1.msra.mxu0 0.0
    %3085 = vmatprep.subr.mxu0 0.0
    %3086 = vmatpush1.msra.mxu0 0.0
    %3087 = vmatprep.subr.mxu0 0.0
    %3088 = vmatpush1.msra.mxu0 0.0
    %3089 = vmatprep.subr.mxu0 0.0
    %3090 = vmatpush1.msra.mxu0 0.0
    %3091 = vmatprep.subr.mxu0 0.0
    %3092 = vmatpush1.msra.mxu0 0.0
    %3093 = vmatprep.subr.mxu0 0.0
    %3094 = vmatpush1.msra.mxu0 0.0
    %3095 = vmatprep.subr.mxu0 0.0
    %3096 = vmatpush1.msra.mxu0 0.0
    %3097 = vmatprep.subr.mxu0 0.0
    %3098 = vmatpush1.msra.mxu0 0.0
    %3099 = vmatprep.subr.mxu0 0.0
    %3100 = vmatpush1.msra.mxu0 0.0
    %3101 = vmatprep.subr.mxu0 0.0
    %3102 = vmatpush1.msra.mxu0 0.0
    %3103 = vmatprep.subr.mxu0 0.0
    %3104 = vmatpush1.msra.mxu0 0.0
    %3105 = vmatprep.subr.mxu0 0.0
    %3106 = vmatpush1.msra.mxu0 0.0
    %3107 = vmatprep.subr.mxu0 0.0
    %3108 = vmatpush1.msra.mxu0 0.0
    %3109 = vmatprep.subr.mxu0 0.0
    %3110 = vmatpush1.msra.mxu0 0.0
    %3111 = vmatprep.subr.mxu0 0.0
    %3112 = vmatpush1.msra.mxu0 0.0
    %3113 = vmatprep.subr.mxu0 0.0
    %3114 = vmatpush1.msra.mxu0 0.0
    %3115 = vmatprep.subr.mxu0 0.0
    %3116 = vmatpush1.msra.mxu0 0.0
    %3117 = vmatprep.subr.mxu0 0.0
    %3118 = vmatpush1.msra.mxu0 0.0
    %3119 = vmatprep.subr.mxu0 0.0
    %3120 = vmatpush1.msra.mxu0 0.0
    %3121 = vmatprep.subr.mxu0 0.0
    %3122 = vmatpush1.msra.mxu0 0.0
    %3123 = vmatprep.subr.mxu0 0.0
    %3124 = vmatpush1.msra.mxu0 0.0
    %3125 = vmatprep.subr.mxu0 0.0
    %3126 = vmatpush1.msra.mxu0 0.0
    %3127 = vmatprep.subr.mxu0 0.0
    %3128 = vmatpush1.msra.mxu0 0.0
    %3129 = vmatprep.subr.mxu0 0.0
    %3130 = vmatpush1.msra.mxu0 0.0
    %3131 = vmatprep.subr.mxu0 0.0
    %3132 = vmatpush1.msra.mxu0 0.0
    %3133 = vmatprep.subr.mxu0 0.0
    %3134 = vmatpush1.msra.mxu0 0.0
    %3135 = vmatprep.subr.mxu0 0.0
    %3136 = vmatpush1.msra.mxu0 0.0
    %3137 = vmatprep.subr.mxu0 0.0
    %3138 = vmatpush1.msra.mxu0 0.0
    %3139 = vmatprep.subr.mxu0 0.0
    %3140 = vmatpush1.msra.mxu0 0.0
    %3141 = vmatprep.mubr.f32.mxu0 0.0
    %3142 = vmatmul.mubr.f32.gmra.mrb[0].mxu0 %v3072
    %v3143 = vpop.f32.mrb[0].mxu0
    %v3144 = vadd.f32 0.0, %v3143
    %v3145 = vpop.f32.mrb[0].mxu0
    %3146 = vmatprep.mubr.f32.mxu0 0.0
    %3147 = vmatmul.mubr.f32.gmra.mrb[0].mxu0 %v3075
    %v3148 = vpop.f32.mrb[0].mxu0
    %v3149 = vadd.f32 0.0, %v3148
    %v3150 = vpop.f32.mrb[0].mxu0
    %3151 = vdwg.mxu0
    %v3154 = vcombine.high %v3144, %v3144
    %v3156 = vunpack.c.l.s4 1983009808
    %v3157 = vunpack.c.0.s8 %v3156
    %v3158 = vlaneseq
    %v3159 = vshrl.u32 %v3158, 7
    %v3160 = vsub.s32 %v3157, %v3159
    %v3161 = vrot.slane %v3144, %v3160
    %v3163 = vunpack.c.l.s4 1983009808
    %v3164 = vunpack.c.0.s8 %v3163
    %v3165 = vlaneseq
    %v3166 = vshrl.u32 %v3165, 7
    %v3167 = vsub.s32 %v3164, %v3166
    %v3168 = vrot.slane %v3154, %v3167
    %v3169 = vcombine.high %v3161, %v3161
    %v3170 = vcombine.high %v3168, %v3168
    %v3171 = vcombine.high %v3149, %v3149
    %v3173 = vunpack.c.l.s4 1983009808
    %v3174 = vunpack.c.0.s8 %v3173
    %v3175 = vlaneseq
    %v3176 = vshrl.u32 %v3175, 7
    %v3177 = vsub.s32 %v3174, %v3176
    %v3178 = vrot.slane %v3149, %v3177
    %v3180 = vunpack.c.l.s4 1983009808
    %v3181 = vunpack.c.0.s8 %v3180
    %v3182 = vlaneseq
    %v3183 = vshrl.u32 %v3182, 7
    %v3184 = vsub.s32 %v3181, %v3183
    %v3185 = vrot.slane %v3171, %v3184
    %v3186 = vcombine.high %v3178, %v3178
    %v3187 = vcombine.high %v3185, %v3185
    %3196 = vrot.lane.b32.xlu0 %v2684, 64
    %v3197 = vpop.permute.xlu0 %3196
    %3198 = vrot.lane.b32.xlu0 %v2691, 64
    %v3199 = vpop.permute.xlu0 %3198
    %3200 = vrot.lane.b32.xlu0 %v2698, 64
    %v3201 = vpop.permute.xlu0 %3200
    %3202 = vrot.lane.b32.xlu0 %v2705, 64
    %v3203 = vpop.permute.xlu0 %3202
    %3204 = vrot.lane.b32.xlu0 %v2712, 64
    %v3205 = vpop.permute.xlu0 %3204
    %3206 = vrot.lane.b32.xlu0 %v2719, 64
    %v3207 = vpop.permute.xlu0 %3206
    %3208 = vrot.lane.b32.xlu0 %v2726, 64
    %v3209 = vpop.permute.xlu0 %3208
    %3210 = vrot.lane.b32.xlu0 %v2733, 64
    %v3211 = vpop.permute.xlu0 %3210
    %v3220 = vmul.f32 %v3161, %v3197
    %v3221 = vmul.f32 %v3169, %v3199
    %v3222 = vmul.f32 %v3168, %v3201
    %v3223 = vmul.f32 %v3170, %v3203
    %v3224 = vmul.f32 %v3178, %v3205
    %v3225 = vmul.f32 %v3186, %v3207
    %v3226 = vmul.f32 %v3185, %v3209
    %v3227 = vmul.f32 %v3187, %v3211
    %v3228 = vadd.f32 %v3061, %v3220
    %v3229 = vadd.f32 %v3062, %v3221
    %v3230 = vadd.f32 %v3063, %v3222
    %v3231 = vadd.f32 %v3064, %v3223
    %v3232 = vadd.f32 %v3065, %v3224
    %v3233 = vadd.f32 %v3066, %v3225
    %v3234 = vadd.f32 %v3067, %v3226
    %v3235 = vadd.f32 %v3068, %v3227
    %v3236 = vld [vmem:[#allocation6 + $0xa0] sm:$0xff]
    %v3237 = vld [vmem:[#allocation6 + $0xa8] sm:$0xff]
    %v3238 = vld [vmem:[#allocation6 + $0xb0] sm:$0xff]
    %v3239 = vld [vmem:[#allocation6 + $0xb8] sm:$0xff]
    %v3240 = vld [vmem:[#allocation8 + $0x3] sm:$0x1]
    %v3241 = vlaneseq
    %v3242 = vshrl.u32 %v3241, 7
    %v3243 = vsub.s32 0, %v3242
    %v3244 = vrot.slane %v3240, %v3243
    %v3253 = vcombine.low %v3228, %v3229
    %v3254 = vcombine.low %v3230, %v3231
    %v3256 = vunpack.c.l.s4 1983009808
    %v3257 = vunpack.c.0.s8 %v3256
    %v3258 = vlaneseq
    %v3259 = vshrl.u32 %v3258, 7
    %v3260 = vsub.s32 %v3257, %v3259
    %v3261 = vrot.slane %v3253, %v3260
    %v3263 = vunpack.c.l.s4 1983009808
    %v3264 = vunpack.c.0.s8 %v3263
    %v3265 = vlaneseq
    %v3266 = vshrl.u32 %v3265, 7
    %v3267 = vsub.s32 %v3264, %v3266
    %v3268 = vrot.slane %v3254, %v3267
    %v3269 = vcombine.low %v3261, %v3268
    %v3270 = vcombine.low %v3232, %v3233
    %v3271 = vcombine.low %v3234, %v3235
    %v3273 = vunpack.c.l.s4 1983009808
    %v3274 = vunpack.c.0.s8 %v3273
    %v3275 = vlaneseq
    %v3276 = vshrl.u32 %v3275, 7
    %v3277 = vsub.s32 %v3274, %v3276
    %v3278 = vrot.slane %v3270, %v3277
    %v3280 = vunpack.c.l.s4 1983009808
    %v3281 = vunpack.c.0.s8 %v3280
    %v3282 = vlaneseq
    %v3283 = vshrl.u32 %v3282, 7
    %v3284 = vsub.s32 %v3281, %v3283
    %v3285 = vrot.slane %v3271, %v3284
    %v3286 = vcombine.low %v3278, %v3285
    %v3287 = vsel %vm408, %v3269, 0
    %v3289 = vsel %vm408, %v3286, 0
    %3291 = vmatprep.subr.mxu0 0.0
    %3292 = vmatpush1.msra.mxu0 %v3236
    %3293 = vmatprep.subr.mxu0 0.0
    %3294 = vmatpush1.msra.mxu0 %v3237
    %3295 = vmatprep.subr.mxu0 0.0
    %3296 = vmatpush1.msra.mxu0 %v3238
    %3297 = vmatprep.subr.mxu0 0.0
    %3298 = vmatpush1.msra.mxu0 %v3239
    %3299 = vmatprep.subr.mxu0 0.0
    %3300 = vmatpush1.msra.mxu0 0.0
    %3301 = vmatprep.subr.mxu0 0.0
    %3302 = vmatpush1.msra.mxu0 0.0
    %3303 = vmatprep.subr.mxu0 0.0
    %3304 = vmatpush1.msra.mxu0 0.0
    %3305 = vmatprep.subr.mxu0 0.0
    %3306 = vmatpush1.msra.mxu0 0.0
    %3307 = vmatprep.subr.mxu0 0.0
    %3308 = vmatpush1.msra.mxu0 0.0
    %3309 = vmatprep.subr.mxu0 0.0
    %3310 = vmatpush1.msra.mxu0 0.0
    %3311 = vmatprep.subr.mxu0 0.0
    %3312 = vmatpush1.msra.mxu0 0.0
    %3313 = vmatprep.subr.mxu0 0.0
    %3314 = vmatpush1.msra.mxu0 0.0
    %3315 = vmatprep.subr.mxu0 0.0
    %3316 = vmatpush1.msra.mxu0 0.0
    %3317 = vmatprep.subr.mxu0 0.0
    %3318 = vmatpush1.msra.mxu0 0.0
    %3319 = vmatprep.subr.mxu0 0.0
    %3320 = vmatpush1.msra.mxu0 0.0
    %3321 = vmatprep.subr.mxu0 0.0
    %3322 = vmatpush1.msra.mxu0 0.0
    %3323 = vmatprep.subr.mxu0 0.0
    %3324 = vmatpush1.msra.mxu0 0.0
    %3325 = vmatprep.subr.mxu0 0.0
    %3326 = vmatpush1.msra.mxu0 0.0
    %3327 = vmatprep.subr.mxu0 0.0
    %3328 = vmatpush1.msra.mxu0 0.0
    %3329 = vmatprep.subr.mxu0 0.0
    %3330 = vmatpush1.msra.mxu0 0.0
    %3331 = vmatprep.subr.mxu0 0.0
    %3332 = vmatpush1.msra.mxu0 0.0
    %3333 = vmatprep.subr.mxu0 0.0
    %3334 = vmatpush1.msra.mxu0 0.0
    %3335 = vmatprep.subr.mxu0 0.0
    %3336 = vmatpush1.msra.mxu0 0.0
    %3337 = vmatprep.subr.mxu0 0.0
    %3338 = vmatpush1.msra.mxu0 0.0
    %3339 = vmatprep.subr.mxu0 0.0
    %3340 = vmatpush1.msra.mxu0 0.0
    %3341 = vmatprep.subr.mxu0 0.0
    %3342 = vmatpush1.msra.mxu0 0.0
    %3343 = vmatprep.subr.mxu0 0.0
    %3344 = vmatpush1.msra.mxu0 0.0
    %3345 = vmatprep.subr.mxu0 0.0
    %3346 = vmatpush1.msra.mxu0 0.0
    %3347 = vmatprep.subr.mxu0 0.0
    %3348 = vmatpush1.msra.mxu0 0.0
    %3349 = vmatprep.subr.mxu0 0.0
    %3350 = vmatpush1.msra.mxu0 0.0
    %3351 = vmatprep.subr.mxu0 0.0
    %3352 = vmatpush1.msra.mxu0 0.0
    %3353 = vmatprep.subr.mxu0 0.0
    %3354 = vmatpush1.msra.mxu0 0.0
    %3355 = vmatprep.mubr.f32.mxu0 0.0
    %3356 = vmatmul.mubr.f32.gmra.mrb[0].mxu0 %v3287
    %v3357 = vpop.f32.mrb[0].mxu0
    %v3358 = vadd.f32 %v3244, %v3357
    %v3359 = vpop.f32.mrb[0].mxu0
    %3360 = vmatprep.mubr.f32.mxu0 0.0
    %3361 = vmatmul.mubr.f32.gmra.mrb[0].mxu0 %v3289
    %v3362 = vpop.f32.mrb[0].mxu0
    %v3363 = vadd.f32 %v3244, %v3362
    %v3364 = vpop.f32.mrb[0].mxu0
    %3365 = vdwg.mxu0
    %v3366 = vadd.f32 %v2248, %v3358
    %v3367 = vadd.f32 %v2249, %v3363
    %v3368 = vld [vmem:[#allocation8 + $0x6] sm:$0x1]
    %v3369 = vld [vmem:[#allocation8 + $0x7] sm:$0x1]
    %v3370 = vsel %vm408, %v3366, 0.0
    %3371 = vadd.xlane.f32.xlu0 %v3370
    %v3372 = vpop.xlane.xlu0 %3371
    %v3373 = vsel %vm408, %v3367, 0.0
    %3374 = vadd.xlane.f32.xlu0 %v3373
    %v3375 = vpop.xlane.xlu0 %3374
    %v3376 = vrcp.pop 32.0
    %v3377 = vmul.f32 %v3372, %v3376
    %v3378 = vmul.f32 %v3375, %v3376
    %v3379 = vmul.f32 %v3366, %v3366
    %v3380 = vmul.f32 %v3367, %v3367
    %v3381 = vsel %vm408, %v3379, 0.0
    %3382 = vadd.xlane.f32.xlu0 %v3381
    %v3383 = vpop.xlane.xlu0 %3382
    %v3384 = vsel %vm408, %v3380, 0.0
    %3385 = vadd.xlane.f32.xlu0 %v3384
    %v3386 = vpop.xlane.xlu0 %3385
    %v3387 = vmul.f32 %v3383, %v3376
    %v3388 = vmul.f32 %v3386, %v3376
    %v3389 = vmul.f32 %v3377, %v3377
    %v3390 = vmul.f32 %v3378, %v3378
    %v3391 = vsub.f32 %v3387, %v3389
    %v3392 = vsub.f32 %v3388, %v3390
    %v3393 = vsub.f32 %v3366, %v3377
    %v3394 = vsub.f32 %v3367, %v3378
    %v3395 = vadd.f32 %v3391, 1e-05
    %v3396 = vadd.f32 %v3392, 1e-05
    %v3397 = vrsqrt.pop %v3395
    %v3398 = vrsqrt.pop %v3396
    %v3399 = vmul.f32 %v3393, %v3397
    %v3400 = vmul.f32 %v3394, %v3398
    %v3401 = vlaneseq
    %v3402 = vshrl.u32 %v3401, 7
    %v3403 = vsub.s32 0, %v3402
    %v3404 = vrot.slane %v3368, %v3403
    %v3405 = vmul.f32 %v3399, %v3404
    %v3406 = vmul.f32 %v3400, %v3404
    %v3407 = vlaneseq
    %v3408 = vshrl.u32 %v3407, 7
    %v3409 = vsub.s32 0, %v3408
    %v3410 = vrot.slane %v3369, %v3409
    %v3411 = vadd.f32 %v3405, %v3410
    %v3412 = vadd.f32 %v3406, %v3410
    %v3413 = vld [vmem:[#allocation6 + $0xc0] sm:$0xff]
    %v3414 = vld [vmem:[#allocation6 + $0xc8] sm:$0xff]
    %v3415 = vld [vmem:[#allocation6 + $0xd0] sm:$0xff]
    %v3416 = vld [vmem:[#allocation6 + $0xd8] sm:$0xff]
    %v3417 = vld [vmem:[#allocation8 + $0x4] sm:$0x1]
    %v3418 = vlaneseq
    %v3419 = vshrl.u32 %v3418, 7
    %v3420 = vsub.s32 0, %v3419
    %v3421 = vrot.slane %v3417, %v3420
    %v3423 = vsel %vm408, %v3411, 0
    %v3426 = vsel %vm408, %v3412, 0
    %3428 = vmatprep.subr.mxu0 0.0
    %3429 = vmatpush1.msra.mxu0 %v3413
    %3430 = vmatprep.subr.mxu0 0.0
    %3431 = vmatpush1.msra.mxu0 %v3414
    %3432 = vmatprep.subr.mxu0 0.0
    %3433 = vmatpush1.msra.mxu0 %v3415
    %3434 = vmatprep.subr.mxu0 0.0
    %3435 = vmatpush1.msra.mxu0 %v3416
    %3436 = vmatprep.subr.mxu0 0.0
    %3437 = vmatpush1.msra.mxu0 0.0
    %3438 = vmatprep.subr.mxu0 0.0
    %3439 = vmatpush1.msra.mxu0 0.0
    %3440 = vmatprep.subr.mxu0 0.0
    %3441 = vmatpush1.msra.mxu0 0.0
    %3442 = vmatprep.subr.mxu0 0.0
    %3443 = vmatpush1.msra.mxu0 0.0
    %3444 = vmatprep.subr.mxu0 0.0
    %3445 = vmatpush1.msra.mxu0 0.0
    %3446 = vmatprep.subr.mxu0 0.0
    %3447 = vmatpush1.msra.mxu0 0.0
    %3448 = vmatprep.subr.mxu0 0.0
    %3449 = vmatpush1.msra.mxu0 0.0
    %3450 = vmatprep.subr.mxu0 0.0
    %3451 = vmatpush1.msra.mxu0 0.0
    %3452 = vmatprep.subr.mxu0 0.0
    %3453 = vmatpush1.msra.mxu0 0.0
    %3454 = vmatprep.subr.mxu0 0.0
    %3455 = vmatpush1.msra.mxu0 0.0
    %3456 = vmatprep.subr.mxu0 0.0
    %3457 = vmatpush1.msra.mxu0 0.0
    %3458 = vmatprep.subr.mxu0 0.0
    %3459 = vmatpush1.msra.mxu0 0.0
    %3460 = vmatprep.subr.mxu0 0.0
    %3461 = vmatpush1.msra.mxu0 0.0
    %3462 = vmatprep.subr.mxu0 0.0
    %3463 = vmatpush1.msra.mxu0 0.0
    %3464 = vmatprep.subr.mxu0 0.0
    %3465 = vmatpush1.msra.mxu0 0.0
    %3466 = vmatprep.subr.mxu0 0.0
    %3467 = vmatpush1.msra.mxu0 0.0
    %3468 = vmatprep.subr.mxu0 0.0
    %3469 = vmatpush1.msra.mxu0 0.0
    %3470 = vmatprep.subr.mxu0 0.0
    %3471 = vmatpush1.msra.mxu0 0.0
    %3472 = vmatprep.subr.mxu0 0.0
    %3473 = vmatpush1.msra.mxu0 0.0
    %3474 = vmatprep.subr.mxu0 0.0
    %3475 = vmatpush1.msra.mxu0 0.0
    %3476 = vmatprep.subr.mxu0 0.0
    %3477 = vmatpush1.msra.mxu0 0.0
    %3478 = vmatprep.subr.mxu0 0.0
    %3479 = vmatpush1.msra.mxu0 0.0
    %3480 = vmatprep.subr.mxu0 0.0
    %3481 = vmatpush1.msra.mxu0 0.0
    %3482 = vmatprep.subr.mxu0 0.0
    %3483 = vmatpush1.msra.mxu0 0.0
    %3484 = vmatprep.subr.mxu0 0.0
    %3485 = vmatpush1.msra.mxu0 0.0
    %3486 = vmatprep.subr.mxu0 0.0
    %3487 = vmatpush1.msra.mxu0 0.0
    %3488 = vmatprep.subr.mxu0 0.0
    %3489 = vmatpush1.msra.mxu0 0.0
    %3490 = vmatprep.subr.mxu0 0.0
    %3491 = vmatpush1.msra.mxu0 0.0
    %3492 = vmatprep.mubr.f32.mxu0 0.0
    %3493 = vmatmul.mubr.f32.gmra.mrb[0].mxu0 %v3423
    %v3494 = vpop.f32.mrb[0].mxu0
    %v3495 = vadd.f32 %v3421, %v3494
    %v3496 = vpop.f32.mrb[0].mxu0
    %3497 = vmatprep.mubr.f32.mxu0 0.0
    %3498 = vmatmul.mubr.f32.gmra.mrb[0].mxu0 %v3426
    %v3499 = vpop.f32.mrb[0].mxu0
    %v3500 = vadd.f32 %v3421, %v3499
    %v3501 = vpop.f32.mrb[0].mxu0
    %3502 = vdwg.mxu0
    %v3503 = vmax.f32 %v3495, 0.0
    %v3504 = vmax.f32 %v3500, 0.0
    %v3505 = vld [vmem:[#allocation6 + $0xe0] sm:$0xff]
    %v3506 = vld [vmem:[#allocation6 + $0xe8] sm:$0xff]
    %v3507 = vld [vmem:[#allocation6 + $0xf0] sm:$0xff]
    %v3508 = vld [vmem:[#allocation6 + $0xf8] sm:$0xff]
    %v3509 = vld [vmem:[#allocation6 + $0x100] sm:$0xff]
    %v3510 = vld [vmem:[#allocation6 + $0x108] sm:$0xff]
    %v3511 = vld [vmem:[#allocation6 + $0x110] sm:$0xff]
    %v3512 = vld [vmem:[#allocation6 + $0x118] sm:$0xff]
    %v3513 = vld [vmem:[#allocation8 + $0x5] sm:$0x1]
    %v3514 = vlaneseq
    %v3515 = vshrl.u32 %v3514, 7
    %v3516 = vsub.s32 0, %v3515
    %v3517 = vrot.slane %v3513, %v3516
    %vm3518 = vcmask 523264
    %v3520 = vsel %vm3518, %v3503, 0
    %v3523 = vsel %vm3518, %v3504, 0
    %3525 = vmatprep.subr.mxu0 0.0
    %3526 = vmatpush1.msra.mxu0 %v3505
    %3527 = vmatprep.subr.mxu0 0.0
    %3528 = vmatpush1.msra.mxu0 %v3506
    %3529 = vmatprep.subr.mxu0 0.0
    %3530 = vmatpush1.msra.mxu0 %v3507
    %3531 = vmatprep.subr.mxu0 0.0
    %3532 = vmatpush1.msra.mxu0 %v3508
    %3533 = vmatprep.subr.mxu0 0.0
    %3534 = vmatpush1.msra.mxu0 %v3509
    %3535 = vmatprep.subr.mxu0 0.0
    %3536 = vmatpush1.msra.mxu0 %v3510
    %3537 = vmatprep.subr.mxu0 0.0
    %3538 = vmatpush1.msra.mxu0 %v3511
    %3539 = vmatprep.subr.mxu0 0.0
    %3540 = vmatpush1.msra.mxu0 %v3512
    %3541 = vmatprep.subr.mxu0 0.0
    %3542 = vmatpush1.msra.mxu0 0.0
    %3543 = vmatprep.subr.mxu0 0.0
    %3544 = vmatpush1.msra.mxu0 0.0
    %3545 = vmatprep.subr.mxu0 0.0
    %3546 = vmatpush1.msra.mxu0 0.0
    %3547 = vmatprep.subr.mxu0 0.0
    %3548 = vmatpush1.msra.mxu0 0.0
    %3549 = vmatprep.subr.mxu0 0.0
    %3550 = vmatpush1.msra.mxu0 0.0
    %3551 = vmatprep.subr.mxu0 0.0
    %3552 = vmatpush1.msra.mxu0 0.0
    %3553 = vmatprep.subr.mxu0 0.0
    %3554 = vmatpush1.msra.mxu0 0.0
    %3555 = vmatprep.subr.mxu0 0.0
    %3556 = vmatpush1.msra.mxu0 0.0
    %3557 = vmatprep.subr.mxu0 0.0
    %3558 = vmatpush1.msra.mxu0 0.0
    %3559 = vmatprep.subr.mxu0 0.0
    %3560 = vmatpush1.msra.mxu0 0.0
    %3561 = vmatprep.subr.mxu0 0.0
    %3562 = vmatpush1.msra.mxu0 0.0
    %3563 = vmatprep.subr.mxu0 0.0
    %3564 = vmatpush1.msra.mxu0 0.0
    %3565 = vmatprep.subr.mxu0 0.0
    %3566 = vmatpush1.msra.mxu0 0.0
    %3567 = vmatprep.subr.mxu0 0.0
    %3568 = vmatpush1.msra.mxu0 0.0
    %3569 = vmatprep.subr.mxu0 0.0
    %3570 = vmatpush1.msra.mxu0 0.0
    %3571 = vmatprep.subr.mxu0 0.0
    %3572 = vmatpush1.msra.mxu0 0.0
    %3573 = vmatprep.subr.mxu0 0.0
    %3574 = vmatpush1.msra.mxu0 0.0
    %3575 = vmatprep.subr.mxu0 0.0
    %3576 = vmatpush1.msra.mxu0 0.0
    %3577 = vmatprep.subr.mxu0 0.0
    %3578 = vmatpush1.msra.mxu0 0.0
    %3579 = vmatprep.subr.mxu0 0.0
    %3580 = vmatpush1.msra.mxu0 0.0
    %3581 = vmatprep.subr.mxu0 0.0
    %3582 = vmatpush1.msra.mxu0 0.0
    %3583 = vmatprep.subr.mxu0 0.0
    %3584 = vmatpush1.msra.mxu0 0.0
    %3585 = vmatprep.subr.mxu0 0.0
    %3586 = vmatpush1.msra.mxu0 0.0
    %3587 = vmatprep.subr.mxu0 0.0
    %3588 = vmatpush1.msra.mxu0 0.0
    %3589 = vmatprep.mubr.f32.mxu0 0.0
    %3590 = vmatmul.mubr.f32.gmra.mrb[0].mxu0 %v3520
    %v3591 = vpop.f32.mrb[0].mxu0
    %v3592 = vadd.f32 %v3517, %v3591
    %v3593 = vpop.f32.mrb[0].mxu0
    %3594 = vmatprep.mubr.f32.mxu0 0.0
    %3595 = vmatmul.mubr.f32.gmra.mrb[0].mxu0 %v3523
    %v3596 = vpop.f32.mrb[0].mxu0
    %v3597 = vadd.f32 %v3517, %v3596
    %v3598 = vpop.f32.mrb[0].mxu0
    %3599 = vdwg.mxu0
    %v3600 = vadd.f32 %v3411, %v3592
    %v3601 = vadd.f32 %v3412, %v3597
    %v3602 = vld [vmem:[#allocation8 + $0x8] sm:$0x1]
    %v3603 = vld [vmem:[#allocation8 + $0x9] sm:$0x1]
    %v3604 = vsel %vm408, %v3600, 0.0
    %3605 = vadd.xlane.f32.xlu0 %v3604
    %v3606 = vpop.xlane.xlu0 %3605
    %v3607 = vsel %vm408, %v3601, 0.0
    %3608 = vadd.xlane.f32.xlu0 %v3607
    %v3609 = vpop.xlane.xlu0 %3608
    %v3610 = vmul.f32 %v3606, %v3376
    %v3611 = vmul.f32 %v3609, %v3376
    %v3612 = vmul.f32 %v3600, %v3600
    %v3613 = vmul.f32 %v3601, %v3601
    %v3614 = vsel %vm408, %v3612, 0.0
    %3615 = vadd.xlane.f32.xlu0 %v3614
    %v3616 = vpop.xlane.xlu0 %3615
    %v3617 = vsel %vm408, %v3613, 0.0
    %3618 = vadd.xlane.f32.xlu0 %v3617
    %v3619 = vpop.xlane.xlu0 %3618
    %v3620 = vmul.f32 %v3616, %v3376
    %v3621 = vmul.f32 %v3619, %v3376
    %v3622 = vmul.f32 %v3610, %v3610
    %v3623 = vmul.f32 %v3611, %v3611
    %v3624 = vsub.f32 %v3620, %v3622
    %v3625 = vsub.f32 %v3621, %v3623
    %v3626 = vsub.f32 %v3600, %v3610
    %v3627 = vsub.f32 %v3601, %v3611
    %v3628 = vadd.f32 %v3624, 1e-05
    %v3629 = vadd.f32 %v3625, 1e-05
    %v3630 = vrsqrt.pop %v3628
    %v3631 = vrsqrt.pop %v3629
    %v3632 = vmul.f32 %v3626, %v3630
    %v3633 = vmul.f32 %v3627, %v3631
    %v3634 = vlaneseq
    %v3635 = vshrl.u32 %v3634, 7
    %v3636 = vsub.s32 0, %v3635
    %v3637 = vrot.slane %v3602, %v3636
    %v3638 = vmul.f32 %v3632, %v3637
    %v3639 = vmul.f32 %v3633, %v3637
    %v3640 = vlaneseq
    %v3641 = vshrl.u32 %v3640, 7
    %v3642 = vsub.s32 0, %v3641
    %v3643 = vrot.slane %v3603, %v3642
    %v3644 = vadd.f32 %v3638, %v3643
    %v3645 = vadd.f32 %v3639, %v3643
    %v3646 = vld [vmem:[#allocation6 + $0x120] sm:$0xff]
    %v3647 = vld [vmem:[#allocation6 + $0x128] sm:$0xff]
    %v3648 = vld [vmem:[#allocation6 + $0x130] sm:$0xff]
    %v3649 = vld [vmem:[#allocation6 + $0x138] sm:$0xff]
    %v3650 = vld [vmem:[#allocation8 + $0xa] sm:$0x1]
    %v3651 = vlaneseq
    %v3652 = vshrl.u32 %v3651, 7
    %v3653 = vsub.s32 0, %v3652
    %v3654 = vrot.slane %v3650, %v3653
    %v3656 = vsel %vm408, %v3644, 0
    %v3659 = vsel %vm408, %v3645, 0
    %3661 = vmatprep.subr.mxu0 0.0
    %3662 = vmatpush1.msra.mxu0 %v3646
    %3663 = vmatprep.subr.mxu0 0.0
    %3664 = vmatpush1.msra.mxu0 %v3647
    %3665 = vmatprep.subr.mxu0 0.0
    %3666 = vmatpush1.msra.mxu0 %v3648
    %3667 = vmatprep.subr.mxu0 0.0
    %3668 = vmatpush1.msra.mxu0 %v3649
    %3669 = vmatprep.subr.mxu0 0.0
    %3670 = vmatpush1.msra.mxu0 0.0
    %3671 = vmatprep.subr.mxu0 0.0
    %3672 = vmatpush1.msra.mxu0 0.0
    %3673 = vmatprep.subr.mxu0 0.0
    %3674 = vmatpush1.msra.mxu0 0.0
    %3675 = vmatprep.subr.mxu0 0.0
    %3676 = vmatpush1.msra.mxu0 0.0
    %3677 = vmatprep.subr.mxu0 0.0
    %3678 = vmatpush1.msra.mxu0 0.0
    %3679 = vmatprep.subr.mxu0 0.0
    %3680 = vmatpush1.msra.mxu0 0.0
    %3681 = vmatprep.subr.mxu0 0.0
    %3682 = vmatpush1.msra.mxu0 0.0
    %3683 = vmatprep.subr.mxu0 0.0
    %3684 = vmatpush1.msra.mxu0 0.0
    %3685 = vmatprep.subr.mxu0 0.0
    %3686 = vmatpush1.msra.mxu0 0.0
    %3687 = vmatprep.subr.mxu0 0.0
    %3688 = vmatpush1.msra.mxu0 0.0
    %3689 = vmatprep.subr.mxu0 0.0
    %3690 = vmatpush1.msra.mxu0 0.0
    %3691 = vmatprep.subr.mxu0 0.0
    %3692 = vmatpush1.msra.mxu0 0.0
    %3693 = vmatprep.subr.mxu0 0.0
    %3694 = vmatpush1.msra.mxu0 0.0
    %3695 = vmatprep.subr.mxu0 0.0
    %3696 = vmatpush1.msra.mxu0 0.0
    %3697 = vmatprep.subr.mxu0 0.0
    %3698 = vmatpush1.msra.mxu0 0.0
    %3699 = vmatprep.subr.mxu0 0.0
    %3700 = vmatpush1.msra.mxu0 0.0
    %3701 = vmatprep.subr.mxu0 0.0
    %3702 = vmatpush1.msra.mxu0 0.0
    %3703 = vmatprep.subr.mxu0 0.0
    %3704 = vmatpush1.msra.mxu0 0.0
    %3705 = vmatprep.subr.mxu0 0.0
    %3706 = vmatpush1.msra.mxu0 0.0
    %3707 = vmatprep.subr.mxu0 0.0
    %3708 = vmatpush1.msra.mxu0 0.0
    %3709 = vmatprep.subr.mxu0 0.0
    %3710 = vmatpush1.msra.mxu0 0.0
    %3711 = vmatprep.subr.mxu0 0.0
    %3712 = vmatpush1.msra.mxu0 0.0
    %3713 = vmatprep.subr.mxu0 0.0
    %3714 = vmatpush1.msra.mxu0 0.0
    %3715 = vmatprep.subr.mxu0 0.0
    %3716 = vmatpush1.msra.mxu0 0.0
    %3717 = vmatprep.subr.mxu0 0.0
    %3718 = vmatpush1.msra.mxu0 0.0
    %3719 = vmatprep.subr.mxu0 0.0
    %3720 = vmatpush1.msra.mxu0 0.0
    %3721 = vmatprep.subr.mxu0 0.0
    %3722 = vmatpush1.msra.mxu0 0.0
    %3723 = vmatprep.subr.mxu0 0.0
    %3724 = vmatpush1.msra.mxu0 0.0
    %3725 = vmatprep.mubr.f32.mxu0 0.0
    %3726 = vmatmul.mubr.f32.gmra.mrb[0].mxu0 %v3656
    %v3727 = vpop.f32.mrb[0].mxu0
    %v3728 = vadd.f32 %v3654, %v3727
    %v3729 = vpop.f32.mrb[0].mxu0
    %3730 = vmatprep.mubr.f32.mxu0 0.0
    %3731 = vmatmul.mubr.f32.gmra.mrb[0].mxu0 %v3659
    %v3732 = vpop.f32.mrb[0].mxu0
    %v3733 = vadd.f32 %v3654, %v3732
    %v3734 = vpop.f32.mrb[0].mxu0
    %3735 = vdwg.mxu0
    %v3738 = vcombine.high %v3728, %v3728
    %v3740 = vunpack.c.l.s4 1983009808
    %v3741 = vunpack.c.0.s8 %v3740
    %v3742 = vlaneseq
    %v3743 = vshrl.u32 %v3742, 7
    %v3744 = vsub.s32 %v3741, %v3743
    %v3745 = vrot.slane %v3728, %v3744
    %v3747 = vunpack.c.l.s4 1983009808
    %v3748 = vunpack.c.0.s8 %v3747
    %v3749 = vlaneseq
    %v3750 = vshrl.u32 %v3749, 7
    %v3751 = vsub.s32 %v3748, %v3750
    %v3752 = vrot.slane %v3738, %v3751
    %v3753 = vcombine.high %v3745, %v3745
    %v3754 = vcombine.high %v3752, %v3752
    %v3755 = vcombine.high %v3733, %v3733
    %v3757 = vunpack.c.l.s4 1983009808
    %v3758 = vunpack.c.0.s8 %v3757
    %v3759 = vlaneseq
    %v3760 = vshrl.u32 %v3759, 7
    %v3761 = vsub.s32 %v3758, %v3760
    %v3762 = vrot.slane %v3733, %v3761
    %v3764 = vunpack.c.l.s4 1983009808
    %v3765 = vunpack.c.0.s8 %v3764
    %v3766 = vlaneseq
    %v3767 = vshrl.u32 %v3766, 7
    %v3768 = vsub.s32 %v3765, %v3767
    %v3769 = vrot.slane %v3755, %v3768
    %v3770 = vcombine.high %v3762, %v3762
    %v3771 = vcombine.high %v3769, %v3769
    %v3780 = vlaneseq
    %v3781 = vshrl.u32 %v3780, 7
    %v3782 = vsub.s32 0, %v3781
    %v3783 = vrot.slane %v3745, %v3782
    %v3784 = vlaneseq
    %v3785 = vshrl.u32 %v3784, 7
    %v3786 = vsub.s32 0, %v3785
    %v3787 = vrot.slane %v3753, %v3786
    %v3788 = vlaneseq
    %v3789 = vshrl.u32 %v3788, 7
    %v3790 = vsub.s32 0, %v3789
    %v3791 = vrot.slane %v3752, %v3790
    %v3792 = vlaneseq
    %v3793 = vshrl.u32 %v3792, 7
    %v3794 = vsub.s32 0, %v3793
    %v3795 = vrot.slane %v3754, %v3794
    %v3796 = vlaneseq
    %v3797 = vshrl.u32 %v3796, 7
    %v3798 = vsub.s32 0, %v3797
    %v3799 = vrot.slane %v3762, %v3798
    %v3800 = vlaneseq
    %v3801 = vshrl.u32 %v3800, 7
    %v3802 = vsub.s32 0, %v3801
    %v3803 = vrot.slane %v3770, %v3802
    %v3804 = vlaneseq
    %v3805 = vshrl.u32 %v3804, 7
    %v3806 = vsub.s32 0, %v3805
    %v3807 = vrot.slane %v3769, %v3806
    %v3808 = vlaneseq
    %v3809 = vshrl.u32 %v3808, 7
    %v3810 = vsub.s32 0, %v3809
    %v3811 = vrot.slane %v3771, %v3810
    %v3821 = vunpack.c.l.s4 1983009808
    %v3822 = vunpack.c.0.s8 %v3821
    %v3823 = vlaneseq
    %v3824 = vshrl.u32 %v3823, 7
    %v3825 = vsub.s32 %v3822, %v3824
    %v3826 = vrot.slane %v3783, %v3825
    %v3828 = vunpack.c.l.s4 1983009808
    %v3829 = vunpack.c.0.s8 %v3828
    %v3830 = vlaneseq
    %v3831 = vshrl.u32 %v3830, 7
    %v3832 = vsub.s32 %v3829, %v3831
    %v3833 = vrot.slane %v3787, %v3832
    %v3835 = vunpack.c.l.s4 1983009808
    %v3836 = vunpack.c.0.s8 %v3835
    %v3837 = vlaneseq
    %v3838 = vshrl.u32 %v3837, 7
    %v3839 = vsub.s32 %v3836, %v3838
    %v3840 = vrot.slane %v3791, %v3839
    %v3842 = vunpack.c.l.s4 1983009808
    %v3843 = vunpack.c.0.s8 %v3842
    %v3844 = vlaneseq
    %v3845 = vshrl.u32 %v3844, 7
    %v3846 = vsub.s32 %v3843, %v3845
    %v3847 = vrot.slane %v3795, %v3846
    %v3849 = vunpack.c.l.s4 1983009808
    %v3850 = vunpack.c.0.s8 %v3849
    %v3851 = vlaneseq
    %v3852 = vshrl.u32 %v3851, 7
    %v3853 = vsub.s32 %v3850, %v3852
    %v3854 = vrot.slane %v3799, %v3853
    %v3856 = vunpack.c.l.s4 1983009808
    %v3857 = vunpack.c.0.s8 %v3856
    %v3858 = vlaneseq
    %v3859 = vshrl.u32 %v3858, 7
    %v3860 = vsub.s32 %v3857, %v3859
    %v3861 = vrot.slane %v3803, %v3860
    %v3863 = vunpack.c.l.s4 1983009808
    %v3864 = vunpack.c.0.s8 %v3863
    %v3865 = vlaneseq
    %v3866 = vshrl.u32 %v3865, 7
    %v3867 = vsub.s32 %v3864, %v3866
    %v3868 = vrot.slane %v3807, %v3867
    %v3870 = vunpack.c.l.s4 1983009808
    %v3871 = vunpack.c.0.s8 %v3870
    %v3872 = vlaneseq
    %v3873 = vshrl.u32 %v3872, 7
    %v3874 = vsub.s32 %v3871, %v3873
    %v3875 = vrot.slane %v3811, %v3874
    %3876 = vrot.lane.b32.xlu0 %v3826, 96
    %v3877 = vpop.permute.xlu0 %3876
    %3878 = vrot.lane.b32.xlu0 %v3833, 96
    %v3879 = vpop.permute.xlu0 %3878
    %3880 = vrot.lane.b32.xlu0 %v3840, 96
    %v3881 = vpop.permute.xlu0 %3880
    %3882 = vrot.lane.b32.xlu0 %v3847, 96
    %v3883 = vpop.permute.xlu0 %3882
    %3884 = vrot.lane.b32.xlu0 %v3854, 96
    %v3885 = vpop.permute.xlu0 %3884
    %3886 = vrot.lane.b32.xlu0 %v3861, 96
    %v3887 = vpop.permute.xlu0 %3886
    %3888 = vrot.lane.b32.xlu0 %v3868, 96
    %v3889 = vpop.permute.xlu0 %3888
    %3890 = vrot.lane.b32.xlu0 %v3875, 96
    %v3891 = vpop.permute.xlu0 %3890
    %v3900 = vmul.f32 %v3745, %v3877
    %v3901 = vmul.f32 %v3753, %v3879
    %v3902 = vmul.f32 %v3752, %v3881
    %v3903 = vmul.f32 %v3754, %v3883
    %v3904 = vmul.f32 %v3762, %v3885
    %v3905 = vmul.f32 %v3770, %v3887
    %v3906 = vmul.f32 %v3769, %v3889
    %v3907 = vmul.f32 %v3771, %v3891
    %v3916 = vcombine.low %v3900, %v3901
    %v3917 = vcombine.low %v3902, %v3903
    %v3919 = vunpack.c.l.s4 1983009808
    %v3920 = vunpack.c.0.s8 %v3919
    %v3921 = vlaneseq
    %v3922 = vshrl.u32 %v3921, 7
    %v3923 = vsub.s32 %v3920, %v3922
    %v3924 = vrot.slane %v3916, %v3923
    %v3926 = vunpack.c.l.s4 1983009808
    %v3927 = vunpack.c.0.s8 %v3926
    %v3928 = vlaneseq
    %v3929 = vshrl.u32 %v3928, 7
    %v3930 = vsub.s32 %v3927, %v3929
    %v3931 = vrot.slane %v3917, %v3930
    %v3932 = vcombine.low %v3924, %v3931
    %v3933 = vcombine.low %v3904, %v3905
    %v3934 = vcombine.low %v3906, %v3907
    %v3936 = vunpack.c.l.s4 1983009808
    %v3937 = vunpack.c.0.s8 %v3936
    %v3938 = vlaneseq
    %v3939 = vshrl.u32 %v3938, 7
    %v3940 = vsub.s32 %v3937, %v3939
    %v3941 = vrot.slane %v3933, %v3940
    %v3943 = vunpack.c.l.s4 1983009808
    %v3944 = vunpack.c.0.s8 %v3943
    %v3945 = vlaneseq
    %v3946 = vshrl.u32 %v3945, 7
    %v3947 = vsub.s32 %v3944, %v3946
    %v3948 = vrot.slane %v3934, %v3947
    %v3949 = vcombine.low %v3941, %v3948
    %v3950 = vsel %vm408, %v3932, 0
    %v3952 = vsel %vm408, %v3949, 0
    %3954 = vmatprep.subr.mxu0 0.0
    %3955 = vmatpush1.msra.mxu0 %v2250
    %3956 = vmatprep.subr.mxu0 0.0
    %3957 = vmatpush1.msra.mxu0 %v2251
    %3958 = vmatprep.subr.mxu0 0.0
    %3959 = vmatpush1.msra.mxu0 %v2252
    %3960 = vmatprep.subr.mxu0 0.0
    %3961 = vmatpush1.msra.mxu0 %v2253
    %3962 = vmatprep.subr.mxu0 0.0
    %3963 = vmatpush1.msra.mxu0 0.0
    %3964 = vmatprep.subr.mxu0 0.0
    %3965 = vmatpush1.msra.mxu0 0.0
    %3966 = vmatprep.subr.mxu0 0.0
    %3967 = vmatpush1.msra.mxu0 0.0
    %3968 = vmatprep.subr.mxu0 0.0
    %3969 = vmatpush1.msra.mxu0 0.0
    %3970 = vmatprep.subr.mxu0 0.0
    %3971 = vmatpush1.msra.mxu0 0.0
    %3972 = vmatprep.subr.mxu0 0.0
    %3973 = vmatpush1.msra.mxu0 0.0
    %3974 = vmatprep.subr.mxu0 0.0
    %3975 = vmatpush1.msra.mxu0 0.0
    %3976 = vmatprep.subr.mxu0 0.0
    %3977 = vmatpush1.msra.mxu0 0.0
    %3978 = vmatprep.subr.mxu0 0.0
    %3979 = vmatpush1.msra.mxu0 0.0
    %3980 = vmatprep.subr.mxu0 0.0
    %3981 = vmatpush1.msra.mxu0 0.0
    %3982 = vmatprep.subr.mxu0 0.0
    %3983 = vmatpush1.msra.mxu0 0.0
    %3984 = vmatprep.subr.mxu0 0.0
    %3985 = vmatpush1.msra.mxu0 0.0
    %3986 = vmatprep.subr.mxu0 0.0
    %3987 = vmatpush1.msra.mxu0 0.0
    %3988 = vmatprep.subr.mxu0 0.0
    %3989 = vmatpush1.msra.mxu0 0.0
    %3990 = vmatprep.subr.mxu0 0.0
    %3991 = vmatpush1.msra.mxu0 0.0
    %3992 = vmatprep.subr.mxu0 0.0
    %3993 = vmatpush1.msra.mxu0 0.0
    %3994 = vmatprep.subr.mxu0 0.0
    %3995 = vmatpush1.msra.mxu0 0.0
    %3996 = vmatprep.subr.mxu0 0.0
    %3997 = vmatpush1.msra.mxu0 0.0
    %3998 = vmatprep.subr.mxu0 0.0
    %3999 = vmatpush1.msra.mxu0 0.0
    %4000 = vmatprep.subr.mxu0 0.0
    %4001 = vmatpush1.msra.mxu0 0.0
    %4002 = vmatprep.subr.mxu0 0.0
    %4003 = vmatpush1.msra.mxu0 0.0
    %4004 = vmatprep.subr.mxu0 0.0
    %4005 = vmatpush1.msra.mxu0 0.0
    %4006 = vmatprep.subr.mxu0 0.0
    %4007 = vmatpush1.msra.mxu0 0.0
    %4008 = vmatprep.subr.mxu0 0.0
    %4009 = vmatpush1.msra.mxu0 0.0
    %4010 = vmatprep.subr.mxu0 0.0
    %4011 = vmatpush1.msra.mxu0 0.0
    %4012 = vmatprep.subr.mxu0 0.0
    %4013 = vmatpush1.msra.mxu0 0.0
    %4014 = vmatprep.subr.mxu0 0.0
    %4015 = vmatpush1.msra.mxu0 0.0
    %4016 = vmatprep.subr.mxu0 0.0
    %4017 = vmatpush1.msra.mxu0 0.0
    %4018 = vmatprep.mubr.f32.mxu0 0.0
    %4019 = vmatmul.mubr.f32.gmra.mrb[0].mxu0 %v3950
    %v4020 = vpop.f32.mrb[0].mxu0
    %v4021 = vadd.f32 0.0, %v4020
    %v4022 = vpop.f32.mrb[0].mxu0
    %4023 = vmatprep.mubr.f32.mxu0 0.0
    %4024 = vmatmul.mubr.f32.gmra.mrb[0].mxu0 %v3952
    %v4025 = vpop.f32.mrb[0].mxu0
    %v4026 = vadd.f32 0.0, %v4025
    %v4027 = vpop.f32.mrb[0].mxu0
    %4028 = vdwg.mxu0
    %v4029 = vlaneseq
    %v4030 = vshrl.u32 %v4029, 7
    %v4031 = vsub.s32 1, %v4030
    %v4032 = vrot.slane %v3745, %v4031
    %v4033 = vlaneseq
    %v4034 = vshrl.u32 %v4033, 7
    %v4035 = vsub.s32 1, %v4034
    %v4036 = vrot.slane %v3753, %v4035
    %v4037 = vlaneseq
    %v4038 = vshrl.u32 %v4037, 7
    %v4039 = vsub.s32 1, %v4038
    %v4040 = vrot.slane %v3752, %v4039
    %v4041 = vlaneseq
    %v4042 = vshrl.u32 %v4041, 7
    %v4043 = vsub.s32 1, %v4042
    %v4044 = vrot.slane %v3754, %v4043
    %v4045 = vlaneseq
    %v4046 = vshrl.u32 %v4045, 7
    %v4047 = vsub.s32 1, %v4046
    %v4048 = vrot.slane %v3762, %v4047
    %v4049 = vlaneseq
    %v4050 = vshrl.u32 %v4049, 7
    %v4051 = vsub.s32 1, %v4050
    %v4052 = vrot.slane %v3770, %v4051
    %v4053 = vlaneseq
    %v4054 = vshrl.u32 %v4053, 7
    %v4055 = vsub.s32 1, %v4054
    %v4056 = vrot.slane %v3769, %v4055
    %v4057 = vlaneseq
    %v4058 = vshrl.u32 %v4057, 7
    %v4059 = vsub.s32 1, %v4058
    %v4060 = vrot.slane %v3771, %v4059
    %v4070 = vunpack.c.l.s4 1983009808
    %v4071 = vunpack.c.0.s8 %v4070
    %v4072 = vlaneseq
    %v4073 = vshrl.u32 %v4072, 7
    %v4074 = vsub.s32 %v4071, %v4073
    %v4075 = vrot.slane %v4032, %v4074
    %v4077 = vunpack.c.l.s4 1983009808
    %v4078 = vunpack.c.0.s8 %v4077
    %v4079 = vlaneseq
    %v4080 = vshrl.u32 %v4079, 7
    %v4081 = vsub.s32 %v4078, %v4080
    %v4082 = vrot.slane %v4036, %v4081
    %v4084 = vunpack.c.l.s4 1983009808
    %v4085 = vunpack.c.0.s8 %v4084
    %v4086 = vlaneseq
    %v4087 = vshrl.u32 %v4086, 7
    %v4088 = vsub.s32 %v4085, %v4087
    %v4089 = vrot.slane %v4040, %v4088
    %v4091 = vunpack.c.l.s4 1983009808
    %v4092 = vunpack.c.0.s8 %v4091
    %v4093 = vlaneseq
    %v4094 = vshrl.u32 %v4093, 7
    %v4095 = vsub.s32 %v4092, %v4094
    %v4096 = vrot.slane %v4044, %v4095
    %v4098 = vunpack.c.l.s4 1983009808
    %v4099 = vunpack.c.0.s8 %v4098
    %v4100 = vlaneseq
    %v4101 = vshrl.u32 %v4100, 7
    %v4102 = vsub.s32 %v4099, %v4101
    %v4103 = vrot.slane %v4048, %v4102
    %v4105 = vunpack.c.l.s4 1983009808
    %v4106 = vunpack.c.0.s8 %v4105
    %v4107 = vlaneseq
    %v4108 = vshrl.u32 %v4107, 7
    %v4109 = vsub.s32 %v4106, %v4108
    %v4110 = vrot.slane %v4052, %v4109
    %v4112 = vunpack.c.l.s4 1983009808
    %v4113 = vunpack.c.0.s8 %v4112
    %v4114 = vlaneseq
    %v4115 = vshrl.u32 %v4114, 7
    %v4116 = vsub.s32 %v4113, %v4115
    %v4117 = vrot.slane %v4056, %v4116
    %v4119 = vunpack.c.l.s4 1983009808
    %v4120 = vunpack.c.0.s8 %v4119
    %v4121 = vlaneseq
    %v4122 = vshrl.u32 %v4121, 7
    %v4123 = vsub.s32 %v4120, %v4122
    %v4124 = vrot.slane %v4060, %v4123
    %4125 = vrot.lane.b32.xlu0 %v4075, 96
    %v4126 = vpop.permute.xlu0 %4125
    %4127 = vrot.lane.b32.xlu0 %v4082, 96
    %v4128 = vpop.permute.xlu0 %4127
    %4129 = vrot.lane.b32.xlu0 %v4089, 96
    %v4130 = vpop.permute.xlu0 %4129
    %4131 = vrot.lane.b32.xlu0 %v4096, 96
    %v4132 = vpop.permute.xlu0 %4131
    %4133 = vrot.lane.b32.xlu0 %v4103, 96
    %v4134 = vpop.permute.xlu0 %4133
    %4135 = vrot.lane.b32.xlu0 %v4110, 96
    %v4136 = vpop.permute.xlu0 %4135
    %4137 = vrot.lane.b32.xlu0 %v4117, 96
    %v4138 = vpop.permute.xlu0 %4137
    %4139 = vrot.lane.b32.xlu0 %v4124, 96
    %v4140 = vpop.permute.xlu0 %4139
    %v4149 = vmul.f32 %v3745, %v4126
    %v4150 = vmul.f32 %v3753, %v4128
    %v4151 = vmul.f32 %v3752, %v4130
    %v4152 = vmul.f32 %v3754, %v4132
    %v4153 = vmul.f32 %v3762, %v4134
    %v4154 = vmul.f32 %v3770, %v4136
    %v4155 = vmul.f32 %v3769, %v4138
    %v4156 = vmul.f32 %v3771, %v4140
    %v4165 = vcombine.low %v4149, %v4150
    %v4166 = vcombine.low %v4151, %v4152
    %v4168 = vunpack.c.l.s4 1983009808
    %v4169 = vunpack.c.0.s8 %v4168
    %v4170 = vlaneseq
    %v4171 = vshrl.u32 %v4170, 7
    %v4172 = vsub.s32 %v4169, %v4171
    %v4173 = vrot.slane %v4165, %v4172
    %v4175 = vunpack.c.l.s4 1983009808
    %v4176 = vunpack.c.0.s8 %v4175
    %v4177 = vlaneseq
    %v4178 = vshrl.u32 %v4177, 7
    %v4179 = vsub.s32 %v4176, %v4178
    %v4180 = vrot.slane %v4166, %v4179
    %v4181 = vcombine.low %v4173, %v4180
    %v4182 = vcombine.low %v4153, %v4154
    %v4183 = vcombine.low %v4155, %v4156
    %v4185 = vunpack.c.l.s4 1983009808
    %v4186 = vunpack.c.0.s8 %v4185
    %v4187 = vlaneseq
    %v4188 = vshrl.u32 %v4187, 7
    %v4189 = vsub.s32 %v4186, %v4188
    %v4190 = vrot.slane %v4182, %v4189
    %v4192 = vunpack.c.l.s4 1983009808
    %v4193 = vunpack.c.0.s8 %v4192
    %v4194 = vlaneseq
    %v4195 = vshrl.u32 %v4194, 7
    %v4196 = vsub.s32 %v4193, %v4195
    %v4197 = vrot.slane %v4183, %v4196
    %v4198 = vcombine.low %v4190, %v4197
    %v4199 = vsel %vm408, %v4181, 0
    %v4201 = vsel %vm408, %v4198, 0
    %4203 = vmatprep.subr.mxu0 0.0
    %4204 = vmatpush1.msra.mxu0 %v2250
    %4205 = vmatprep.subr.mxu0 0.0
    %4206 = vmatpush1.msra.mxu0 %v2251
    %4207 = vmatprep.subr.mxu0 0.0
    %4208 = vmatpush1.msra.mxu0 %v2252
    %4209 = vmatprep.subr.mxu0 0.0
    %4210 = vmatpush1.msra.mxu0 %v2253
    %4211 = vmatprep.subr.mxu0 0.0
    %4212 = vmatpush1.msra.mxu0 0.0
    %4213 = vmatprep.subr.mxu0 0.0
    %4214 = vmatpush1.msra.mxu0 0.0
    %4215 = vmatprep.subr.mxu0 0.0
    %4216 = vmatpush1.msra.mxu0 0.0
    %4217 = vmatprep.subr.mxu0 0.0
    %4218 = vmatpush1.msra.mxu0 0.0
    %4219 = vmatprep.subr.mxu0 0.0
    %4220 = vmatpush1.msra.mxu0 0.0
    %4221 = vmatprep.subr.mxu0 0.0
    %4222 = vmatpush1.msra.mxu0 0.0
    %4223 = vmatprep.subr.mxu0 0.0
    %4224 = vmatpush1.msra.mxu0 0.0
    %4225 = vmatprep.subr.mxu0 0.0
    %4226 = vmatpush1.msra.mxu0 0.0
    %4227 = vmatprep.subr.mxu0 0.0
    %4228 = vmatpush1.msra.mxu0 0.0
    %4229 = vmatprep.subr.mxu0 0.0
    %4230 = vmatpush1.msra.mxu0 0.0
    %4231 = vmatprep.subr.mxu0 0.0
    %4232 = vmatpush1.msra.mxu0 0.0
    %4233 = vmatprep.subr.mxu0 0.0
    %4234 = vmatpush1.msra.mxu0 0.0
    %4235 = vmatprep.subr.mxu0 0.0
    %4236 = vmatpush1.msra.mxu0 0.0
    %4237 = vmatprep.subr.mxu0 0.0
    %4238 = vmatpush1.msra.mxu0 0.0
    %4239 = vmatprep.subr.mxu0 0.0
    %4240 = vmatpush1.msra.mxu0 0.0
    %4241 = vmatprep.subr.mxu0 0.0
    %4242 = vmatpush1.msra.mxu0 0.0
    %4243 = vmatprep.subr.mxu0 0.0
    %4244 = vmatpush1.msra.mxu0 0.0
    %4245 = vmatprep.subr.mxu0 0.0
    %4246 = vmatpush1.msra.mxu0 0.0
    %4247 = vmatprep.subr.mxu0 0.0
    %4248 = vmatpush1.msra.mxu0 0.0
    %4249 = vmatprep.subr.mxu0 0.0
    %4250 = vmatpush1.msra.mxu0 0.0
    %4251 = vmatprep.subr.mxu0 0.0
    %4252 = vmatpush1.msra.mxu0 0.0
    %4253 = vmatprep.subr.mxu0 0.0
    %4254 = vmatpush1.msra.mxu0 0.0
    %4255 = vmatprep.subr.mxu0 0.0
    %4256 = vmatpush1.msra.mxu0 0.0
    %4257 = vmatprep.subr.mxu0 0.0
    %4258 = vmatpush1.msra.mxu0 0.0
    %4259 = vmatprep.subr.mxu0 0.0
    %4260 = vmatpush1.msra.mxu0 0.0
    %4261 = vmatprep.subr.mxu0 0.0
    %4262 = vmatpush1.msra.mxu0 0.0
    %4263 = vmatprep.subr.mxu0 0.0
    %4264 = vmatpush1.msra.mxu0 0.0
    %4265 = vmatprep.subr.mxu0 0.0
    %4266 = vmatpush1.msra.mxu0 0.0
    %4267 = vmatprep.mubr.f32.mxu0 0.0
    %4268 = vmatmul.mubr.f32.gmra.mrb[0].mxu0 %v4199
    %v4269 = vpop.f32.mrb[0].mxu0
    %v4270 = vadd.f32 0.0, %v4269
    %v4271 = vpop.f32.mrb[0].mxu0
    %4272 = vmatprep.mubr.f32.mxu0 0.0
    %4273 = vmatmul.mubr.f32.gmra.mrb[0].mxu0 %v4201
    %v4274 = vpop.f32.mrb[0].mxu0
    %v4275 = vadd.f32 0.0, %v4274
    %v4276 = vpop.f32.mrb[0].mxu0
    %4277 = vdwg.mxu0
    %v4278 = vmax.f32 %v4021, %v4270
    %v4279 = vmax.f32 %v4026, %v4275
    %v4280 = vsub.f32 %v4021, %v4278
    %v4281 = vsub.f32 %v4026, %v4279
    %v4282 = vmul.f32 %v4280, 1.442695
    %v4283 = vpow.pop %v4282
    %v4284 = vmul.f32 %v4281, 1.442695
    %v4285 = vpow.pop %v4284
    %v4286 = vsub.f32 %v4270, %v4278
    %v4287 = vsub.f32 %v4275, %v4279
    %v4288 = vmul.f32 %v4286, 1.442695
    %v4289 = vpow.pop %v4288
    %v4290 = vmul.f32 %v4287, 1.442695
    %v4291 = vpow.pop %v4290
    %v4292 = vadd.f32 %v4283, %v4289
    %v4293 = vadd.f32 %v4285, %v4291
    %v4294 = vrcp.pop %v4292
    %v4295 = vrcp.pop %v4293
    %v4296 = vmul.f32 %v4283, %v4294
    %v4297 = vmul.f32 %v4285, %v4295
    %v4299 = vsel %vm2907, %v4296, 0
    %v4302 = vsel %vm2907, %v4297, 0
    %4304 = vmatprep.subr.mxu0 0.0
    %4305 = vmatpush1.msra.mxu0 %v2916
    %4306 = vmatprep.subr.mxu0 0.0
    %4307 = vmatpush1.msra.mxu0 0.0
    %4308 = vmatprep.subr.mxu0 0.0
    %4309 = vmatpush1.msra.mxu0 0.0
    %4310 = vmatprep.subr.mxu0 0.0
    %4311 = vmatpush1.msra.mxu0 0.0
    %4312 = vmatprep.subr.mxu0 0.0
    %4313 = vmatpush1.msra.mxu0 0.0
    %4314 = vmatprep.subr.mxu0 0.0
    %4315 = vmatpush1.msra.mxu0 0.0
    %4316 = vmatprep.subr.mxu0 0.0
    %4317 = vmatpush1.msra.mxu0 0.0
    %4318 = vmatprep.subr.mxu0 0.0
    %4319 = vmatpush1.msra.mxu0 0.0
    %4320 = vmatprep.subr.mxu0 0.0
    %4321 = vmatpush1.msra.mxu0 0.0
    %4322 = vmatprep.subr.mxu0 0.0
    %4323 = vmatpush1.msra.mxu0 0.0
    %4324 = vmatprep.subr.mxu0 0.0
    %4325 = vmatpush1.msra.mxu0 0.0
    %4326 = vmatprep.subr.mxu0 0.0
    %4327 = vmatpush1.msra.mxu0 0.0
    %4328 = vmatprep.subr.mxu0 0.0
    %4329 = vmatpush1.msra.mxu0 0.0
    %4330 = vmatprep.subr.mxu0 0.0
    %4331 = vmatpush1.msra.mxu0 0.0
    %4332 = vmatprep.subr.mxu0 0.0
    %4333 = vmatpush1.msra.mxu0 0.0
    %4334 = vmatprep.subr.mxu0 0.0
    %4335 = vmatpush1.msra.mxu0 0.0
    %4336 = vmatprep.subr.mxu0 0.0
    %4337 = vmatpush1.msra.mxu0 0.0
    %4338 = vmatprep.subr.mxu0 0.0
    %4339 = vmatpush1.msra.mxu0 0.0
    %4340 = vmatprep.subr.mxu0 0.0
    %4341 = vmatpush1.msra.mxu0 0.0
    %4342 = vmatprep.subr.mxu0 0.0
    %4343 = vmatpush1.msra.mxu0 0.0
    %4344 = vmatprep.subr.mxu0 0.0
    %4345 = vmatpush1.msra.mxu0 0.0
    %4346 = vmatprep.subr.mxu0 0.0
    %4347 = vmatpush1.msra.mxu0 0.0
    %4348 = vmatprep.subr.mxu0 0.0
    %4349 = vmatpush1.msra.mxu0 0.0
    %4350 = vmatprep.subr.mxu0 0.0
    %4351 = vmatpush1.msra.mxu0 0.0
    %4352 = vmatprep.subr.mxu0 0.0
    %4353 = vmatpush1.msra.mxu0 0.0
    %4354 = vmatprep.subr.mxu0 0.0
    %4355 = vmatpush1.msra.mxu0 0.0
    %4356 = vmatprep.subr.mxu0 0.0
    %4357 = vmatpush1.msra.mxu0 0.0
    %4358 = vmatprep.subr.mxu0 0.0
    %4359 = vmatpush1.msra.mxu0 0.0
    %4360 = vmatprep.subr.mxu0 0.0
    %4361 = vmatpush1.msra.mxu0 0.0
    %4362 = vmatprep.subr.mxu0 0.0
    %4363 = vmatpush1.msra.mxu0 0.0
    %4364 = vmatprep.subr.mxu0 0.0
    %4365 = vmatpush1.msra.mxu0 0.0
    %4366 = vmatprep.subr.mxu0 0.0
    %4367 = vmatpush1.msra.mxu0 0.0
    %4368 = vmatprep.mubr.f32.mxu0 0.0
    %4369 = vmatmul.mubr.f32.gmra.mrb[0].mxu0 %v4299
    %v4370 = vpop.f32.mrb[0].mxu0
    %v4371 = vadd.f32 0.0, %v4370
    %v4372 = vpop.f32.mrb[0].mxu0
    %4373 = vmatprep.mubr.f32.mxu0 0.0
    %4374 = vmatmul.mubr.f32.gmra.mrb[0].mxu0 %v4302
    %v4375 = vpop.f32.mrb[0].mxu0
    %v4376 = vadd.f32 0.0, %v4375
    %v4377 = vpop.f32.mrb[0].mxu0
    %4378 = vdwg.mxu0
    %v4381 = vcombine.high %v4371, %v4371
    %v4383 = vunpack.c.l.s4 1983009808
    %v4384 = vunpack.c.0.s8 %v4383
    %v4385 = vlaneseq
    %v4386 = vshrl.u32 %v4385, 7
    %v4387 = vsub.s32 %v4384, %v4386
    %v4388 = vrot.slane %v4371, %v4387
    %v4390 = vunpack.c.l.s4 1983009808
    %v4391 = vunpack.c.0.s8 %v4390
    %v4392 = vlaneseq
    %v4393 = vshrl.u32 %v4392, 7
    %v4394 = vsub.s32 %v4391, %v4393
    %v4395 = vrot.slane %v4381, %v4394
    %v4396 = vcombine.high %v4388, %v4388
    %v4397 = vcombine.high %v4395, %v4395
    %v4398 = vcombine.high %v4376, %v4376
    %v4400 = vunpack.c.l.s4 1983009808
    %v4401 = vunpack.c.0.s8 %v4400
    %v4402 = vlaneseq
    %v4403 = vshrl.u32 %v4402, 7
    %v4404 = vsub.s32 %v4401, %v4403
    %v4405 = vrot.slane %v4376, %v4404
    %v4407 = vunpack.c.l.s4 1983009808
    %v4408 = vunpack.c.0.s8 %v4407
    %v4409 = vlaneseq
    %v4410 = vshrl.u32 %v4409, 7
    %v4411 = vsub.s32 %v4408, %v4410
    %v4412 = vrot.slane %v4398, %v4411
    %v4413 = vcombine.high %v4405, %v4405
    %v4414 = vcombine.high %v4412, %v4412
    %4423 = vrot.lane.b32.xlu0 %v3826, 64
    %v4424 = vpop.permute.xlu0 %4423
    %4425 = vrot.lane.b32.xlu0 %v3833, 64
    %v4426 = vpop.permute.xlu0 %4425
    %4427 = vrot.lane.b32.xlu0 %v3840, 64
    %v4428 = vpop.permute.xlu0 %4427
    %4429 = vrot.lane.b32.xlu0 %v3847, 64
    %v4430 = vpop.permute.xlu0 %4429
    %4431 = vrot.lane.b32.xlu0 %v3854, 64
    %v4432 = vpop.permute.xlu0 %4431
    %4433 = vrot.lane.b32.xlu0 %v3861, 64
    %v4434 = vpop.permute.xlu0 %4433
    %4435 = vrot.lane.b32.xlu0 %v3868, 64
    %v4436 = vpop.permute.xlu0 %4435
    %4437 = vrot.lane.b32.xlu0 %v3875, 64
    %v4438 = vpop.permute.xlu0 %4437
    %v4447 = vmul.f32 %v4388, %v4424
    %v4448 = vmul.f32 %v4396, %v4426
    %v4449 = vmul.f32 %v4395, %v4428
    %v4450 = vmul.f32 %v4397, %v4430
    %v4451 = vmul.f32 %v4405, %v4432
    %v4452 = vmul.f32 %v4413, %v4434
    %v4453 = vmul.f32 %v4412, %v4436
    %v4454 = vmul.f32 %v4414, %v4438
    %v4455 = vmul.f32 %v4289, %v4294
    %v4456 = vmul.f32 %v4291, %v4295
    %v4458 = vsel %vm2907, %v4455, 0
    %v4461 = vsel %vm2907, %v4456, 0
    %4463 = vmatprep.subr.mxu0 0.0
    %4464 = vmatpush1.msra.mxu0 %v2916
    %4465 = vmatprep.subr.mxu0 0.0
    %4466 = vmatpush1.msra.mxu0 0.0
    %4467 = vmatprep.subr.mxu0 0.0
    %4468 = vmatpush1.msra.mxu0 0.0
    %4469 = vmatprep.subr.mxu0 0.0
    %4470 = vmatpush1.msra.mxu0 0.0
    %4471 = vmatprep.subr.mxu0 0.0
    %4472 = vmatpush1.msra.mxu0 0.0
    %4473 = vmatprep.subr.mxu0 0.0
    %4474 = vmatpush1.msra.mxu0 0.0
    %4475 = vmatprep.subr.mxu0 0.0
    %4476 = vmatpush1.msra.mxu0 0.0
    %4477 = vmatprep.subr.mxu0 0.0
    %4478 = vmatpush1.msra.mxu0 0.0
    %4479 = vmatprep.subr.mxu0 0.0
    %4480 = vmatpush1.msra.mxu0 0.0
    %4481 = vmatprep.subr.mxu0 0.0
    %4482 = vmatpush1.msra.mxu0 0.0
    %4483 = vmatprep.subr.mxu0 0.0
    %4484 = vmatpush1.msra.mxu0 0.0
    %4485 = vmatprep.subr.mxu0 0.0
    %4486 = vmatpush1.msra.mxu0 0.0
    %4487 = vmatprep.subr.mxu0 0.0
    %4488 = vmatpush1.msra.mxu0 0.0
    %4489 = vmatprep.subr.mxu0 0.0
    %4490 = vmatpush1.msra.mxu0 0.0
    %4491 = vmatprep.subr.mxu0 0.0
    %4492 = vmatpush1.msra.mxu0 0.0
    %4493 = vmatprep.subr.mxu0 0.0
    %4494 = vmatpush1.msra.mxu0 0.0
    %4495 = vmatprep.subr.mxu0 0.0
    %4496 = vmatpush1.msra.mxu0 0.0
    %4497 = vmatprep.subr.mxu0 0.0
    %4498 = vmatpush1.msra.mxu0 0.0
    %4499 = vmatprep.subr.mxu0 0.0
    %4500 = vmatpush1.msra.mxu0 0.0
    %4501 = vmatprep.subr.mxu0 0.0
    %4502 = vmatpush1.msra.mxu0 0.0
    %4503 = vmatprep.subr.mxu0 0.0
    %4504 = vmatpush1.msra.mxu0 0.0
    %4505 = vmatprep.subr.mxu0 0.0
    %4506 = vmatpush1.msra.mxu0 0.0
    %4507 = vmatprep.subr.mxu0 0.0
    %4508 = vmatpush1.msra.mxu0 0.0
    %4509 = vmatprep.subr.mxu0 0.0
    %4510 = vmatpush1.msra.mxu0 0.0
    %4511 = vmatprep.subr.mxu0 0.0
    %4512 = vmatpush1.msra.mxu0 0.0
    %4513 = vmatprep.subr.mxu0 0.0
    %4514 = vmatpush1.msra.mxu0 0.0
    %4515 = vmatprep.subr.mxu0 0.0
    %4516 = vmatpush1.msra.mxu0 0.0
    %4517 = vmatprep.subr.mxu0 0.0
    %4518 = vmatpush1.msra.mxu0 0.0
    %4519 = vmatprep.subr.mxu0 0.0
    %4520 = vmatpush1.msra.mxu0 0.0
    %4521 = vmatprep.subr.mxu0 0.0
    %4522 = vmatpush1.msra.mxu0 0.0
    %4523 = vmatprep.subr.mxu0 0.0
    %4524 = vmatpush1.msra.mxu0 0.0
    %4525 = vmatprep.subr.mxu0 0.0
    %4526 = vmatpush1.msra.mxu0 0.0
    %4527 = vmatprep.mubr.f32.mxu0 0.0
    %4528 = vmatmul.mubr.f32.gmra.mrb[0].mxu0 %v4458
    %v4529 = vpop.f32.mrb[0].mxu0
    %v4530 = vadd.f32 0.0, %v4529
    %v4531 = vpop.f32.mrb[0].mxu0
    %4532 = vmatprep.mubr.f32.mxu0 0.0
    %4533 = vmatmul.mubr.f32.gmra.mrb[0].mxu0 %v4461
    %v4534 = vpop.f32.mrb[0].mxu0
    %v4535 = vadd.f32 0.0, %v4534
    %v4536 = vpop.f32.mrb[0].mxu0
    %4537 = vdwg.mxu0
    %v4540 = vcombine.high %v4530, %v4530
    %v4542 = vunpack.c.l.s4 1983009808
    %v4543 = vunpack.c.0.s8 %v4542
    %v4544 = vlaneseq
    %v4545 = vshrl.u32 %v4544, 7
    %v4546 = vsub.s32 %v4543, %v4545
    %v4547 = vrot.slane %v4530, %v4546
    %v4549 = vunpack.c.l.s4 1983009808
    %v4550 = vunpack.c.0.s8 %v4549
    %v4551 = vlaneseq
    %v4552 = vshrl.u32 %v4551, 7
    %v4553 = vsub.s32 %v4550, %v4552
    %v4554 = vrot.slane %v4540, %v4553
    %v4555 = vcombine.high %v4547, %v4547
    %v4556 = vcombine.high %v4554, %v4554
    %v4557 = vcombine.high %v4535, %v4535
    %v4559 = vunpack.c.l.s4 1983009808
    %v4560 = vunpack.c.0.s8 %v4559
    %v4561 = vlaneseq
    %v4562 = vshrl.u32 %v4561, 7
    %v4563 = vsub.s32 %v4560, %v4562
    %v4564 = vrot.slane %v4535, %v4563
    %v4566 = vunpack.c.l.s4 1983009808
    %v4567 = vunpack.c.0.s8 %v4566
    %v4568 = vlaneseq
    %v4569 = vshrl.u32 %v4568, 7
    %v4570 = vsub.s32 %v4567, %v4569
    %v4571 = vrot.slane %v4557, %v4570
    %v4572 = vcombine.high %v4564, %v4564
    %v4573 = vcombine.high %v4571, %v4571
    %4582 = vrot.lane.b32.xlu0 %v4075, 64
    %v4583 = vpop.permute.xlu0 %4582
    %4584 = vrot.lane.b32.xlu0 %v4082, 64
    %v4585 = vpop.permute.xlu0 %4584
    %4586 = vrot.lane.b32.xlu0 %v4089, 64
    %v4587 = vpop.permute.xlu0 %4586
    %4588 = vrot.lane.b32.xlu0 %v4096, 64
    %v4589 = vpop.permute.xlu0 %4588
    %4590 = vrot.lane.b32.xlu0 %v4103, 64
    %v4591 = vpop.permute.xlu0 %4590
    %4592 = vrot.lane.b32.xlu0 %v4110, 64
    %v4593 = vpop.permute.xlu0 %4592
    %4594 = vrot.lane.b32.xlu0 %v4117, 64
    %v4595 = vpop.permute.xlu0 %4594
    %4596 = vrot.lane.b32.xlu0 %v4124, 64
    %v4597 = vpop.permute.xlu0 %4596
    %v4606 = vmul.f32 %v4547, %v4583
    %v4607 = vmul.f32 %v4555, %v4585
    %v4608 = vmul.f32 %v4554, %v4587
    %v4609 = vmul.f32 %v4556, %v4589
    %v4610 = vmul.f32 %v4564, %v4591
    %v4611 = vmul.f32 %v4572, %v4593
    %v4612 = vmul.f32 %v4571, %v4595
    %v4613 = vmul.f32 %v4573, %v4597
    %v4614 = vadd.f32 %v4447, %v4606
    %v4615 = vadd.f32 %v4448, %v4607
    %v4616 = vadd.f32 %v4449, %v4608
    %v4617 = vadd.f32 %v4450, %v4609
    %v4618 = vadd.f32 %v4451, %v4610
    %v4619 = vadd.f32 %v4452, %v4611
    %v4620 = vadd.f32 %v4453, %v4612
    %v4621 = vadd.f32 %v4454, %v4613
    %v4622 = vld [vmem:[#allocation6 + $0x140] sm:$0xff]
    %v4623 = vld [vmem:[#allocation6 + $0x148] sm:$0xff]
    %v4624 = vld [vmem:[#allocation6 + $0x150] sm:$0xff]
    %v4625 = vld [vmem:[#allocation6 + $0x158] sm:$0xff]
    %v4626 = vld [vmem:[#allocation8 + $0xb] sm:$0x1]
    %v4627 = vlaneseq
    %v4628 = vshrl.u32 %v4627, 7
    %v4629 = vsub.s32 0, %v4628
    %v4630 = vrot.slane %v4626, %v4629
    %v4639 = vcombine.low %v4614, %v4615
    %v4640 = vcombine.low %v4616, %v4617
    %v4642 = vunpack.c.l.s4 1983009808
    %v4643 = vunpack.c.0.s8 %v4642
    %v4644 = vlaneseq
    %v4645 = vshrl.u32 %v4644, 7
    %v4646 = vsub.s32 %v4643, %v4645
    %v4647 = vrot.slane %v4639, %v4646
    %v4649 = vunpack.c.l.s4 1983009808
    %v4650 = vunpack.c.0.s8 %v4649
    %v4651 = vlaneseq
    %v4652 = vshrl.u32 %v4651, 7
    %v4653 = vsub.s32 %v4650, %v4652
    %v4654 = vrot.slane %v4640, %v4653
    %v4655 = vcombine.low %v4647, %v4654
    %v4656 = vcombine.low %v4618, %v4619
    %v4657 = vcombine.low %v4620, %v4621
    %v4659 = vunpack.c.l.s4 1983009808
    %v4660 = vunpack.c.0.s8 %v4659
    %v4661 = vlaneseq
    %v4662 = vshrl.u32 %v4661, 7
    %v4663 = vsub.s32 %v4660, %v4662
    %v4664 = vrot.slane %v4656, %v4663
    %v4666 = vunpack.c.l.s4 1983009808
    %v4667 = vunpack.c.0.s8 %v4666
    %v4668 = vlaneseq
    %v4669 = vshrl.u32 %v4668, 7
    %v4670 = vsub.s32 %v4667, %v4669
    %v4671 = vrot.slane %v4657, %v4670
    %v4672 = vcombine.low %v4664, %v4671
    %v4673 = vsel %vm408, %v4655, 0
    %v4675 = vsel %vm408, %v4672, 0
    %4677 = vmatprep.subr.mxu0 0.0
    %4678 = vmatpush1.msra.mxu0 %v4622
    %4679 = vmatprep.subr.mxu0 0.0
    %4680 = vmatpush1.msra.mxu0 %v4623
    %4681 = vmatprep.subr.mxu0 0.0
    %4682 = vmatpush1.msra.mxu0 %v4624
    %4683 = vmatprep.subr.mxu0 0.0
    %4684 = vmatpush1.msra.mxu0 %v4625
    %4685 = vmatprep.subr.mxu0 0.0
    %4686 = vmatpush1.msra.mxu0 0.0
    %4687 = vmatprep.subr.mxu0 0.0
    %4688 = vmatpush1.msra.mxu0 0.0
    %4689 = vmatprep.subr.mxu0 0.0
    %4690 = vmatpush1.msra.mxu0 0.0
    %4691 = vmatprep.subr.mxu0 0.0
    %4692 = vmatpush1.msra.mxu0 0.0
    %4693 = vmatprep.subr.mxu0 0.0
    %4694 = vmatpush1.msra.mxu0 0.0
    %4695 = vmatprep.subr.mxu0 0.0
    %4696 = vmatpush1.msra.mxu0 0.0
    %4697 = vmatprep.subr.mxu0 0.0
    %4698 = vmatpush1.msra.mxu0 0.0
    %4699 = vmatprep.subr.mxu0 0.0
    %4700 = vmatpush1.msra.mxu0 0.0
    %4701 = vmatprep.subr.mxu0 0.0
    %4702 = vmatpush1.msra.mxu0 0.0
    %4703 = vmatprep.subr.mxu0 0.0
    %4704 = vmatpush1.msra.mxu0 0.0
    %4705 = vmatprep.subr.mxu0 0.0
    %4706 = vmatpush1.msra.mxu0 0.0
    %4707 = vmatprep.subr.mxu0 0.0
    %4708 = vmatpush1.msra.mxu0 0.0
    %4709 = vmatprep.subr.mxu0 0.0
    %4710 = vmatpush1.msra.mxu0 0.0
    %4711 = vmatprep.subr.mxu0 0.0
    %4712 = vmatpush1.msra.mxu0 0.0
    %4713 = vmatprep.subr.mxu0 0.0
    %4714 = vmatpush1.msra.mxu0 0.0
    %4715 = vmatprep.subr.mxu0 0.0
    %4716 = vmatpush1.msra.mxu0 0.0
    %4717 = vmatprep.subr.mxu0 0.0
    %4718 = vmatpush1.msra.mxu0 0.0
    %4719 = vmatprep.subr.mxu0 0.0
    %4720 = vmatpush1.msra.mxu0 0.0
    %4721 = vmatprep.subr.mxu0 0.0
    %4722 = vmatpush1.msra.mxu0 0.0
    %4723 = vmatprep.subr.mxu0 0.0
    %4724 = vmatpush1.msra.mxu0 0.0
    %4725 = vmatprep.subr.mxu0 0.0
    %4726 = vmatpush1.msra.mxu0 0.0
    %4727 = vmatprep.subr.mxu0 0.0
    %4728 = vmatpush1.msra.mxu0 0.0
    %4729 = vmatprep.subr.mxu0 0.0
    %4730 = vmatpush1.msra.mxu0 0.0
    %4731 = vmatprep.subr.mxu0 0.0
    %4732 = vmatpush1.msra.mxu0 0.0
    %4733 = vmatprep.subr.mxu0 0.0
    %4734 = vmatpush1.msra.mxu0 0.0
    %4735 = vmatprep.subr.mxu0 0.0
    %4736 = vmatpush1.msra.mxu0 0.0
    %4737 = vmatprep.subr.mxu0 0.0
    %4738 = vmatpush1.msra.mxu0 0.0
    %4739 = vmatprep.subr.mxu0 0.0
    %4740 = vmatpush1.msra.mxu0 0.0
    %4741 = vmatprep.mubr.f32.mxu0 0.0
    %4742 = vmatmul.mubr.f32.gmra.mrb[0].mxu0 %v4673
    %v4743 = vpop.f32.mrb[0].mxu0
    %v4744 = vadd.f32 %v4630, %v4743
    %v4745 = vpop.f32.mrb[0].mxu0
    %4746 = vmatprep.mubr.f32.mxu0 0.0
    %4747 = vmatmul.mubr.f32.gmra.mrb[0].mxu0 %v4675
    %v4748 = vpop.f32.mrb[0].mxu0
    %v4749 = vadd.f32 %v4630, %v4748
    %v4750 = vpop.f32.mrb[0].mxu0
    %4751 = vdwg.mxu0
    %v4752 = vadd.f32 %v3644, %v4744
    %v4753 = vadd.f32 %v3645, %v4749
    %v4754 = vld [vmem:[#allocation8 + $0xe] sm:$0x1]
    %v4755 = vld [vmem:[#allocation8 + $0xf] sm:$0x1]
    %v4756 = vsel %vm408, %v4752, 0.0
    %4757 = vadd.xlane.f32.xlu0 %v4756
    %v4758 = vpop.xlane.xlu0 %4757
    %v4759 = vsel %vm408, %v4753, 0.0
    %4760 = vadd.xlane.f32.xlu0 %v4759
    %v4761 = vpop.xlane.xlu0 %4760
    %v4762 = vmul.f32 %v4758, %v3376
    %v4763 = vmul.f32 %v4761, %v3376
    %v4764 = vmul.f32 %v4752, %v4752
    %v4765 = vmul.f32 %v4753, %v4753
    %v4766 = vsel %vm408, %v4764, 0.0
    %4767 = vadd.xlane.f32.xlu0 %v4766
    %v4768 = vpop.xlane.xlu0 %4767
    %v4769 = vsel %vm408, %v4765, 0.0
    %4770 = vadd.xlane.f32.xlu0 %v4769
    %v4771 = vpop.xlane.xlu0 %4770
    %v4772 = vmul.f32 %v4768, %v3376
    %v4773 = vmul.f32 %v4771, %v3376
    %v4774 = vmul.f32 %v4762, %v4762
    %v4775 = vmul.f32 %v4763, %v4763
    %v4776 = vsub.f32 %v4772, %v4774
    %v4777 = vsub.f32 %v4773, %v4775
    %v4778 = vsub.f32 %v4752, %v4762
    %v4779 = vsub.f32 %v4753, %v4763
    %v4780 = vadd.f32 %v4776, 1e-05
    %v4781 = vadd.f32 %v4777, 1e-05
    %v4782 = vrsqrt.pop %v4780
    %v4783 = vrsqrt.pop %v4781
    %v4784 = vmul.f32 %v4778, %v4782
    %v4785 = vmul.f32 %v4779, %v4783
    %v4786 = vlaneseq
    %v4787 = vshrl.u32 %v4786, 7
    %v4788 = vsub.s32 0, %v4787
    %v4789 = vrot.slane %v4754, %v4788
    %v4790 = vmul.f32 %v4784, %v4789
    %v4791 = vmul.f32 %v4785, %v4789
    %v4792 = vlaneseq
    %v4793 = vshrl.u32 %v4792, 7
    %v4794 = vsub.s32 0, %v4793
    %v4795 = vrot.slane %v4755, %v4794
    %v4796 = vadd.f32 %v4790, %v4795
    %v4797 = vadd.f32 %v4791, %v4795
    %v4798 = vld [vmem:[#allocation6 + $0x160] sm:$0xff]
    %v4799 = vld [vmem:[#allocation6 + $0x168] sm:$0xff]
    %v4800 = vld [vmem:[#allocation6 + $0x170] sm:$0xff]
    %v4801 = vld [vmem:[#allocation6 + $0x178] sm:$0xff]
    %v4802 = vld [vmem:[#allocation8 + $0xc] sm:$0x1]
    %v4803 = vlaneseq
    %v4804 = vshrl.u32 %v4803, 7
    %v4805 = vsub.s32 0, %v4804
    %v4806 = vrot.slane %v4802, %v4805
    %v4808 = vsel %vm408, %v4796, 0
    %v4811 = vsel %vm408, %v4797, 0
    %4813 = vmatprep.subr.mxu0 0.0
    %4814 = vmatpush1.msra.mxu0 %v4798
    %4815 = vmatprep.subr.mxu0 0.0
    %4816 = vmatpush1.msra.mxu0 %v4799
    %4817 = vmatprep.subr.mxu0 0.0
    %4818 = vmatpush1.msra.mxu0 %v4800
    %4819 = vmatprep.subr.mxu0 0.0
    %4820 = vmatpush1.msra.mxu0 %v4801
    %4821 = vmatprep.subr.mxu0 0.0
    %4822 = vmatpush1.msra.mxu0 0.0
    %4823 = vmatprep.subr.mxu0 0.0
    %4824 = vmatpush1.msra.mxu0 0.0
    %4825 = vmatprep.subr.mxu0 0.0
    %4826 = vmatpush1.msra.mxu0 0.0
    %4827 = vmatprep.subr.mxu0 0.0
    %4828 = vmatpush1.msra.mxu0 0.0
    %4829 = vmatprep.subr.mxu0 0.0
    %4830 = vmatpush1.msra.mxu0 0.0
    %4831 = vmatprep.subr.mxu0 0.0
    %4832 = vmatpush1.msra.mxu0 0.0
    %4833 = vmatprep.subr.mxu0 0.0
    %4834 = vmatpush1.msra.mxu0 0.0
    %4835 = vmatprep.subr.mxu0 0.0
    %4836 = vmatpush1.msra.mxu0 0.0
    %4837 = vmatprep.subr.mxu0 0.0
    %4838 = vmatpush1.msra.mxu0 0.0
    %4839 = vmatprep.subr.mxu0 0.0
    %4840 = vmatpush1.msra.mxu0 0.0
    %4841 = vmatprep.subr.mxu0 0.0
    %4842 = vmatpush1.msra.mxu0 0.0
    %4843 = vmatprep.subr.mxu0 0.0
    %4844 = vmatpush1.msra.mxu0 0.0
    %4845 = vmatprep.subr.mxu0 0.0
    %4846 = vmatpush1.msra.mxu0 0.0
    %4847 = vmatprep.subr.mxu0 0.0
    %4848 = vmatpush1.msra.mxu0 0.0
    %4849 = vmatprep.subr.mxu0 0.0
    %4850 = vmatpush1.msra.mxu0 0.0
    %4851 = vmatprep.subr.mxu0 0.0
    %4852 = vmatpush1.msra.mxu0 0.0
    %4853 = vmatprep.subr.mxu0 0.0
    %4854 = vmatpush1.msra.mxu0 0.0
    %4855 = vmatprep.subr.mxu0 0.0
    %4856 = vmatpush1.msra.mxu0 0.0
    %4857 = vmatprep.subr.mxu0 0.0
    %4858 = vmatpush1.msra.mxu0 0.0
    %4859 = vmatprep.subr.mxu0 0.0
    %4860 = vmatpush1.msra.mxu0 0.0
    %4861 = vmatprep.subr.mxu0 0.0
    %4862 = vmatpush1.msra.mxu0 0.0
    %4863 = vmatprep.subr.mxu0 0.0
    %4864 = vmatpush1.msra.mxu0 0.0
    %4865 = vmatprep.subr.mxu0 0.0
    %4866 = vmatpush1.msra.mxu0 0.0
    %4867 = vmatprep.subr.mxu0 0.0
    %4868 = vmatpush1.msra.mxu0 0.0
    %4869 = vmatprep.subr.mxu0 0.0
    %4870 = vmatpush1.msra.mxu0 0.0
    %4871 = vmatprep.subr.mxu0 0.0
    %4872 = vmatpush1.msra.mxu0 0.0
    %4873 = vmatprep.subr.mxu0 0.0
    %4874 = vmatpush1.msra.mxu0 0.0
    %4875 = vmatprep.subr.mxu0 0.0
    %4876 = vmatpush1.msra.mxu0 0.0
    %4877 = vmatprep.mubr.f32.mxu0 0.0
    %4878 = vmatmul.mubr.f32.gmra.mrb[0].mxu0 %v4808
    %v4879 = vpop.f32.mrb[0].mxu0
    %v4880 = vadd.f32 %v4806, %v4879
    %v4881 = vpop.f32.mrb[0].mxu0
    %4882 = vmatprep.mubr.f32.mxu0 0.0
    %4883 = vmatmul.mubr.f32.gmra.mrb[0].mxu0 %v4811
    %v4884 = vpop.f32.mrb[0].mxu0
    %v4885 = vadd.f32 %v4806, %v4884
    %v4886 = vpop.f32.mrb[0].mxu0
    %4887 = vdwg.mxu0
    %v4888 = vmax.f32 %v4880, 0.0
    %v4889 = vmax.f32 %v4885, 0.0
    %v4890 = vld [vmem:[#allocation6 + $0x180] sm:$0xff]
    %v4891 = vld [vmem:[#allocation6 + $0x188] sm:$0xff]
    %v4892 = vld [vmem:[#allocation6 + $0x190] sm:$0xff]
    %v4893 = vld [vmem:[#allocation6 + $0x198] sm:$0xff]
    %v4894 = vld [vmem:[#allocation6 + $0x1a0] sm:$0xff]
    %v4895 = vld [vmem:[#allocation6 + $0x1a8] sm:$0xff]
    %v4896 = vld [vmem:[#allocation6 + $0x1b0] sm:$0xff]
    %v4897 = vld [vmem:[#allocation6 + $0x1b8] sm:$0xff]
    %v4898 = vld [vmem:[#allocation8 + $0xd] sm:$0x1]
    %v4899 = vlaneseq
    %v4900 = vshrl.u32 %v4899, 7
    %v4901 = vsub.s32 0, %v4900
    %v4902 = vrot.slane %v4898, %v4901
    %v4904 = vsel %vm3518, %v4888, 0
    %v4907 = vsel %vm3518, %v4889, 0
    %4909 = vmatprep.subr.mxu0 0.0
    %4910 = vmatpush1.msra.mxu0 %v4890
    %4911 = vmatprep.subr.mxu0 0.0
    %4912 = vmatpush1.msra.mxu0 %v4891
    %4913 = vmatprep.subr.mxu0 0.0
    %4914 = vmatpush1.msra.mxu0 %v4892
    %4915 = vmatprep.subr.mxu0 0.0
    %4916 = vmatpush1.msra.mxu0 %v4893
    %4917 = vmatprep.subr.mxu0 0.0
    %4918 = vmatpush1.msra.mxu0 %v4894
    %4919 = vmatprep.subr.mxu0 0.0
    %4920 = vmatpush1.msra.mxu0 %v4895
    %4921 = vmatprep.subr.mxu0 0.0
    %4922 = vmatpush1.msra.mxu0 %v4896
    %4923 = vmatprep.subr.mxu0 0.0
    %4924 = vmatpush1.msra.mxu0 %v4897
    %4925 = vmatprep.subr.mxu0 0.0
    %4926 = vmatpush1.msra.mxu0 0.0
    %4927 = vmatprep.subr.mxu0 0.0
    %4928 = vmatpush1.msra.mxu0 0.0
    %4929 = vmatprep.subr.mxu0 0.0
    %4930 = vmatpush1.msra.mxu0 0.0
    %4931 = vmatprep.subr.mxu0 0.0
    %4932 = vmatpush1.msra.mxu0 0.0
    %4933 = vmatprep.subr.mxu0 0.0
    %4934 = vmatpush1.msra.mxu0 0.0
    %4935 = vmatprep.subr.mxu0 0.0
    %4936 = vmatpush1.msra.mxu0 0.0
    %4937 = vmatprep.subr.mxu0 0.0
    %4938 = vmatpush1.msra.mxu0 0.0
    %4939 = vmatprep.subr.mxu0 0.0
    %4940 = vmatpush1.msra.mxu0 0.0
    %4941 = vmatprep.subr.mxu0 0.0
    %4942 = vmatpush1.msra.mxu0 0.0
    %4943 = vmatprep.subr.mxu0 0.0
    %4944 = vmatpush1.msra.mxu0 0.0
    %4945 = vmatprep.subr.mxu0 0.0
    %4946 = vmatpush1.msra.mxu0 0.0
    %4947 = vmatprep.subr.mxu0 0.0
    %4948 = vmatpush1.msra.mxu0 0.0
    %4949 = vmatprep.subr.mxu0 0.0
    %4950 = vmatpush1.msra.mxu0 0.0
    %4951 = vmatprep.subr.mxu0 0.0
    %4952 = vmatpush1.msra.mxu0 0.0
    %4953 = vmatprep.subr.mxu0 0.0
    %4954 = vmatpush1.msra.mxu0 0.0
    %4955 = vmatprep.subr.mxu0 0.0
    %4956 = vmatpush1.msra.mxu0 0.0
    %4957 = vmatprep.subr.mxu0 0.0
    %4958 = vmatpush1.msra.mxu0 0.0
    %4959 = vmatprep.subr.mxu0 0.0
    %4960 = vmatpush1.msra.mxu0 0.0
    %4961 = vmatprep.subr.mxu0 0.0
    %4962 = vmatpush1.msra.mxu0 0.0
    %4963 = vmatprep.subr.mxu0 0.0
    %4964 = vmatpush1.msra.mxu0 0.0
    %4965 = vmatprep.subr.mxu0 0.0
    %4966 = vmatpush1.msra.mxu0 0.0
    %4967 = vmatprep.subr.mxu0 0.0
    %4968 = vmatpush1.msra.mxu0 0.0
    %4969 = vmatprep.subr.mxu0 0.0
    %4970 = vmatpush1.msra.mxu0 0.0
    %4971 = vmatprep.subr.mxu0 0.0
    %4972 = vmatpush1.msra.mxu0 0.0
    %4973 = vmatprep.mubr.f32.mxu0 0.0
    %4974 = vmatmul.mubr.f32.gmra.mrb[0].mxu0 %v4904
    %v4975 = vpop.f32.mrb[0].mxu0
    %v4976 = vpop.f32.mrb[0].mxu0
    %4977 = vmatprep.mubr.f32.mxu0 0.0
    %4978 = vmatmul.mubr.f32.gmra.mrb[0].mxu0 %v4907
    %v4979 = vpop.f32.mrb[0].mxu0
    %v4980 = vadd.f32 %v4902, %v4979
    %v4981 = vpop.f32.mrb[0].mxu0
    %4982 = vdwg.mxu0
    %v4983 = vadd.f32 %v4797, %v4980
    %v4984 = vld [vmem:[#allocation8 + $0x10] sm:$0x1]
    %v4985 = vld [vmem:[#allocation8 + $0x11] sm:$0x1]
    %v4986 = vsel %vm408, %v4983, 0.0
    %4987 = vadd.xlane.f32.xlu0 %v4986
    %v4988 = vpop.xlane.xlu0 %4987
    %v4989 = vmul.f32 %v4988, %v3376
    %v4990 = vmul.f32 %v4983, %v4983
    %v4991 = vsel %vm408, %v4990, 0.0
    %4992 = vadd.xlane.f32.xlu0 %v4991
    %v4993 = vpop.xlane.xlu0 %4992
    %v4994 = vmul.f32 %v4993, %v3376
    %v4995 = vmul.f32 %v4989, %v4989
    %v4996 = vsub.f32 %v4994, %v4995
    %v4997 = vsub.f32 %v4983, %v4989
    %v4998 = vadd.f32 %v4996, 1e-05
    %v4999 = vrsqrt.pop %v4998
    %v5000 = vmul.f32 %v4997, %v4999
    %v5001 = vlaneseq
    %v5002 = vshrl.u32 %v5001, 7
    %v5003 = vsub.s32 0, %v5002
    %v5004 = vrot.slane %v4984, %v5003
    %v5005 = vmul.f32 %v5000, %v5004
    %v5006 = vlaneseq
    %v5007 = vshrl.u32 %v5006, 7
    %v5008 = vsub.s32 0, %v5007
    %v5009 = vrot.slane %v4985, %v5008
    %v5010 = vadd.f32 %v5005, %v5009
    %v5011 = vld [vmem:[#allocation6 + $0x1c0] sm:$0xff]
    %v5012 = vld [vmem:[#allocation6 + $0x1c8] sm:$0xff]
    %v5013 = vld [vmem:[#allocation6 + $0x1d0] sm:$0xff]
    %v5014 = vld [vmem:[#allocation6 + $0x1d8] sm:$0xff]
    %v5015 = vld [vmem:[#allocation8 + $0x12] sm:$0x1]
    %v5016 = vlaneseq
    %v5017 = vshrl.u32 %v5016, 7
    %v5018 = vsub.s32 0, %v5017
    %v5019 = vrot.slane %v5015, %v5018
    %v5021 = vrot.slane %v5010, 6
    %v5022 = vsel %vm408, %v5021, 0
    %5024 = vmatprep.subr.mxu0 0.0
    %5025 = vmatpush1.msra.mxu0 %v5011
    %5026 = vmatprep.subr.mxu0 0.0
    %5027 = vmatpush1.msra.mxu0 %v5012
    %5028 = vmatprep.subr.mxu0 0.0
    %5029 = vmatpush1.msra.mxu0 %v5013
    %5030 = vmatprep.subr.mxu0 0.0
    %5031 = vmatpush1.msra.mxu0 %v5014
    %5032 = vmatprep.subr.mxu0 0.0
    %5033 = vmatpush1.msra.mxu0 0.0
    %5034 = vmatprep.subr.mxu0 0.0
    %5035 = vmatpush1.msra.mxu0 0.0
    %5036 = vmatprep.subr.mxu0 0.0
    %5037 = vmatpush1.msra.mxu0 0.0
    %5038 = vmatprep.subr.mxu0 0.0
    %5039 = vmatpush1.msra.mxu0 0.0
    %5040 = vmatprep.subr.mxu0 0.0
    %5041 = vmatpush1.msra.mxu0 0.0
    %5042 = vmatprep.subr.mxu0 0.0
    %5043 = vmatpush1.msra.mxu0 0.0
    %5044 = vmatprep.subr.mxu0 0.0
    %5045 = vmatpush1.msra.mxu0 0.0
    %5046 = vmatprep.subr.mxu0 0.0
    %5047 = vmatpush1.msra.mxu0 0.0
    %5048 = vmatprep.subr.mxu0 0.0
    %5049 = vmatpush1.msra.mxu0 0.0
    %5050 = vmatprep.subr.mxu0 0.0
    %5051 = vmatpush1.msra.mxu0 0.0
    %5052 = vmatprep.subr.mxu0 0.0
    %5053 = vmatpush1.msra.mxu0 0.0
    %5054 = vmatprep.subr.mxu0 0.0
    %5055 = vmatpush1.msra.mxu0 0.0
    %5056 = vmatprep.subr.mxu0 0.0
    %5057 = vmatpush1.msra.mxu0 0.0
    %5058 = vmatprep.subr.mxu0 0.0
    %5059 = vmatpush1.msra.mxu0 0.0
    %5060 = vmatprep.subr.mxu0 0.0
    %5061 = vmatpush1.msra.mxu0 0.0
    %5062 = vmatprep.subr.mxu0 0.0
    %5063 = vmatpush1.msra.mxu0 0.0
    %5064 = vmatprep.subr.mxu0 0.0
    %5065 = vmatpush1.msra.mxu0 0.0
    %5066 = vmatprep.subr.mxu0 0.0
    %5067 = vmatpush1.msra.mxu0 0.0
    %5068 = vmatprep.subr.mxu0 0.0
    %5069 = vmatpush1.msra.mxu0 0.0
    %5070 = vmatprep.subr.mxu0 0.0
    %5071 = vmatpush1.msra.mxu0 0.0
    %5072 = vmatprep.subr.mxu0 0.0
    %5073 = vmatpush1.msra.mxu0 0.0
    %5074 = vmatprep.subr.mxu0 0.0
    %5075 = vmatpush1.msra.mxu0 0.0
    %5076 = vmatprep.subr.mxu0 0.0
    %5077 = vmatpush1.msra.mxu0 0.0
    %5078 = vmatprep.subr.mxu0 0.0
    %5079 = vmatpush1.msra.mxu0 0.0
    %5080 = vmatprep.subr.mxu0 0.0
    %5081 = vmatpush1.msra.mxu0 0.0
    %5082 = vmatprep.subr.mxu0 0.0
    %5083 = vmatpush1.msra.mxu0 0.0
    %5084 = vmatprep.subr.mxu0 0.0
    %5085 = vmatpush1.msra.mxu0 0.0
    %5086 = vmatprep.subr.mxu0 0.0
    %5087 = vmatpush1.msra.mxu0 0.0
    %5088 = vmatprep.mubr.f32.mxu0 0.0
    %5089 = vmatmul.mubr.f32.gmra.mrb[0].mxu0 %v5022
    %v5090 = vpop.f32.mrb[0].mxu0
    %v5091 = vadd.f32 %v5019, %v5090
    %v5092 = vpop.f32.mrb[0].mxu0
    %5093 = vdwg.mxu0
    %vm5094 = vcmask 25600
    %5095 = vst.msk [vmem:[#allocation9] sm:$0x3] %vm5094, %v5091
    // Predicated region
    $region26: #{tpu_custom_call.1} parent=1 // pred_check
      _
    $region27: #{tpu_custom_call.1} parent=1 // pred_check_branch
      %5097 = sbr.rel (0) target = $region29
    $region28: #{tpu_custom_call.1} parent=1 // pred_region
      %s5099 = ssub.s32 32, 32
      %5100 = vsyncadd [#allocation5], %s5099
      %s5102 = sshll.u32 [#allocation9], 4
      %s5103 = int_to_ptr.vmem [resolvable:$true] %s5102
      %5105 = dma.vmem_to_hbm [thread:$0]  %s5103, 32, %s3, [#allocation5]
    $region29: #{tpu_custom_call.1} parent=1 // pred_fallthru
      _
    // Predicated region
    $region30: #{tpu_custom_call.1} parent=1 // pred_check
      _
    $region31: #{tpu_custom_call.1} parent=1 // pred_check_branch
      %5107 = sbr.rel (0) target = $region33
    $region32: #{tpu_custom_call.1} parent=1 // pred_region
      %5108 = dma.done [#allocation5], 32
    $region33: #{tpu_custom_call.1} parent=1 // pred_fallthru
      _
    %5109 = vsyncpa [#allocation4], 1
    %5110 = vsyncpa [#allocation7], 1
    %5111 = vsyncpa [#allocation5], 1

</llo_original>
